<compile_context>
chip_gen: v7x
topology: tpu7x:2x2x1
jax: 0.10.0
libtpu: 0.0.40
codegen_flags: <defaults>
</compile_context>

<pallas_src>
import jax
import jax.numpy as jnp
from jax import lax
from jax.experimental import pallas as pl
from jax.experimental.pallas import tpu as pltpu

OUT_LANES = 128  # lane-dense output padding (unmasked vst)


def neural_mf_kernel(
    # scalar-prefetch refs (SMEM)
    uid_ref, mid_ref,                  # (B_pad,) int32 each
    # inputs
    user_tbl_hbm, item_tbl_hbm,        # (U, mf+half), (I, mf+half) f32, HBM
    w1a_ref, w1b_ref, b1_ref,          # (half,l1) bf16 x2, (1,l1) f32
    w2_ref, b2_ref,                    # (l1,l2) bf16, (1,l2) f32
    w3_ref, b3_ref,                    # (l2,mf) bf16, (1,mf) f32
    w4a_ref, w4b_ref, b4_ref,          # (1,mf) f32 x2, (1,1) f32
    # output
    out_ref,                           # (TB, OUT_LANES) f32
    # scratch
    ubuf, ibuf,                        # (TB, mf+half) f32 VMEM
    sem,                               # DMA semaphores (2, TB)
):
    tb = ubuf.shape[0]
    mf_dim = w4a_ref.shape[1]
    base = pl.program_id(0) * tb

    # ---- DMA gather of TB user rows + TB item rows from HBM tables --------
    for r in range(tb):
        u = uid_ref[base + r]
        m = mid_ref[base + r]
        pltpu.make_async_copy(user_tbl_hbm.at[pl.ds(u, 1)],
                              ubuf.at[pl.ds(r, 1)], sem.at[0, r]).start()
        pltpu.make_async_copy(item_tbl_hbm.at[pl.ds(m, 1)],
                              ibuf.at[pl.ds(r, 1)], sem.at[1, r]).start()
    for r in range(tb):
        pltpu.make_async_copy(user_tbl_hbm.at[pl.ds(0, 1)],
                              ubuf.at[pl.ds(r, 1)], sem.at[0, r]).wait()
        pltpu.make_async_copy(item_tbl_hbm.at[pl.ds(0, 1)],
                              ibuf.at[pl.ds(r, 1)], sem.at[1, r]).wait()

    u_rows = ubuf[...]                       # (TB, mf+half) f32
    i_rows = ibuf[...]
    mf_user, mlp_user = u_rows[:, :mf_dim], u_rows[:, mf_dim:]
    mf_item, mlp_item = i_rows[:, :mf_dim], i_rows[:, mf_dim:]

    # ---- GMF branch (VPU) --------------------------------------------------
    mf_vec = mf_user * mf_item               # (TB, mf)

    # ---- MLP branch: cat + Linear rewritten as split matmul; bf16 MXU ------
    h1 = (jnp.dot(mlp_user.astype(jnp.bfloat16), w1a_ref[...],
                  preferred_element_type=jnp.float32)
          + jnp.dot(mlp_item.astype(jnp.bfloat16), w1b_ref[...],
                    preferred_element_type=jnp.float32)
          + b1_ref[...])
    h1 = jnp.maximum(h1, 0.0)

    h2 = jnp.dot(h1.astype(jnp.bfloat16), w2_ref[...],
                 preferred_element_type=jnp.float32) + b2_ref[...]
    h2 = jnp.maximum(h2, 0.0)

    mlp_vec = jnp.dot(h2.astype(jnp.bfloat16), w3_ref[...],
                      preferred_element_type=jnp.float32) + b3_ref[...]

    # ---- head Linear(2*mf_dim, 1): VPU multiply + lane reduction -----------
    logit = (jnp.sum(mf_vec * w4a_ref[...], axis=-1, keepdims=True)
             + jnp.sum(mlp_vec * w4b_ref[...], axis=-1, keepdims=True)
             + b4_ref[...])
    score = jax.nn.sigmoid(logit)            # (TB, 1)

    # lane-dense (unmasked) store; wrapper reads lane 0
    out_ref[...] = jnp.broadcast_to(score, out_ref.shape)


def neural_mf_forward(uid, mid, params, *, block_b=8):
    """uid, mid: int arrays (B,).  Returns sigmoid scores (B,) float32."""
    B = uid.shape[0]
    n_tiles = pl.cdiv(B, block_b)
    b_pad = n_tiles * block_b
    # pad ids with 0 (a valid row); padded outputs are dropped below
    uid_p = jnp.zeros((b_pad,), jnp.int32).at[:B].set(uid.astype(jnp.int32))
    mid_p = jnp.zeros((b_pad,), jnp.int32).at[:B].set(mid.astype(jnp.int32))

    user_tbl = params["user_tbl"]
    item_tbl = params["item_tbl"]
    half, l1 = params["w1a"].shape
    l2 = params["w2"].shape[1]
    mf_dim = params["w3"].shape[1]
    d_emb = user_tbl.shape[1]

    # weights stay VMEM-resident: same block index every grid step
    def res(shape):
        return pl.BlockSpec(shape, lambda i, u_ids, m_ids: (0, 0))

    grid_spec = pltpu.PrefetchScalarGridSpec(
        num_scalar_prefetch=2,
        grid=(n_tiles,),
        in_specs=[
            pl.BlockSpec(memory_space=pl.ANY),     # user table stays in HBM
            pl.BlockSpec(memory_space=pl.ANY),     # item table stays in HBM
            res((half, l1)), res((half, l1)), res((1, l1)),
            res((l1, l2)), res((1, l2)),
            res((l2, mf_dim)), res((1, mf_dim)),
            res((1, mf_dim)), res((1, mf_dim)), res((1, 1)),
        ],
        out_specs=pl.BlockSpec((block_b, OUT_LANES),
                               lambda i, u_ids, m_ids: (i, 0)),
        scratch_shapes=[
            pltpu.VMEM((block_b, d_emb), jnp.float32),
            pltpu.VMEM((block_b, d_emb), jnp.float32),
            pltpu.SemaphoreType.DMA((2, block_b)),
        ],
    )

    out = pl.pallas_call(
        neural_mf_kernel,
        out_shape=jax.ShapeDtypeStruct((b_pad, OUT_LANES), jnp.float32),
        grid_spec=grid_spec,
        compiler_params=pltpu.CompilerParams(
            dimension_semantics=("parallel",),      # megacore sharding on v7x
            vmem_limit_bytes=32 * 1024 * 1024,      # safe on v5e/v6e/v7x
        ),
    )(uid_p, mid_p,
      user_tbl, item_tbl,
      params["w1a"], params["w1b"], params["b1"],
      params["w2"], params["b2"],
      params["w3"], params["b3"],
      params["w4a"], params["w4b"], params["b4"])

    return out[:B, 0]    # (B,)  — matches torch .squeeze()


def make_params(key, num_users, num_items, mf_dim, layers):
    """Synthetic NeuralMF parameters, pre-laid-out for the Pallas kernel.

    - user/item tables fused on the feature axis: [MF_emb | MLP_emb]
    - Linear weights stored transposed ([in, out]); w1 and w4 pre-split.
    - MXU weights (w1a/w1b/w2/w3) stored bf16; everything else f32.
    """
    ks = jax.random.split(key, 12)
    u = lambda k, shape: jax.random.uniform(k, shape, jnp.float32, 0.0, 0.005)
    half = layers[0] // 2
    w1 = u(ks[4], (layers[0], layers[1]))
    w4 = u(ks[10], (2 * mf_dim, 1))
    return {
        "user_tbl": jnp.concatenate([u(ks[0], (num_users, mf_dim)),
                                     u(ks[2], (num_users, half))], axis=1),
        "item_tbl": jnp.concatenate([u(ks[1], (num_items, mf_dim)),
                                     u(ks[3], (num_items, half))], axis=1),
        "w1a": w1[:half].astype(jnp.bfloat16),
        "w1b": w1[half:].astype(jnp.bfloat16),
        "b1": u(ks[5], (1, layers[1])),
        "w2": u(ks[6], (layers[1], layers[2])).astype(jnp.bfloat16),
        "b2": u(ks[7], (1, layers[2])),
        "w3": u(ks[8], (layers[2], mf_dim)).astype(jnp.bfloat16),
        "b3": u(ks[9], (1, mf_dim)),
        "w4a": w4[:mf_dim].T,            # (1, mf_dim) f32
        "w4b": w4[mf_dim:].T,            # (1, mf_dim) f32
        "b4": u(ks[11], (1, 1)),
    }


def reference_forward(uid, mid, params):
    """Pure-JAX reference mirroring the PyTorch forward (f32 math; uses the
    same bf16-rounded MXU weights as the kernel, so only activation rounding
    and accumulation order differ)."""
    mf_dim = params["w3"].shape[1]
    ru = params["user_tbl"][uid]
    ri = params["item_tbl"][mid]
    mf_vec = ru[:, :mf_dim] * ri[:, :mf_dim]
    x_u, x_i = ru[:, mf_dim:], ri[:, mf_dim:]
    h1 = jax.nn.relu(x_u @ params["w1a"].astype(jnp.float32)
                     + x_i @ params["w1b"].astype(jnp.float32) + params["b1"])
    h2 = jax.nn.relu(h1 @ params["w2"].astype(jnp.float32) + params["b2"])
    mlp_vec = h2 @ params["w3"].astype(jnp.float32) + params["b3"]
    logit = (jnp.sum(mf_vec * params["w4a"], axis=-1, keepdims=True)
             + jnp.sum(mlp_vec * params["w4b"], axis=-1, keepdims=True)
             + params["b4"])
    return jax.nn.sigmoid(logit).reshape(-1)


if __name__ == "__main__":
    layers = [16, 32, 64]
    num_users, num_items, mf_dim = 32, 48, 8
    batch, block_b = 20, 8          # batch not divisible by tile -> exercises padding

    key = jax.random.PRNGKey(0)
    kp, ku, km = jax.random.split(key, 3)
    params = make_params(kp, num_users, num_items, mf_dim, layers)
    uid = jax.random.randint(ku, (batch,), 0, num_users, dtype=jnp.int32)
    mid = jax.random.randint(km, (batch,), 0, num_items, dtype=jnp.int32)

    out = neural_mf_forward(uid, mid, params, block_b=block_b)
    out = jax.block_until_ready(out)

    ref = reference_forward(uid, mid, params)
    assert out.shape == (batch,)
    assert jnp.allclose(out, ref, atol=5e-4, rtol=1e-3), (out, ref)
    print("KERNEL_OK")
</pallas_src>

<mosaic_0001>
module attributes {stable_mosaic.version = 11 : i64} {
  func.func @neural_mf_kernel(%arg0: i32, %arg1: memref<24xi32, #tpu.memory_space<smem>>, %arg2: memref<24xi32, #tpu.memory_space<smem>>, %arg3: memref<32x16xf32, #tpu.memory_space<any>>, %arg4: memref<48x16xf32, #tpu.memory_space<any>>, %arg5: memref<8x32xbf16, #tpu.memory_space<vmem>>, %arg6: memref<8x32xbf16, #tpu.memory_space<vmem>>, %arg7: memref<1x32xf32, #tpu.memory_space<vmem>>, %arg8: memref<32x64xbf16, #tpu.memory_space<vmem>>, %arg9: memref<1x64xf32, #tpu.memory_space<vmem>>, %arg10: memref<64x8xbf16, #tpu.memory_space<vmem>>, %arg11: memref<1x8xf32, #tpu.memory_space<vmem>>, %arg12: memref<1x8xf32, #tpu.memory_space<vmem>>, %arg13: memref<1x8xf32, #tpu.memory_space<vmem>>, %arg14: memref<1x1xf32, #tpu.memory_space<vmem>>, %arg15: memref<8x128xf32, #tpu.memory_space<vmem>>, %arg16: memref<8x16xf32, #tpu.memory_space<vmem>>, %arg17: memref<8x16xf32, #tpu.memory_space<vmem>>, %arg18: memref<2x8x!tpu.dma_semaphore, #tpu.memory_space<semaphore_mem>>) attributes {dimension_semantics = [#tpu.dimension_semantics<parallel>], iteration_bounds = array<i64: 3>, scalar_prefetch = 2 : i64, scratch_operands = 3 : i64, tpu.core_type = #tpu.core_type<tc>, window_params = [{}, {}, {pipeline_mode = #tpu.pipeline_mode<synchronous>, transform_indices = @transform_2, window_bounds = array<i64: 8, 32>}, {pipeline_mode = #tpu.pipeline_mode<synchronous>, transform_indices = @transform_3, window_bounds = array<i64: 8, 32>}, {pipeline_mode = #tpu.pipeline_mode<synchronous>, transform_indices = @transform_4, window_bounds = array<i64: 1, 32>}, {pipeline_mode = #tpu.pipeline_mode<synchronous>, transform_indices = @transform_5, window_bounds = array<i64: 32, 64>}, {pipeline_mode = #tpu.pipeline_mode<synchronous>, transform_indices = @transform_6, window_bounds = array<i64: 1, 64>}, {pipeline_mode = #tpu.pipeline_mode<synchronous>, transform_indices = @transform_7, window_bounds = array<i64: 64, 8>}, {pipeline_mode = #tpu.pipeline_mode<synchronous>, transform_indices = @transform_8, window_bounds = array<i64: 1, 8>}, {pipeline_mode = #tpu.pipeline_mode<synchronous>, transform_indices = @transform_9, window_bounds = array<i64: 1, 8>}, {pipeline_mode = #tpu.pipeline_mode<synchronous>, transform_indices = @transform_10, window_bounds = array<i64: 1, 8>}, {pipeline_mode = #tpu.pipeline_mode<synchronous>, transform_indices = @transform_11, window_bounds = array<i64: 1, 1>}, {transform_indices = @transform_12, window_bounds = array<i64: 8, 128>}]} {
    %c8_i32 = arith.constant 8 : i32
    %0 = arith.muli %arg0, %c8_i32 : i32
    %c0_i32 = arith.constant 0 : i32
    %1 = arith.addi %0, %c0_i32 : i32
    %2 = arith.index_cast %1 : i32 to index
    %3 = memref.load %arg1[%2] : memref<24xi32, #tpu.memory_space<smem>>
    %c0_i32_0 = arith.constant 0 : i32
    %4 = arith.addi %0, %c0_i32_0 : i32
    %5 = arith.index_cast %4 : i32 to index
    %6 = memref.load %arg2[%5] : memref<24xi32, #tpu.memory_space<smem>>
    %c0_i32_1 = arith.constant 0 : i32
    %c0_i32_2 = arith.constant 0 : i32
    %c0_i32_3 = arith.constant 0 : i32
    %7 = tpu.memref_slice %arg3[%3, %c0_i32_3] : memref<32x16xf32, #tpu.memory_space<any>> -> memref<1x16xf32, #tpu.memory_space<any>>
    %c0_i32_4 = arith.constant 0 : i32
    %c0_i32_5 = arith.constant 0 : i32
    %8 = tpu.memref_slice %arg16[%c0_i32_4, %c0_i32_5] : memref<8x16xf32, #tpu.memory_space<vmem>> -> memref<1x16xf32, #tpu.memory_space<vmem>>
    %9 = tpu.memref_slice %arg18[%c0_i32_1, %c0_i32_2] : memref<2x8x!tpu.dma_semaphore, #tpu.memory_space<semaphore_mem>> -> memref<1x1x!tpu.dma_semaphore, #tpu.memory_space<semaphore_mem>>
    %10 = tpu.memref_squeeze %9 : memref<1x1x!tpu.dma_semaphore, #tpu.memory_space<semaphore_mem>> -> memref<!tpu.dma_semaphore, #tpu.memory_space<semaphore_mem>>
    tpu.enqueue_dma source(%7 : memref<1x16xf32, #tpu.memory_space<any>>) target(%8 : memref<1x16xf32, #tpu.memory_space<vmem>>) target_semaphore(%10 : memref<!tpu.dma_semaphore, #tpu.memory_space<semaphore_mem>>)
    %c1_i32 = arith.constant 1 : i32
    %c0_i32_6 = arith.constant 0 : i32
    %c0_i32_7 = arith.constant 0 : i32
    %11 = tpu.memref_slice %arg4[%6, %c0_i32_7] : memref<48x16xf32, #tpu.memory_space<any>> -> memref<1x16xf32, #tpu.memory_space<any>>
    %c0_i32_8 = arith.constant 0 : i32
    %c0_i32_9 = arith.constant 0 : i32
    %12 = tpu.memref_slice %arg17[%c0_i32_8, %c0_i32_9] : memref<8x16xf32, #tpu.memory_space<vmem>> -> memref<1x16xf32, #tpu.memory_space<vmem>>
    %13 = tpu.memref_slice %arg18[%c1_i32, %c0_i32_6] : memref<2x8x!tpu.dma_semaphore, #tpu.memory_space<semaphore_mem>> -> memref<1x1x!tpu.dma_semaphore, #tpu.memory_space<semaphore_mem>>
    %14 = tpu.memref_squeeze %13 : memref<1x1x!tpu.dma_semaphore, #tpu.memory_space<semaphore_mem>> -> memref<!tpu.dma_semaphore, #tpu.memory_space<semaphore_mem>>
    tpu.enqueue_dma source(%11 : memref<1x16xf32, #tpu.memory_space<any>>) target(%12 : memref<1x16xf32, #tpu.memory_space<vmem>>) target_semaphore(%14 : memref<!tpu.dma_semaphore, #tpu.memory_space<semaphore_mem>>)
    %c1_i32_10 = arith.constant 1 : i32
    %15 = arith.addi %0, %c1_i32_10 : i32
    %16 = arith.index_cast %15 : i32 to index
    %17 = memref.load %arg1[%16] : memref<24xi32, #tpu.memory_space<smem>>
    %c1_i32_11 = arith.constant 1 : i32
    %18 = arith.addi %0, %c1_i32_11 : i32
    %19 = arith.index_cast %18 : i32 to index
    %20 = memref.load %arg2[%19] : memref<24xi32, #tpu.memory_space<smem>>
    %c0_i32_12 = arith.constant 0 : i32
    %c1_i32_13 = arith.constant 1 : i32
    %c0_i32_14 = arith.constant 0 : i32
    %21 = tpu.memref_slice %arg3[%17, %c0_i32_14] : memref<32x16xf32, #tpu.memory_space<any>> -> memref<1x16xf32, #tpu.memory_space<any>>
    %c1_i32_15 = arith.constant 1 : i32
    %c0_i32_16 = arith.constant 0 : i32
    %22 = tpu.memref_slice %arg16[%c1_i32_15, %c0_i32_16] : memref<8x16xf32, #tpu.memory_space<vmem>> -> memref<1x16xf32, #tpu.memory_space<vmem>>
    %23 = tpu.memref_slice %arg18[%c0_i32_12, %c1_i32_13] : memref<2x8x!tpu.dma_semaphore, #tpu.memory_space<semaphore_mem>> -> memref<1x1x!tpu.dma_semaphore, #tpu.memory_space<semaphore_mem>>
    %24 = tpu.memref_squeeze %23 : memref<1x1x!tpu.dma_semaphore, #tpu.memory_space<semaphore_mem>> -> memref<!tpu.dma_semaphore, #tpu.memory_space<semaphore_mem>>
    tpu.enqueue_dma source(%21 : memref<1x16xf32, #tpu.memory_space<any>>) target(%22 : memref<1x16xf32, #tpu.memory_space<vmem>>) target_semaphore(%24 : memref<!tpu.dma_semaphore, #tpu.memory_space<semaphore_mem>>)
    %c1_i32_17 = arith.constant 1 : i32
    %c1_i32_18 = arith.constant 1 : i32
    %c0_i32_19 = arith.constant 0 : i32
    %25 = tpu.memref_slice %arg4[%20, %c0_i32_19] : memref<48x16xf32, #tpu.memory_space<any>> -> memref<1x16xf32, #tpu.memory_space<any>>
    %c1_i32_20 = arith.constant 1 : i32
    %c0_i32_21 = arith.constant 0 : i32
    %26 = tpu.memref_slice %arg17[%c1_i32_20, %c0_i32_21] : memref<8x16xf32, #tpu.memory_space<vmem>> -> memref<1x16xf32, #tpu.memory_space<vmem>>
    %27 = tpu.memref_slice %arg18[%c1_i32_17, %c1_i32_18] : memref<2x8x!tpu.dma_semaphore, #tpu.memory_space<semaphore_mem>> -> memref<1x1x!tpu.dma_semaphore, #tpu.memory_space<semaphore_mem>>
    %28 = tpu.memref_squeeze %27 : memref<1x1x!tpu.dma_semaphore, #tpu.memory_space<semaphore_mem>> -> memref<!tpu.dma_semaphore, #tpu.memory_space<semaphore_mem>>
    tpu.enqueue_dma source(%25 : memref<1x16xf32, #tpu.memory_space<any>>) target(%26 : memref<1x16xf32, #tpu.memory_space<vmem>>) target_semaphore(%28 : memref<!tpu.dma_semaphore, #tpu.memory_space<semaphore_mem>>)
    %c2_i32 = arith.constant 2 : i32
    %29 = arith.addi %0, %c2_i32 : i32
    %30 = arith.index_cast %29 : i32 to index
    %31 = memref.load %arg1[%30] : memref<24xi32, #tpu.memory_space<smem>>
    %c2_i32_22 = arith.constant 2 : i32
    %32 = arith.addi %0, %c2_i32_22 : i32
    %33 = arith.index_cast %32 : i32 to index
    %34 = memref.load %arg2[%33] : memref<24xi32, #tpu.memory_space<smem>>
    %c0_i32_23 = arith.constant 0 : i32
    %c2_i32_24 = arith.constant 2 : i32
    %c0_i32_25 = arith.constant 0 : i32
    %35 = tpu.memref_slice %arg3[%31, %c0_i32_25] : memref<32x16xf32, #tpu.memory_space<any>> -> memref<1x16xf32, #tpu.memory_space<any>>
    %c2_i32_26 = arith.constant 2 : i32
    %c0_i32_27 = arith.constant 0 : i32
    %36 = tpu.memref_slice %arg16[%c2_i32_26, %c0_i32_27] : memref<8x16xf32, #tpu.memory_space<vmem>> -> memref<1x16xf32, #tpu.memory_space<vmem>>
    %37 = tpu.memref_slice %arg18[%c0_i32_23, %c2_i32_24] : memref<2x8x!tpu.dma_semaphore, #tpu.memory_space<semaphore_mem>> -> memref<1x1x!tpu.dma_semaphore, #tpu.memory_space<semaphore_mem>>
    %38 = tpu.memref_squeeze %37 : memref<1x1x!tpu.dma_semaphore, #tpu.memory_space<semaphore_mem>> -> memref<!tpu.dma_semaphore, #tpu.memory_space<semaphore_mem>>
    tpu.enqueue_dma source(%35 : memref<1x16xf32, #tpu.memory_space<any>>) target(%36 : memref<1x16xf32, #tpu.memory_space<vmem>>) target_semaphore(%38 : memref<!tpu.dma_semaphore, #tpu.memory_space<semaphore_mem>>)
    %c1_i32_28 = arith.constant 1 : i32
    %c2_i32_29 = arith.constant 2 : i32
    %c0_i32_30 = arith.constant 0 : i32
    %39 = tpu.memref_slice %arg4[%34, %c0_i32_30] : memref<48x16xf32, #tpu.memory_space<any>> -> memref<1x16xf32, #tpu.memory_space<any>>
    %c2_i32_31 = arith.constant 2 : i32
    %c0_i32_32 = arith.constant 0 : i32
    %40 = tpu.memref_slice %arg17[%c2_i32_31, %c0_i32_32] : memref<8x16xf32, #tpu.memory_space<vmem>> -> memref<1x16xf32, #tpu.memory_space<vmem>>
    %41 = tpu.memref_slice %arg18[%c1_i32_28, %c2_i32_29] : memref<2x8x!tpu.dma_semaphore, #tpu.memory_space<semaphore_mem>> -> memref<1x1x!tpu.dma_semaphore, #tpu.memory_space<semaphore_mem>>
    %42 = tpu.memref_squeeze %41 : memref<1x1x!tpu.dma_semaphore, #tpu.memory_space<semaphore_mem>> -> memref<!tpu.dma_semaphore, #tpu.memory_space<semaphore_mem>>
    tpu.enqueue_dma source(%39 : memref<1x16xf32, #tpu.memory_space<any>>) target(%40 : memref<1x16xf32, #tpu.memory_space<vmem>>) target_semaphore(%42 : memref<!tpu.dma_semaphore, #tpu.memory_space<semaphore_mem>>)
    %c3_i32 = arith.constant 3 : i32
    %43 = arith.addi %0, %c3_i32 : i32
    %44 = arith.index_cast %43 : i32 to index
    %45 = memref.load %arg1[%44] : memref<24xi32, #tpu.memory_space<smem>>
    %c3_i32_33 = arith.constant 3 : i32
    %46 = arith.addi %0, %c3_i32_33 : i32
    %47 = arith.index_cast %46 : i32 to index
    %48 = memref.load %arg2[%47] : memref<24xi32, #tpu.memory_space<smem>>
    %c0_i32_34 = arith.constant 0 : i32
    %c3_i32_35 = arith.constant 3 : i32
    %c0_i32_36 = arith.constant 0 : i32
    %49 = tpu.memref_slice %arg3[%45, %c0_i32_36] : memref<32x16xf32, #tpu.memory_space<any>> -> memref<1x16xf32, #tpu.memory_space<any>>
    %c3_i32_37 = arith.constant 3 : i32
    %c0_i32_38 = arith.constant 0 : i32
    %50 = tpu.memref_slice %arg16[%c3_i32_37, %c0_i32_38] : memref<8x16xf32, #tpu.memory_space<vmem>> -> memref<1x16xf32, #tpu.memory_space<vmem>>
    %51 = tpu.memref_slice %arg18[%c0_i32_34, %c3_i32_35] : memref<2x8x!tpu.dma_semaphore, #tpu.memory_space<semaphore_mem>> -> memref<1x1x!tpu.dma_semaphore, #tpu.memory_space<semaphore_mem>>
    %52 = tpu.memref_squeeze %51 : memref<1x1x!tpu.dma_semaphore, #tpu.memory_space<semaphore_mem>> -> memref<!tpu.dma_semaphore, #tpu.memory_space<semaphore_mem>>
    tpu.enqueue_dma source(%49 : memref<1x16xf32, #tpu.memory_space<any>>) target(%50 : memref<1x16xf32, #tpu.memory_space<vmem>>) target_semaphore(%52 : memref<!tpu.dma_semaphore, #tpu.memory_space<semaphore_mem>>)
    %c1_i32_39 = arith.constant 1 : i32
    %c3_i32_40 = arith.constant 3 : i32
    %c0_i32_41 = arith.constant 0 : i32
    %53 = tpu.memref_slice %arg4[%48, %c0_i32_41] : memref<48x16xf32, #tpu.memory_space<any>> -> memref<1x16xf32, #tpu.memory_space<any>>
    %c3_i32_42 = arith.constant 3 : i32
    %c0_i32_43 = arith.constant 0 : i32
    %54 = tpu.memref_slice %arg17[%c3_i32_42, %c0_i32_43] : memref<8x16xf32, #tpu.memory_space<vmem>> -> memref<1x16xf32, #tpu.memory_space<vmem>>
    %55 = tpu.memref_slice %arg18[%c1_i32_39, %c3_i32_40] : memref<2x8x!tpu.dma_semaphore, #tpu.memory_space<semaphore_mem>> -> memref<1x1x!tpu.dma_semaphore, #tpu.memory_space<semaphore_mem>>
    %56 = tpu.memref_squeeze %55 : memref<1x1x!tpu.dma_semaphore, #tpu.memory_space<semaphore_mem>> -> memref<!tpu.dma_semaphore, #tpu.memory_space<semaphore_mem>>
    tpu.enqueue_dma source(%53 : memref<1x16xf32, #tpu.memory_space<any>>) target(%54 : memref<1x16xf32, #tpu.memory_space<vmem>>) target_semaphore(%56 : memref<!tpu.dma_semaphore, #tpu.memory_space<semaphore_mem>>)
    %c4_i32 = arith.constant 4 : i32
    %57 = arith.addi %0, %c4_i32 : i32
    %58 = arith.index_cast %57 : i32 to index
    %59 = memref.load %arg1[%58] : memref<24xi32, #tpu.memory_space<smem>>
    %c4_i32_44 = arith.constant 4 : i32
    %60 = arith.addi %0, %c4_i32_44 : i32
    %61 = arith.index_cast %60 : i32 to index
    %62 = memref.load %arg2[%61] : memref<24xi32, #tpu.memory_space<smem>>
    %c0_i32_45 = arith.constant 0 : i32
    %c4_i32_46 = arith.constant 4 : i32
    %c0_i32_47 = arith.constant 0 : i32
    %63 = tpu.memref_slice %arg3[%59, %c0_i32_47] : memref<32x16xf32, #tpu.memory_space<any>> -> memref<1x16xf32, #tpu.memory_space<any>>
    %c4_i32_48 = arith.constant 4 : i32
    %c0_i32_49 = arith.constant 0 : i32
    %64 = tpu.memref_slice %arg16[%c4_i32_48, %c0_i32_49] : memref<8x16xf32, #tpu.memory_space<vmem>> -> memref<1x16xf32, #tpu.memory_space<vmem>>
    %65 = tpu.memref_slice %arg18[%c0_i32_45, %c4_i32_46] : memref<2x8x!tpu.dma_semaphore, #tpu.memory_space<semaphore_mem>> -> memref<1x1x!tpu.dma_semaphore, #tpu.memory_space<semaphore_mem>>
    %66 = tpu.memref_squeeze %65 : memref<1x1x!tpu.dma_semaphore, #tpu.memory_space<semaphore_mem>> -> memref<!tpu.dma_semaphore, #tpu.memory_space<semaphore_mem>>
    tpu.enqueue_dma source(%63 : memref<1x16xf32, #tpu.memory_space<any>>) target(%64 : memref<1x16xf32, #tpu.memory_space<vmem>>) target_semaphore(%66 : memref<!tpu.dma_semaphore, #tpu.memory_space<semaphore_mem>>)
    %c1_i32_50 = arith.constant 1 : i32
    %c4_i32_51 = arith.constant 4 : i32
    %c0_i32_52 = arith.constant 0 : i32
    %67 = tpu.memref_slice %arg4[%62, %c0_i32_52] : memref<48x16xf32, #tpu.memory_space<any>> -> memref<1x16xf32, #tpu.memory_space<any>>
    %c4_i32_53 = arith.constant 4 : i32
    %c0_i32_54 = arith.constant 0 : i32
    %68 = tpu.memref_slice %arg17[%c4_i32_53, %c0_i32_54] : memref<8x16xf32, #tpu.memory_space<vmem>> -> memref<1x16xf32, #tpu.memory_space<vmem>>
    %69 = tpu.memref_slice %arg18[%c1_i32_50, %c4_i32_51] : memref<2x8x!tpu.dma_semaphore, #tpu.memory_space<semaphore_mem>> -> memref<1x1x!tpu.dma_semaphore, #tpu.memory_space<semaphore_mem>>
    %70 = tpu.memref_squeeze %69 : memref<1x1x!tpu.dma_semaphore, #tpu.memory_space<semaphore_mem>> -> memref<!tpu.dma_semaphore, #tpu.memory_space<semaphore_mem>>
    tpu.enqueue_dma source(%67 : memref<1x16xf32, #tpu.memory_space<any>>) target(%68 : memref<1x16xf32, #tpu.memory_space<vmem>>) target_semaphore(%70 : memref<!tpu.dma_semaphore, #tpu.memory_space<semaphore_mem>>)
    %c5_i32 = arith.constant 5 : i32
    %71 = arith.addi %0, %c5_i32 : i32
    %72 = arith.index_cast %71 : i32 to index
    %73 = memref.load %arg1[%72] : memref<24xi32, #tpu.memory_space<smem>>
    %c5_i32_55 = arith.constant 5 : i32
    %74 = arith.addi %0, %c5_i32_55 : i32
    %75 = arith.index_cast %74 : i32 to index
    %76 = memref.load %arg2[%75] : memref<24xi32, #tpu.memory_space<smem>>
    %c0_i32_56 = arith.constant 0 : i32
    %c5_i32_57 = arith.constant 5 : i32
    %c0_i32_58 = arith.constant 0 : i32
    %77 = tpu.memref_slice %arg3[%73, %c0_i32_58] : memref<32x16xf32, #tpu.memory_space<any>> -> memref<1x16xf32, #tpu.memory_space<any>>
    %c5_i32_59 = arith.constant 5 : i32
    %c0_i32_60 = arith.constant 0 : i32
    %78 = tpu.memref_slice %arg16[%c5_i32_59, %c0_i32_60] : memref<8x16xf32, #tpu.memory_space<vmem>> -> memref<1x16xf32, #tpu.memory_space<vmem>>
    %79 = tpu.memref_slice %arg18[%c0_i32_56, %c5_i32_57] : memref<2x8x!tpu.dma_semaphore, #tpu.memory_space<semaphore_mem>> -> memref<1x1x!tpu.dma_semaphore, #tpu.memory_space<semaphore_mem>>
    %80 = tpu.memref_squeeze %79 : memref<1x1x!tpu.dma_semaphore, #tpu.memory_space<semaphore_mem>> -> memref<!tpu.dma_semaphore, #tpu.memory_space<semaphore_mem>>
    tpu.enqueue_dma source(%77 : memref<1x16xf32, #tpu.memory_space<any>>) target(%78 : memref<1x16xf32, #tpu.memory_space<vmem>>) target_semaphore(%80 : memref<!tpu.dma_semaphore, #tpu.memory_space<semaphore_mem>>)
    %c1_i32_61 = arith.constant 1 : i32
    %c5_i32_62 = arith.constant 5 : i32
    %c0_i32_63 = arith.constant 0 : i32
    %81 = tpu.memref_slice %arg4[%76, %c0_i32_63] : memref<48x16xf32, #tpu.memory_space<any>> -> memref<1x16xf32, #tpu.memory_space<any>>
    %c5_i32_64 = arith.constant 5 : i32
    %c0_i32_65 = arith.constant 0 : i32
    %82 = tpu.memref_slice %arg17[%c5_i32_64, %c0_i32_65] : memref<8x16xf32, #tpu.memory_space<vmem>> -> memref<1x16xf32, #tpu.memory_space<vmem>>
    %83 = tpu.memref_slice %arg18[%c1_i32_61, %c5_i32_62] : memref<2x8x!tpu.dma_semaphore, #tpu.memory_space<semaphore_mem>> -> memref<1x1x!tpu.dma_semaphore, #tpu.memory_space<semaphore_mem>>
    %84 = tpu.memref_squeeze %83 : memref<1x1x!tpu.dma_semaphore, #tpu.memory_space<semaphore_mem>> -> memref<!tpu.dma_semaphore, #tpu.memory_space<semaphore_mem>>
    tpu.enqueue_dma source(%81 : memref<1x16xf32, #tpu.memory_space<any>>) target(%82 : memref<1x16xf32, #tpu.memory_space<vmem>>) target_semaphore(%84 : memref<!tpu.dma_semaphore, #tpu.memory_space<semaphore_mem>>)
    %c6_i32 = arith.constant 6 : i32
    %85 = arith.addi %0, %c6_i32 : i32
    %86 = arith.index_cast %85 : i32 to index
    %87 = memref.load %arg1[%86] : memref<24xi32, #tpu.memory_space<smem>>
    %c6_i32_66 = arith.constant 6 : i32
    %88 = arith.addi %0, %c6_i32_66 : i32
    %89 = arith.index_cast %88 : i32 to index
    %90 = memref.load %arg2[%89] : memref<24xi32, #tpu.memory_space<smem>>
    %c0_i32_67 = arith.constant 0 : i32
    %c6_i32_68 = arith.constant 6 : i32
    %c0_i32_69 = arith.constant 0 : i32
    %91 = tpu.memref_slice %arg3[%87, %c0_i32_69] : memref<32x16xf32, #tpu.memory_space<any>> -> memref<1x16xf32, #tpu.memory_space<any>>
    %c6_i32_70 = arith.constant 6 : i32
    %c0_i32_71 = arith.constant 0 : i32
    %92 = tpu.memref_slice %arg16[%c6_i32_70, %c0_i32_71] : memref<8x16xf32, #tpu.memory_space<vmem>> -> memref<1x16xf32, #tpu.memory_space<vmem>>
    %93 = tpu.memref_slice %arg18[%c0_i32_67, %c6_i32_68] : memref<2x8x!tpu.dma_semaphore, #tpu.memory_space<semaphore_mem>> -> memref<1x1x!tpu.dma_semaphore, #tpu.memory_space<semaphore_mem>>
    %94 = tpu.memref_squeeze %93 : memref<1x1x!tpu.dma_semaphore, #tpu.memory_space<semaphore_mem>> -> memref<!tpu.dma_semaphore, #tpu.memory_space<semaphore_mem>>
    tpu.enqueue_dma source(%91 : memref<1x16xf32, #tpu.memory_space<any>>) target(%92 : memref<1x16xf32, #tpu.memory_space<vmem>>) target_semaphore(%94 : memref<!tpu.dma_semaphore, #tpu.memory_space<semaphore_mem>>)
    %c1_i32_72 = arith.constant 1 : i32
    %c6_i32_73 = arith.constant 6 : i32
    %c0_i32_74 = arith.constant 0 : i32
    %95 = tpu.memref_slice %arg4[%90, %c0_i32_74] : memref<48x16xf32, #tpu.memory_space<any>> -> memref<1x16xf32, #tpu.memory_space<any>>
    %c6_i32_75 = arith.constant 6 : i32
    %c0_i32_76 = arith.constant 0 : i32
    %96 = tpu.memref_slice %arg17[%c6_i32_75, %c0_i32_76] : memref<8x16xf32, #tpu.memory_space<vmem>> -> memref<1x16xf32, #tpu.memory_space<vmem>>
    %97 = tpu.memref_slice %arg18[%c1_i32_72, %c6_i32_73] : memref<2x8x!tpu.dma_semaphore, #tpu.memory_space<semaphore_mem>> -> memref<1x1x!tpu.dma_semaphore, #tpu.memory_space<semaphore_mem>>
    %98 = tpu.memref_squeeze %97 : memref<1x1x!tpu.dma_semaphore, #tpu.memory_space<semaphore_mem>> -> memref<!tpu.dma_semaphore, #tpu.memory_space<semaphore_mem>>
    tpu.enqueue_dma source(%95 : memref<1x16xf32, #tpu.memory_space<any>>) target(%96 : memref<1x16xf32, #tpu.memory_space<vmem>>) target_semaphore(%98 : memref<!tpu.dma_semaphore, #tpu.memory_space<semaphore_mem>>)
    %c7_i32 = arith.constant 7 : i32
    %99 = arith.addi %0, %c7_i32 : i32
    %100 = arith.index_cast %99 : i32 to index
    %101 = memref.load %arg1[%100] : memref<24xi32, #tpu.memory_space<smem>>
    %c7_i32_77 = arith.constant 7 : i32
    %102 = arith.addi %0, %c7_i32_77 : i32
    %103 = arith.index_cast %102 : i32 to index
    %104 = memref.load %arg2[%103] : memref<24xi32, #tpu.memory_space<smem>>
    %c0_i32_78 = arith.constant 0 : i32
    %c7_i32_79 = arith.constant 7 : i32
    %c0_i32_80 = arith.constant 0 : i32
    %105 = tpu.memref_slice %arg3[%101, %c0_i32_80] : memref<32x16xf32, #tpu.memory_space<any>> -> memref<1x16xf32, #tpu.memory_space<any>>
    %c7_i32_81 = arith.constant 7 : i32
    %c0_i32_82 = arith.constant 0 : i32
    %106 = tpu.memref_slice %arg16[%c7_i32_81, %c0_i32_82] : memref<8x16xf32, #tpu.memory_space<vmem>> -> memref<1x16xf32, #tpu.memory_space<vmem>>
    %107 = tpu.memref_slice %arg18[%c0_i32_78, %c7_i32_79] : memref<2x8x!tpu.dma_semaphore, #tpu.memory_space<semaphore_mem>> -> memref<1x1x!tpu.dma_semaphore, #tpu.memory_space<semaphore_mem>>
    %108 = tpu.memref_squeeze %107 : memref<1x1x!tpu.dma_semaphore, #tpu.memory_space<semaphore_mem>> -> memref<!tpu.dma_semaphore, #tpu.memory_space<semaphore_mem>>
    tpu.enqueue_dma source(%105 : memref<1x16xf32, #tpu.memory_space<any>>) target(%106 : memref<1x16xf32, #tpu.memory_space<vmem>>) target_semaphore(%108 : memref<!tpu.dma_semaphore, #tpu.memory_space<semaphore_mem>>)
    %c1_i32_83 = arith.constant 1 : i32
    %c7_i32_84 = arith.constant 7 : i32
    %c0_i32_85 = arith.constant 0 : i32
    %109 = tpu.memref_slice %arg4[%104, %c0_i32_85] : memref<48x16xf32, #tpu.memory_space<any>> -> memref<1x16xf32, #tpu.memory_space<any>>
    %c7_i32_86 = arith.constant 7 : i32
    %c0_i32_87 = arith.constant 0 : i32
    %110 = tpu.memref_slice %arg17[%c7_i32_86, %c0_i32_87] : memref<8x16xf32, #tpu.memory_space<vmem>> -> memref<1x16xf32, #tpu.memory_space<vmem>>
    %111 = tpu.memref_slice %arg18[%c1_i32_83, %c7_i32_84] : memref<2x8x!tpu.dma_semaphore, #tpu.memory_space<semaphore_mem>> -> memref<1x1x!tpu.dma_semaphore, #tpu.memory_space<semaphore_mem>>
    %112 = tpu.memref_squeeze %111 : memref<1x1x!tpu.dma_semaphore, #tpu.memory_space<semaphore_mem>> -> memref<!tpu.dma_semaphore, #tpu.memory_space<semaphore_mem>>
    tpu.enqueue_dma source(%109 : memref<1x16xf32, #tpu.memory_space<any>>) target(%110 : memref<1x16xf32, #tpu.memory_space<vmem>>) target_semaphore(%112 : memref<!tpu.dma_semaphore, #tpu.memory_space<semaphore_mem>>)
    %c0_i32_88 = arith.constant 0 : i32
    %c0_i32_89 = arith.constant 0 : i32
    %c0_i32_90 = arith.constant 0 : i32
    %c0_i32_91 = arith.constant 0 : i32
    %113 = tpu.memref_slice %arg3[%c0_i32_90, %c0_i32_91] : memref<32x16xf32, #tpu.memory_space<any>> -> memref<1x16xf32, #tpu.memory_space<any>>
    %c0_i32_92 = arith.constant 0 : i32
    %c0_i32_93 = arith.constant 0 : i32
    %114 = tpu.memref_slice %arg16[%c0_i32_92, %c0_i32_93] : memref<8x16xf32, #tpu.memory_space<vmem>> -> memref<1x16xf32, #tpu.memory_space<vmem>>
    %115 = tpu.memref_slice %arg18[%c0_i32_88, %c0_i32_89] : memref<2x8x!tpu.dma_semaphore, #tpu.memory_space<semaphore_mem>> -> memref<1x1x!tpu.dma_semaphore, #tpu.memory_space<semaphore_mem>>
    %116 = tpu.memref_squeeze %115 : memref<1x1x!tpu.dma_semaphore, #tpu.memory_space<semaphore_mem>> -> memref<!tpu.dma_semaphore, #tpu.memory_space<semaphore_mem>>
    tpu.wait_dma2 semaphore(%116 : memref<!tpu.dma_semaphore, #tpu.memory_space<semaphore_mem>>) src(%113 : memref<1x16xf32, #tpu.memory_space<any>>) dst(%114 : memref<1x16xf32, #tpu.memory_space<vmem>>)
    %c1_i32_94 = arith.constant 1 : i32
    %c0_i32_95 = arith.constant 0 : i32
    %c0_i32_96 = arith.constant 0 : i32
    %c0_i32_97 = arith.constant 0 : i32
    %117 = tpu.memref_slice %arg4[%c0_i32_96, %c0_i32_97] : memref<48x16xf32, #tpu.memory_space<any>> -> memref<1x16xf32, #tpu.memory_space<any>>
    %c0_i32_98 = arith.constant 0 : i32
    %c0_i32_99 = arith.constant 0 : i32
    %118 = tpu.memref_slice %arg17[%c0_i32_98, %c0_i32_99] : memref<8x16xf32, #tpu.memory_space<vmem>> -> memref<1x16xf32, #tpu.memory_space<vmem>>
    %119 = tpu.memref_slice %arg18[%c1_i32_94, %c0_i32_95] : memref<2x8x!tpu.dma_semaphore, #tpu.memory_space<semaphore_mem>> -> memref<1x1x!tpu.dma_semaphore, #tpu.memory_space<semaphore_mem>>
    %120 = tpu.memref_squeeze %119 : memref<1x1x!tpu.dma_semaphore, #tpu.memory_space<semaphore_mem>> -> memref<!tpu.dma_semaphore, #tpu.memory_space<semaphore_mem>>
    tpu.wait_dma2 semaphore(%120 : memref<!tpu.dma_semaphore, #tpu.memory_space<semaphore_mem>>) src(%117 : memref<1x16xf32, #tpu.memory_space<any>>) dst(%118 : memref<1x16xf32, #tpu.memory_space<vmem>>)
    %c0_i32_100 = arith.constant 0 : i32
    %c1_i32_101 = arith.constant 1 : i32
    %c0_i32_102 = arith.constant 0 : i32
    %c0_i32_103 = arith.constant 0 : i32
    %121 = tpu.memref_slice %arg3[%c0_i32_102, %c0_i32_103] : memref<32x16xf32, #tpu.memory_space<any>> -> memref<1x16xf32, #tpu.memory_space<any>>
    %c1_i32_104 = arith.constant 1 : i32
    %c0_i32_105 = arith.constant 0 : i32
    %122 = tpu.memref_slice %arg16[%c1_i32_104, %c0_i32_105] : memref<8x16xf32, #tpu.memory_space<vmem>> -> memref<1x16xf32, #tpu.memory_space<vmem>>
    %123 = tpu.memref_slice %arg18[%c0_i32_100, %c1_i32_101] : memref<2x8x!tpu.dma_semaphore, #tpu.memory_space<semaphore_mem>> -> memref<1x1x!tpu.dma_semaphore, #tpu.memory_space<semaphore_mem>>
    %124 = tpu.memref_squeeze %123 : memref<1x1x!tpu.dma_semaphore, #tpu.memory_space<semaphore_mem>> -> memref<!tpu.dma_semaphore, #tpu.memory_space<semaphore_mem>>
    tpu.wait_dma2 semaphore(%124 : memref<!tpu.dma_semaphore, #tpu.memory_space<semaphore_mem>>) src(%121 : memref<1x16xf32, #tpu.memory_space<any>>) dst(%122 : memref<1x16xf32, #tpu.memory_space<vmem>>)
    %c1_i32_106 = arith.constant 1 : i32
    %c1_i32_107 = arith.constant 1 : i32
    %c0_i32_108 = arith.constant 0 : i32
    %c0_i32_109 = arith.constant 0 : i32
    %125 = tpu.memref_slice %arg4[%c0_i32_108, %c0_i32_109] : memref<48x16xf32, #tpu.memory_space<any>> -> memref<1x16xf32, #tpu.memory_space<any>>
    %c1_i32_110 = arith.constant 1 : i32
    %c0_i32_111 = arith.constant 0 : i32
    %126 = tpu.memref_slice %arg17[%c1_i32_110, %c0_i32_111] : memref<8x16xf32, #tpu.memory_space<vmem>> -> memref<1x16xf32, #tpu.memory_space<vmem>>
    %127 = tpu.memref_slice %arg18[%c1_i32_106, %c1_i32_107] : memref<2x8x!tpu.dma_semaphore, #tpu.memory_space<semaphore_mem>> -> memref<1x1x!tpu.dma_semaphore, #tpu.memory_space<semaphore_mem>>
    %128 = tpu.memref_squeeze %127 : memref<1x1x!tpu.dma_semaphore, #tpu.memory_space<semaphore_mem>> -> memref<!tpu.dma_semaphore, #tpu.memory_space<semaphore_mem>>
    tpu.wait_dma2 semaphore(%128 : memref<!tpu.dma_semaphore, #tpu.memory_space<semaphore_mem>>) src(%125 : memref<1x16xf32, #tpu.memory_space<any>>) dst(%126 : memref<1x16xf32, #tpu.memory_space<vmem>>)
    %c0_i32_112 = arith.constant 0 : i32
    %c2_i32_113 = arith.constant 2 : i32
    %c0_i32_114 = arith.constant 0 : i32
    %c0_i32_115 = arith.constant 0 : i32
    %129 = tpu.memref_slice %arg3[%c0_i32_114, %c0_i32_115] : memref<32x16xf32, #tpu.memory_space<any>> -> memref<1x16xf32, #tpu.memory_space<any>>
    %c2_i32_116 = arith.constant 2 : i32
    %c0_i32_117 = arith.constant 0 : i32
    %130 = tpu.memref_slice %arg16[%c2_i32_116, %c0_i32_117] : memref<8x16xf32, #tpu.memory_space<vmem>> -> memref<1x16xf32, #tpu.memory_space<vmem>>
    %131 = tpu.memref_slice %arg18[%c0_i32_112, %c2_i32_113] : memref<2x8x!tpu.dma_semaphore, #tpu.memory_space<semaphore_mem>> -> memref<1x1x!tpu.dma_semaphore, #tpu.memory_space<semaphore_mem>>
    %132 = tpu.memref_squeeze %131 : memref<1x1x!tpu.dma_semaphore, #tpu.memory_space<semaphore_mem>> -> memref<!tpu.dma_semaphore, #tpu.memory_space<semaphore_mem>>
    tpu.wait_dma2 semaphore(%132 : memref<!tpu.dma_semaphore, #tpu.memory_space<semaphore_mem>>) src(%129 : memref<1x16xf32, #tpu.memory_space<any>>) dst(%130 : memref<1x16xf32, #tpu.memory_space<vmem>>)
    %c1_i32_118 = arith.constant 1 : i32
    %c2_i32_119 = arith.constant 2 : i32
    %c0_i32_120 = arith.constant 0 : i32
    %c0_i32_121 = arith.constant 0 : i32
    %133 = tpu.memref_slice %arg4[%c0_i32_120, %c0_i32_121] : memref<48x16xf32, #tpu.memory_space<any>> -> memref<1x16xf32, #tpu.memory_space<any>>
    %c2_i32_122 = arith.constant 2 : i32
    %c0_i32_123 = arith.constant 0 : i32
    %134 = tpu.memref_slice %arg17[%c2_i32_122, %c0_i32_123] : memref<8x16xf32, #tpu.memory_space<vmem>> -> memref<1x16xf32, #tpu.memory_space<vmem>>
    %135 = tpu.memref_slice %arg18[%c1_i32_118, %c2_i32_119] : memref<2x8x!tpu.dma_semaphore, #tpu.memory_space<semaphore_mem>> -> memref<1x1x!tpu.dma_semaphore, #tpu.memory_space<semaphore_mem>>
    %136 = tpu.memref_squeeze %135 : memref<1x1x!tpu.dma_semaphore, #tpu.memory_space<semaphore_mem>> -> memref<!tpu.dma_semaphore, #tpu.memory_space<semaphore_mem>>
    tpu.wait_dma2 semaphore(%136 : memref<!tpu.dma_semaphore, #tpu.memory_space<semaphore_mem>>) src(%133 : memref<1x16xf32, #tpu.memory_space<any>>) dst(%134 : memref<1x16xf32, #tpu.memory_space<vmem>>)
    %c0_i32_124 = arith.constant 0 : i32
    %c3_i32_125 = arith.constant 3 : i32
    %c0_i32_126 = arith.constant 0 : i32
    %c0_i32_127 = arith.constant 0 : i32
    %137 = tpu.memref_slice %arg3[%c0_i32_126, %c0_i32_127] : memref<32x16xf32, #tpu.memory_space<any>> -> memref<1x16xf32, #tpu.memory_space<any>>
    %c3_i32_128 = arith.constant 3 : i32
    %c0_i32_129 = arith.constant 0 : i32
    %138 = tpu.memref_slice %arg16[%c3_i32_128, %c0_i32_129] : memref<8x16xf32, #tpu.memory_space<vmem>> -> memref<1x16xf32, #tpu.memory_space<vmem>>
    %139 = tpu.memref_slice %arg18[%c0_i32_124, %c3_i32_125] : memref<2x8x!tpu.dma_semaphore, #tpu.memory_space<semaphore_mem>> -> memref<1x1x!tpu.dma_semaphore, #tpu.memory_space<semaphore_mem>>
    %140 = tpu.memref_squeeze %139 : memref<1x1x!tpu.dma_semaphore, #tpu.memory_space<semaphore_mem>> -> memref<!tpu.dma_semaphore, #tpu.memory_space<semaphore_mem>>
    tpu.wait_dma2 semaphore(%140 : memref<!tpu.dma_semaphore, #tpu.memory_space<semaphore_mem>>) src(%137 : memref<1x16xf32, #tpu.memory_space<any>>) dst(%138 : memref<1x16xf32, #tpu.memory_space<vmem>>)
    %c1_i32_130 = arith.constant 1 : i32
    %c3_i32_131 = arith.constant 3 : i32
    %c0_i32_132 = arith.constant 0 : i32
    %c0_i32_133 = arith.constant 0 : i32
    %141 = tpu.memref_slice %arg4[%c0_i32_132, %c0_i32_133] : memref<48x16xf32, #tpu.memory_space<any>> -> memref<1x16xf32, #tpu.memory_space<any>>
    %c3_i32_134 = arith.constant 3 : i32
    %c0_i32_135 = arith.constant 0 : i32
    %142 = tpu.memref_slice %arg17[%c3_i32_134, %c0_i32_135] : memref<8x16xf32, #tpu.memory_space<vmem>> -> memref<1x16xf32, #tpu.memory_space<vmem>>
    %143 = tpu.memref_slice %arg18[%c1_i32_130, %c3_i32_131] : memref<2x8x!tpu.dma_semaphore, #tpu.memory_space<semaphore_mem>> -> memref<1x1x!tpu.dma_semaphore, #tpu.memory_space<semaphore_mem>>
    %144 = tpu.memref_squeeze %143 : memref<1x1x!tpu.dma_semaphore, #tpu.memory_space<semaphore_mem>> -> memref<!tpu.dma_semaphore, #tpu.memory_space<semaphore_mem>>
    tpu.wait_dma2 semaphore(%144 : memref<!tpu.dma_semaphore, #tpu.memory_space<semaphore_mem>>) src(%141 : memref<1x16xf32, #tpu.memory_space<any>>) dst(%142 : memref<1x16xf32, #tpu.memory_space<vmem>>)
    %c0_i32_136 = arith.constant 0 : i32
    %c4_i32_137 = arith.constant 4 : i32
    %c0_i32_138 = arith.constant 0 : i32
    %c0_i32_139 = arith.constant 0 : i32
    %145 = tpu.memref_slice %arg3[%c0_i32_138, %c0_i32_139] : memref<32x16xf32, #tpu.memory_space<any>> -> memref<1x16xf32, #tpu.memory_space<any>>
    %c4_i32_140 = arith.constant 4 : i32
    %c0_i32_141 = arith.constant 0 : i32
    %146 = tpu.memref_slice %arg16[%c4_i32_140, %c0_i32_141] : memref<8x16xf32, #tpu.memory_space<vmem>> -> memref<1x16xf32, #tpu.memory_space<vmem>>
    %147 = tpu.memref_slice %arg18[%c0_i32_136, %c4_i32_137] : memref<2x8x!tpu.dma_semaphore, #tpu.memory_space<semaphore_mem>> -> memref<1x1x!tpu.dma_semaphore, #tpu.memory_space<semaphore_mem>>
    %148 = tpu.memref_squeeze %147 : memref<1x1x!tpu.dma_semaphore, #tpu.memory_space<semaphore_mem>> -> memref<!tpu.dma_semaphore, #tpu.memory_space<semaphore_mem>>
    tpu.wait_dma2 semaphore(%148 : memref<!tpu.dma_semaphore, #tpu.memory_space<semaphore_mem>>) src(%145 : memref<1x16xf32, #tpu.memory_space<any>>) dst(%146 : memref<1x16xf32, #tpu.memory_space<vmem>>)
    %c1_i32_142 = arith.constant 1 : i32
    %c4_i32_143 = arith.constant 4 : i32
    %c0_i32_144 = arith.constant 0 : i32
    %c0_i32_145 = arith.constant 0 : i32
    %149 = tpu.memref_slice %arg4[%c0_i32_144, %c0_i32_145] : memref<48x16xf32, #tpu.memory_space<any>> -> memref<1x16xf32, #tpu.memory_space<any>>
    %c4_i32_146 = arith.constant 4 : i32
    %c0_i32_147 = arith.constant 0 : i32
    %150 = tpu.memref_slice %arg17[%c4_i32_146, %c0_i32_147] : memref<8x16xf32, #tpu.memory_space<vmem>> -> memref<1x16xf32, #tpu.memory_space<vmem>>
    %151 = tpu.memref_slice %arg18[%c1_i32_142, %c4_i32_143] : memref<2x8x!tpu.dma_semaphore, #tpu.memory_space<semaphore_mem>> -> memref<1x1x!tpu.dma_semaphore, #tpu.memory_space<semaphore_mem>>
    %152 = tpu.memref_squeeze %151 : memref<1x1x!tpu.dma_semaphore, #tpu.memory_space<semaphore_mem>> -> memref<!tpu.dma_semaphore, #tpu.memory_space<semaphore_mem>>
    tpu.wait_dma2 semaphore(%152 : memref<!tpu.dma_semaphore, #tpu.memory_space<semaphore_mem>>) src(%149 : memref<1x16xf32, #tpu.memory_space<any>>) dst(%150 : memref<1x16xf32, #tpu.memory_space<vmem>>)
    %c0_i32_148 = arith.constant 0 : i32
    %c5_i32_149 = arith.constant 5 : i32
    %c0_i32_150 = arith.constant 0 : i32
    %c0_i32_151 = arith.constant 0 : i32
    %153 = tpu.memref_slice %arg3[%c0_i32_150, %c0_i32_151] : memref<32x16xf32, #tpu.memory_space<any>> -> memref<1x16xf32, #tpu.memory_space<any>>
    %c5_i32_152 = arith.constant 5 : i32
    %c0_i32_153 = arith.constant 0 : i32
    %154 = tpu.memref_slice %arg16[%c5_i32_152, %c0_i32_153] : memref<8x16xf32, #tpu.memory_space<vmem>> -> memref<1x16xf32, #tpu.memory_space<vmem>>
    %155 = tpu.memref_slice %arg18[%c0_i32_148, %c5_i32_149] : memref<2x8x!tpu.dma_semaphore, #tpu.memory_space<semaphore_mem>> -> memref<1x1x!tpu.dma_semaphore, #tpu.memory_space<semaphore_mem>>
    %156 = tpu.memref_squeeze %155 : memref<1x1x!tpu.dma_semaphore, #tpu.memory_space<semaphore_mem>> -> memref<!tpu.dma_semaphore, #tpu.memory_space<semaphore_mem>>
    tpu.wait_dma2 semaphore(%156 : memref<!tpu.dma_semaphore, #tpu.memory_space<semaphore_mem>>) src(%153 : memref<1x16xf32, #tpu.memory_space<any>>) dst(%154 : memref<1x16xf32, #tpu.memory_space<vmem>>)
    %c1_i32_154 = arith.constant 1 : i32
    %c5_i32_155 = arith.constant 5 : i32
    %c0_i32_156 = arith.constant 0 : i32
    %c0_i32_157 = arith.constant 0 : i32
    %157 = tpu.memref_slice %arg4[%c0_i32_156, %c0_i32_157] : memref<48x16xf32, #tpu.memory_space<any>> -> memref<1x16xf32, #tpu.memory_space<any>>
    %c5_i32_158 = arith.constant 5 : i32
    %c0_i32_159 = arith.constant 0 : i32
    %158 = tpu.memref_slice %arg17[%c5_i32_158, %c0_i32_159] : memref<8x16xf32, #tpu.memory_space<vmem>> -> memref<1x16xf32, #tpu.memory_space<vmem>>
    %159 = tpu.memref_slice %arg18[%c1_i32_154, %c5_i32_155] : memref<2x8x!tpu.dma_semaphore, #tpu.memory_space<semaphore_mem>> -> memref<1x1x!tpu.dma_semaphore, #tpu.memory_space<semaphore_mem>>
    %160 = tpu.memref_squeeze %159 : memref<1x1x!tpu.dma_semaphore, #tpu.memory_space<semaphore_mem>> -> memref<!tpu.dma_semaphore, #tpu.memory_space<semaphore_mem>>
    tpu.wait_dma2 semaphore(%160 : memref<!tpu.dma_semaphore, #tpu.memory_space<semaphore_mem>>) src(%157 : memref<1x16xf32, #tpu.memory_space<any>>) dst(%158 : memref<1x16xf32, #tpu.memory_space<vmem>>)
    %c0_i32_160 = arith.constant 0 : i32
    %c6_i32_161 = arith.constant 6 : i32
    %c0_i32_162 = arith.constant 0 : i32
    %c0_i32_163 = arith.constant 0 : i32
    %161 = tpu.memref_slice %arg3[%c0_i32_162, %c0_i32_163] : memref<32x16xf32, #tpu.memory_space<any>> -> memref<1x16xf32, #tpu.memory_space<any>>
    %c6_i32_164 = arith.constant 6 : i32
    %c0_i32_165 = arith.constant 0 : i32
    %162 = tpu.memref_slice %arg16[%c6_i32_164, %c0_i32_165] : memref<8x16xf32, #tpu.memory_space<vmem>> -> memref<1x16xf32, #tpu.memory_space<vmem>>
    %163 = tpu.memref_slice %arg18[%c0_i32_160, %c6_i32_161] : memref<2x8x!tpu.dma_semaphore, #tpu.memory_space<semaphore_mem>> -> memref<1x1x!tpu.dma_semaphore, #tpu.memory_space<semaphore_mem>>
    %164 = tpu.memref_squeeze %163 : memref<1x1x!tpu.dma_semaphore, #tpu.memory_space<semaphore_mem>> -> memref<!tpu.dma_semaphore, #tpu.memory_space<semaphore_mem>>
    tpu.wait_dma2 semaphore(%164 : memref<!tpu.dma_semaphore, #tpu.memory_space<semaphore_mem>>) src(%161 : memref<1x16xf32, #tpu.memory_space<any>>) dst(%162 : memref<1x16xf32, #tpu.memory_space<vmem>>)
    %c1_i32_166 = arith.constant 1 : i32
    %c6_i32_167 = arith.constant 6 : i32
    %c0_i32_168 = arith.constant 0 : i32
    %c0_i32_169 = arith.constant 0 : i32
    %165 = tpu.memref_slice %arg4[%c0_i32_168, %c0_i32_169] : memref<48x16xf32, #tpu.memory_space<any>> -> memref<1x16xf32, #tpu.memory_space<any>>
    %c6_i32_170 = arith.constant 6 : i32
    %c0_i32_171 = arith.constant 0 : i32
    %166 = tpu.memref_slice %arg17[%c6_i32_170, %c0_i32_171] : memref<8x16xf32, #tpu.memory_space<vmem>> -> memref<1x16xf32, #tpu.memory_space<vmem>>
    %167 = tpu.memref_slice %arg18[%c1_i32_166, %c6_i32_167] : memref<2x8x!tpu.dma_semaphore, #tpu.memory_space<semaphore_mem>> -> memref<1x1x!tpu.dma_semaphore, #tpu.memory_space<semaphore_mem>>
    %168 = tpu.memref_squeeze %167 : memref<1x1x!tpu.dma_semaphore, #tpu.memory_space<semaphore_mem>> -> memref<!tpu.dma_semaphore, #tpu.memory_space<semaphore_mem>>
    tpu.wait_dma2 semaphore(%168 : memref<!tpu.dma_semaphore, #tpu.memory_space<semaphore_mem>>) src(%165 : memref<1x16xf32, #tpu.memory_space<any>>) dst(%166 : memref<1x16xf32, #tpu.memory_space<vmem>>)
    %c0_i32_172 = arith.constant 0 : i32
    %c7_i32_173 = arith.constant 7 : i32
    %c0_i32_174 = arith.constant 0 : i32
    %c0_i32_175 = arith.constant 0 : i32
    %169 = tpu.memref_slice %arg3[%c0_i32_174, %c0_i32_175] : memref<32x16xf32, #tpu.memory_space<any>> -> memref<1x16xf32, #tpu.memory_space<any>>
    %c7_i32_176 = arith.constant 7 : i32
    %c0_i32_177 = arith.constant 0 : i32
    %170 = tpu.memref_slice %arg16[%c7_i32_176, %c0_i32_177] : memref<8x16xf32, #tpu.memory_space<vmem>> -> memref<1x16xf32, #tpu.memory_space<vmem>>
    %171 = tpu.memref_slice %arg18[%c0_i32_172, %c7_i32_173] : memref<2x8x!tpu.dma_semaphore, #tpu.memory_space<semaphore_mem>> -> memref<1x1x!tpu.dma_semaphore, #tpu.memory_space<semaphore_mem>>
    %172 = tpu.memref_squeeze %171 : memref<1x1x!tpu.dma_semaphore, #tpu.memory_space<semaphore_mem>> -> memref<!tpu.dma_semaphore, #tpu.memory_space<semaphore_mem>>
    tpu.wait_dma2 semaphore(%172 : memref<!tpu.dma_semaphore, #tpu.memory_space<semaphore_mem>>) src(%169 : memref<1x16xf32, #tpu.memory_space<any>>) dst(%170 : memref<1x16xf32, #tpu.memory_space<vmem>>)
    %c1_i32_178 = arith.constant 1 : i32
    %c7_i32_179 = arith.constant 7 : i32
    %c0_i32_180 = arith.constant 0 : i32
    %c0_i32_181 = arith.constant 0 : i32
    %173 = tpu.memref_slice %arg4[%c0_i32_180, %c0_i32_181] : memref<48x16xf32, #tpu.memory_space<any>> -> memref<1x16xf32, #tpu.memory_space<any>>
    %c7_i32_182 = arith.constant 7 : i32
    %c0_i32_183 = arith.constant 0 : i32
    %174 = tpu.memref_slice %arg17[%c7_i32_182, %c0_i32_183] : memref<8x16xf32, #tpu.memory_space<vmem>> -> memref<1x16xf32, #tpu.memory_space<vmem>>
    %175 = tpu.memref_slice %arg18[%c1_i32_178, %c7_i32_179] : memref<2x8x!tpu.dma_semaphore, #tpu.memory_space<semaphore_mem>> -> memref<1x1x!tpu.dma_semaphore, #tpu.memory_space<semaphore_mem>>
    %176 = tpu.memref_squeeze %175 : memref<1x1x!tpu.dma_semaphore, #tpu.memory_space<semaphore_mem>> -> memref<!tpu.dma_semaphore, #tpu.memory_space<semaphore_mem>>
    tpu.wait_dma2 semaphore(%176 : memref<!tpu.dma_semaphore, #tpu.memory_space<semaphore_mem>>) src(%173 : memref<1x16xf32, #tpu.memory_space<any>>) dst(%174 : memref<1x16xf32, #tpu.memory_space<vmem>>)
    %c0 = arith.constant 0 : index
    %c0_184 = arith.constant 0 : index
    %177 = vector.load %arg16[%c0, %c0_184] : memref<8x16xf32, #tpu.memory_space<vmem>>, vector<8x16xf32>
    %c0_185 = arith.constant 0 : index
    %c0_186 = arith.constant 0 : index
    %178 = vector.load %arg17[%c0_185, %c0_186] : memref<8x16xf32, #tpu.memory_space<vmem>>, vector<8x16xf32>
    %179 = vector.extract_strided_slice %177 {offsets = [0, 0], sizes = [8, 8], strides = [1, 1]} : vector<8x16xf32> to vector<8x8xf32>
    %180 = vector.extract_strided_slice %177 {offsets = [0, 8], sizes = [8, 8], strides = [1, 1]} : vector<8x16xf32> to vector<8x8xf32>
    %181 = vector.extract_strided_slice %178 {offsets = [0, 0], sizes = [8, 8], strides = [1, 1]} : vector<8x16xf32> to vector<8x8xf32>
    %182 = vector.extract_strided_slice %178 {offsets = [0, 8], sizes = [8, 8], strides = [1, 1]} : vector<8x16xf32> to vector<8x8xf32>
    %183 = arith.mulf %179, %181 : vector<8x8xf32>
    %184 = arith.truncf %180 : vector<8x8xf32> to vector<8x8xbf16>
    %c0_187 = arith.constant 0 : index
    %c0_188 = arith.constant 0 : index
    %185 = vector.load %arg5[%c0_187, %c0_188] : memref<8x32xbf16, #tpu.memory_space<vmem>>, vector<8x32xbf16>
    %cst = arith.constant dense<0.000000e+00> : vector<8x32xf32>
    %186 = tpu.matmul %184, %185, %cst {dimension_numbers = #tpu.dot_dimension_numbers<[1], [0], [0], [1], [0, 0, 1, 1], [], []>} : vector<8x8xbf16>, vector<8x32xbf16>, vector<8x32xf32> -> vector<8x32xf32>
    %187 = arith.truncf %182 : vector<8x8xf32> to vector<8x8xbf16>
    %c0_189 = arith.constant 0 : index
    %c0_190 = arith.constant 0 : index
    %188 = vector.load %arg6[%c0_189, %c0_190] : memref<8x32xbf16, #tpu.memory_space<vmem>>, vector<8x32xbf16>
    %cst_191 = arith.constant dense<0.000000e+00> : vector<8x32xf32>
    %189 = tpu.matmul %187, %188, %cst_191 {dimension_numbers = #tpu.dot_dimension_numbers<[1], [0], [0], [1], [0, 0, 1, 1], [], []>} : vector<8x8xbf16>, vector<8x32xbf16>, vector<8x32xf32> -> vector<8x32xf32>
    %190 = arith.addf %186, %189 : vector<8x32xf32>
    %c0_192 = arith.constant 0 : index
    %c0_193 = arith.constant 0 : index
    %191 = vector.load %arg7[%c0_192, %c0_193] : memref<1x32xf32, #tpu.memory_space<vmem>>, vector<1x32xf32>
    %192 = vector.broadcast %191 : vector<1x32xf32> to vector<8x32xf32>
    %193 = arith.addf %190, %192 : vector<8x32xf32>
    %cst_194 = arith.constant 0.000000e+00 : f32
    %194 = vector.broadcast %cst_194 : f32 to vector<8x32xf32>
    %195 = arith.maximumf %193, %194 : vector<8x32xf32>
    %196 = arith.truncf %195 : vector<8x32xf32> to vector<8x32xbf16>
    %c0_195 = arith.constant 0 : index
    %c0_196 = arith.constant 0 : index
    %197 = vector.load %arg8[%c0_195, %c0_196] : memref<32x64xbf16, #tpu.memory_space<vmem>>, vector<32x64xbf16>
    %cst_197 = arith.constant dense<0.000000e+00> : vector<8x64xf32>
    %198 = tpu.matmul %196, %197, %cst_197 {dimension_numbers = #tpu.dot_dimension_numbers<[1], [0], [0], [1], [0, 0, 1, 1], [], []>} : vector<8x32xbf16>, vector<32x64xbf16>, vector<8x64xf32> -> vector<8x64xf32>
    %c0_198 = arith.constant 0 : index
    %c0_199 = arith.constant 0 : index
    %199 = vector.load %arg9[%c0_198, %c0_199] : memref<1x64xf32, #tpu.memory_space<vmem>>, vector<1x64xf32>
    %200 = vector.broadcast %199 : vector<1x64xf32> to vector<8x64xf32>
    %201 = arith.addf %198, %200 : vector<8x64xf32>
    %cst_200 = arith.constant 0.000000e+00 : f32
    %202 = vector.broadcast %cst_200 : f32 to vector<8x64xf32>
    %203 = arith.maximumf %201, %202 : vector<8x64xf32>
    %204 = arith.truncf %203 : vector<8x64xf32> to vector<8x64xbf16>
    %c0_201 = arith.constant 0 : index
    %c0_202 = arith.constant 0 : index
    %205 = vector.load %arg10[%c0_201, %c0_202] : memref<64x8xbf16, #tpu.memory_space<vmem>>, vector<64x8xbf16>
    %cst_203 = arith.constant dense<0.000000e+00> : vector<8x8xf32>
    %206 = tpu.matmul %204, %205, %cst_203 {dimension_numbers = #tpu.dot_dimension_numbers<[1], [0], [0], [1], [0, 0, 1, 1], [], []>} : vector<8x64xbf16>, vector<64x8xbf16>, vector<8x8xf32> -> vector<8x8xf32>
    %c0_204 = arith.constant 0 : index
    %c0_205 = arith.constant 0 : index
    %207 = vector.load %arg11[%c0_204, %c0_205] : memref<1x8xf32, #tpu.memory_space<vmem>>, vector<1x8xf32>
    %208 = vector.broadcast %207 : vector<1x8xf32> to vector<8x8xf32>
    %209 = arith.addf %206, %208 : vector<8x8xf32>
    %c0_206 = arith.constant 0 : index
    %c0_207 = arith.constant 0 : index
    %210 = vector.load %arg12[%c0_206, %c0_207] : memref<1x8xf32, #tpu.memory_space<vmem>>, vector<1x8xf32>
    %211 = vector.broadcast %210 : vector<1x8xf32> to vector<8x8xf32>
    %212 = arith.mulf %183, %211 : vector<8x8xf32>
    %cst_208 = arith.constant dense<0.000000e+00> : vector<8xf32>
    %213 = vector.multi_reduction <add>, %212, %cst_208 [1] : vector<8x8xf32> to vector<8xf32>
    %214 = vector.shape_cast %213 : vector<8xf32> to vector<8x1xf32>
    %c0_209 = arith.constant 0 : index
    %c0_210 = arith.constant 0 : index
    %215 = vector.load %arg13[%c0_209, %c0_210] : memref<1x8xf32, #tpu.memory_space<vmem>>, vector<1x8xf32>
    %216 = vector.broadcast %215 : vector<1x8xf32> to vector<8x8xf32>
    %217 = arith.mulf %209, %216 : vector<8x8xf32>
    %cst_211 = arith.constant dense<0.000000e+00> : vector<8xf32>
    %218 = vector.multi_reduction <add>, %217, %cst_211 [1] : vector<8x8xf32> to vector<8xf32>
    %219 = vector.shape_cast %218 : vector<8xf32> to vector<8x1xf32>
    %220 = arith.addf %214, %219 : vector<8x1xf32>
    %c0_212 = arith.constant 0 : index
    %c0_213 = arith.constant 0 : index
    %221 = vector.load %arg14[%c0_212, %c0_213] : memref<1x1xf32, #tpu.memory_space<vmem>>, vector<1x1xf32>
    %222 = vector.broadcast %221 : vector<1x1xf32> to vector<8x1xf32>
    %223 = arith.addf %220, %222 : vector<8x1xf32>
    %224 = arith.negf %223 : vector<8x1xf32>
    %225 = math.exp %224 : vector<8x1xf32>
    %cst_214 = arith.constant 1.000000e+00 : f32
    %226 = vector.broadcast %cst_214 : f32 to vector<8x1xf32>
    %227 = arith.addf %226, %225 : vector<8x1xf32>
    %228 = arith.divf %226, %227 : vector<8x1xf32>
    %229 = vector.shape_cast %228 : vector<8x1xf32> to vector<8x1xf32>
    %230 = vector.broadcast %229 : vector<8x1xf32> to vector<8x128xf32>
    %c0_215 = arith.constant 0 : index
    %c0_216 = arith.constant 0 : index
    %231 = vector.load %arg15[%c0_215, %c0_216] : memref<8x128xf32, #tpu.memory_space<vmem>>, vector<8x128xf32>
    tpu.vector_store %arg15[%c0_215, %c0_216], %230 {strides = array<i32>} : memref<8x128xf32, #tpu.memory_space<vmem>>, vector<8x128xf32>,
    return
  }
  func.func @transform_2(%arg0: i32, %arg1: memref<24xi32, #tpu.memory_space<smem>>, %arg2: memref<24xi32, #tpu.memory_space<smem>>) -> (i32, i32) {
    %c0_i32 = arith.constant 0 : i32
    %c0_i32_0 = arith.constant 0 : i32
    %c0_i32_1 = arith.constant 0 : i32
    return %c0_i32, %c0_i32_0 : i32, i32
  }
  func.func @transform_3(%arg0: i32, %arg1: memref<24xi32, #tpu.memory_space<smem>>, %arg2: memref<24xi32, #tpu.memory_space<smem>>) -> (i32, i32) {
    %c0_i32 = arith.constant 0 : i32
    %c0_i32_0 = arith.constant 0 : i32
    %c0_i32_1 = arith.constant 0 : i32
    return %c0_i32, %c0_i32_0 : i32, i32
  }
  func.func @transform_4(%arg0: i32, %arg1: memref<24xi32, #tpu.memory_space<smem>>, %arg2: memref<24xi32, #tpu.memory_space<smem>>) -> (i32, i32) {
    %c0_i32 = arith.constant 0 : i32
    %c0_i32_0 = arith.constant 0 : i32
    %c0_i32_1 = arith.constant 0 : i32
    return %c0_i32, %c0_i32_0 : i32, i32
  }
  func.func @transform_5(%arg0: i32, %arg1: memref<24xi32, #tpu.memory_space<smem>>, %arg2: memref<24xi32, #tpu.memory_space<smem>>) -> (i32, i32) {
    %c0_i32 = arith.constant 0 : i32
    %c0_i32_0 = arith.constant 0 : i32
    %c0_i32_1 = arith.constant 0 : i32
    return %c0_i32, %c0_i32_0 : i32, i32
  }
  func.func @transform_6(%arg0: i32, %arg1: memref<24xi32, #tpu.memory_space<smem>>, %arg2: memref<24xi32, #tpu.memory_space<smem>>) -> (i32, i32) {
    %c0_i32 = arith.constant 0 : i32
    %c0_i32_0 = arith.constant 0 : i32
    %c0_i32_1 = arith.constant 0 : i32
    return %c0_i32, %c0_i32_0 : i32, i32
  }
  func.func @transform_7(%arg0: i32, %arg1: memref<24xi32, #tpu.memory_space<smem>>, %arg2: memref<24xi32, #tpu.memory_space<smem>>) -> (i32, i32) {
    %c0_i32 = arith.constant 0 : i32
    %c0_i32_0 = arith.constant 0 : i32
    %c0_i32_1 = arith.constant 0 : i32
    return %c0_i32, %c0_i32_0 : i32, i32
  }
  func.func @transform_8(%arg0: i32, %arg1: memref<24xi32, #tpu.memory_space<smem>>, %arg2: memref<24xi32, #tpu.memory_space<smem>>) -> (i32, i32) {
    %c0_i32 = arith.constant 0 : i32
    %c0_i32_0 = arith.constant 0 : i32
    %c0_i32_1 = arith.constant 0 : i32
    return %c0_i32, %c0_i32_0 : i32, i32
  }
  func.func @transform_9(%arg0: i32, %arg1: memref<24xi32, #tpu.memory_space<smem>>, %arg2: memref<24xi32, #tpu.memory_space<smem>>) -> (i32, i32) {
    %c0_i32 = arith.constant 0 : i32
    %c0_i32_0 = arith.constant 0 : i32
    %c0_i32_1 = arith.constant 0 : i32
    return %c0_i32, %c0_i32_0 : i32, i32
  }
  func.func @transform_10(%arg0: i32, %arg1: memref<24xi32, #tpu.memory_space<smem>>, %arg2: memref<24xi32, #tpu.memory_space<smem>>) -> (i32, i32) {
    %c0_i32 = arith.constant 0 : i32
    %c0_i32_0 = arith.constant 0 : i32
    %c0_i32_1 = arith.constant 0 : i32
    return %c0_i32, %c0_i32_0 : i32, i32
  }
  func.func @transform_11(%arg0: i32, %arg1: memref<24xi32, #tpu.memory_space<smem>>, %arg2: memref<24xi32, #tpu.memory_space<smem>>) -> (i32, i32) {
    %c0_i32 = arith.constant 0 : i32
    %c0_i32_0 = arith.constant 0 : i32
    %c0_i32_1 = arith.constant 0 : i32
    return %c0_i32, %c0_i32_0 : i32, i32
  }
  func.func @transform_12(%arg0: i32, %arg1: memref<24xi32, #tpu.memory_space<smem>>, %arg2: memref<24xi32, #tpu.memory_space<smem>>) -> (i32, i32) {
    %c0_i32 = arith.constant 0 : i32
    %c0_i32_0 = arith.constant 0 : i32
    return %arg0, %c0_i32 : i32, i32
  }
}

</mosaic_0001>

<llo_original>
// kernel: tpu_custom_call.1
$region0: #{tpu_custom_call.1}
  #allocation0 [shape = 'u32[]', space=smem, size = 0x4, offset = 0x4, fixed_abs, tag = 'smem constant byte address 0x4 - core index']
  #allocation1 [shape = 'u32[144,128]{1,0:T(1,128)}', space=vmem, size = 0x12000, scoped, tag = 'internal scratch']
  #allocation2 [shape = 'f32[8,16]{1,0:T(8,128)}', space=vmem, size = 0x1000, scoped, tag = 'scratch operand']
  #allocation3 [shape = 'f32[8,16]{1,0:T(8,128)}', space=vmem, size = 0x1000, scoped, tag = 'scratch operand']
  #allocation4 [shape = 's32[16]{0}', space=sflag, size = 0x40, scoped, tag = 'scratch operand']
  #allocation5 [shape = 's32[1]{0}', space=sflag, size = 0x4, scoped, tag = 'scoped memory for tpu_custom_call.1']
  #allocation6 [shape = 'u8[512]{0}', space=smem, size = 0x200, scoped, tag = 'prefetched SMEM operand 0']
  #allocation7 [shape = 'u8[512]{0}', space=smem, size = 0x200, scoped, tag = 'prefetched SMEM operand 1']
  #allocation8 [shape = 'f32[1,1]{1,0:T(1,128)S(1)}', space=vmem, size = 0x200, scoped, tag = 'scoped memory for tpu_custom_call.1']
  #allocation11 [shape = 's32[]', space=sflag, size = 0x4, offset = 0, fixed_abs, tag = 'sflag constant byte address 0x0 - dummy sync flag']
  #allocation12 [shape = 's32[]', space=sflag, size = 0x4, offset = 0, fixed_abs, tag = 'sflag constant byte address 0x0 - dummy sync flag']
  #allocation13 [shape = 's32[]', space=sflag, size = 0x4, offset = 0, fixed_abs, tag = 'sflag constant byte address 0x0 - dummy sync flag']
  #allocation14 [shape = 's32[]', space=sflag, size = 0x4, offset = 0, fixed_abs, tag = 'sflag constant byte address 0x0 - dummy sync flag']
  #allocation15 [shape = 's32[]', space=sflag, size = 0x4, offset = 0, fixed_abs, tag = 'sflag constant byte address 0x0 - dummy sync flag']
  #allocation16 [shape = 's32[]', space=sflag, size = 0x4, offset = 0, fixed_abs, tag = 'sflag constant byte address 0x0 - dummy sync flag']
  #allocation17 [shape = 's32[]', space=sflag, size = 0x4, offset = 0, fixed_abs, tag = 'sflag constant byte address 0x0 - dummy sync flag']
  #allocation18 [shape = 's32[]', space=sflag, size = 0x4, offset = 0, fixed_abs, tag = 'sflag constant byte address 0x0 - dummy sync flag']
  #allocation19 [shape = 's32[]', space=sflag, size = 0x4, offset = 0, fixed_abs, tag = 'sflag constant byte address 0x0 - dummy sync flag']
  #allocation20 [shape = 's32[]', space=sflag, size = 0x4, offset = 0, fixed_abs, tag = 'sflag constant byte address 0x0 - dummy sync flag']
  #allocation21 [shape = 's32[]', space=sflag, size = 0x4, offset = 0, fixed_abs, tag = 'sflag constant byte address 0x0 - dummy sync flag']
  #allocation22 [shape = 's32[]', space=sflag, size = 0x4, offset = 0, fixed_abs, tag = 'sflag constant byte address 0x0 - dummy sync flag']
  #allocation23 [shape = 's32[]', space=sflag, size = 0x4, offset = 0, fixed_abs, tag = 'sflag constant byte address 0x0 - dummy sync flag']
  #allocation24 [shape = 's32[]', space=sflag, size = 0x4, offset = 0, fixed_abs, tag = 'sflag constant byte address 0x0 - dummy sync flag']
  #allocation25 [shape = 's32[]', space=sflag, size = 0x4, offset = 0, fixed_abs, tag = 'sflag constant byte address 0x0 - dummy sync flag']
  #allocation26 [shape = 's32[]', space=sflag, size = 0x4, offset = 0, fixed_abs, tag = 'sflag constant byte address 0x0 - dummy sync flag']
  %s0 = inlined_call_operand.vmem [shape: s32[24], index: 0, kind: input, shape index: {}]
  %s1 = inlined_call_operand.vmem [shape: s32[24], index: 1, kind: input, shape index: {}]
  %s2 = inlined_call_operand.vmem [shape: f32[32,16], index: 2, kind: input, shape index: {}]
  %s3 = inlined_call_operand.vmem [shape: f32[48,16], index: 3, kind: input, shape index: {}]
  %s4 = inlined_call_operand.vmem [shape: bf16[8,32], index: 4, kind: input, shape index: {}]
  %s5 = inlined_call_operand.vmem [shape: bf16[8,32], index: 5, kind: input, shape index: {}]
  %s6 = inlined_call_operand.vmem [shape: f32[1,32], index: 6, kind: input, shape index: {}]
  %s7 = inlined_call_operand.vmem [shape: bf16[32,64], index: 7, kind: input, shape index: {}]
  %s8 = inlined_call_operand.vmem [shape: f32[1,64], index: 8, kind: input, shape index: {}]
  %s9 = inlined_call_operand.vmem [shape: bf16[64,8], index: 9, kind: input, shape index: {}]
  %s10 = inlined_call_operand.vmem [shape: f32[1,8], index: 10, kind: input, shape index: {}]
  %s11 = inlined_call_operand.vmem [shape: f32[1,8], index: 11, kind: input, shape index: {}]
  %s12 = inlined_call_operand.vmem [shape: f32[1,8], index: 12, kind: input, shape index: {}]
  %s13 = inlined_call_operand.<no memory space> [shape: f32[1,1], index: 13, kind: input, shape index: {}]
  %s14 = inlined_call_operand.hbm [shape: f32[24,128], index: 14, kind: output, shape index: {}]
  %s15 = sld [smem:[#allocation0]]
  $region553: #{tpu_custom_call.1} parent=0
    _
  %s17 = ssub.s32 1, %s15
  %s18 = scalar_select 0, %s17, %s15
  %s19 = sshll.u32 %s0, 4
  %s20 = int_to_ptr.vmem [resolvable:$true] %s19
  %22 = dma.vmem_to_smem %s20, 16, [#allocation6], [#allocation5]
  %s23 = sshll.u32 %s1, 4
  %s24 = int_to_ptr.vmem [resolvable:$true] %s23
  %26 = dma.vmem_to_smem %s24, 16, [#allocation7], [#allocation5]
  %v27 = vstv %s13
  %28 = vst [vmem:[#allocation8] sm:$0x1] %v27
  %29 = dma.done [#allocation5], 32
  %30 = sfence
  $region1: #{tpu_custom_call.1} parent=0
    #allocation9 [shape = 'u8[8192]{0}', space=vmem, size = 0x2000, scoped, tag = 'output window, operand 0']
    #allocation10 [shape = 's32[2]{0}', space=sflag, size = 0x8, scoped, tag = 'scoped memory for tpu_custom_call.1']
    %31 = vsyncpa [#allocation10], 0
    %s32 = scalar_lea.sflag [#allocation10], 1
    %33 = vsyncpa %s32, 0
    loop: start=0, step=1, limit=5
    $region2: #{tpu_custom_call.1} parent=1 // loop_pre_header
      _
    $region3: #{tpu_custom_call.1} parent=1 // loop_header
      %s35 = sphi 0, %s39
      %p36 = scmp.ge.s32.totalorder %s35, 5
      %s43 = sphi 0, %s43
      %s45 = sphi 0, %s43
      %s46 = sphi 0, %s45
      %s60 = sphi 0, %s46
      %s64 = sphi 0, %s64
      %s66 = sphi 0, %s64
      %s67 = sphi 0, %s66
      %s81 = sphi 0, %s67
      %s85 = sphi 0, %s85
      %s87 = sphi 0, %s85
      %s88 = sphi 0, %s87
      %s102 = sphi 0, %s88
      %s106 = sphi 0, %s106
      %s108 = sphi 0, %s106
      %s109 = sphi 0, %s108
      %s123 = sphi 0, %s109
      %s127 = sphi 0, %s127
      %s129 = sphi 0, %s127
      %s130 = sphi 0, %s129
      %s144 = sphi 0, %s130
      %s148 = sphi 0, %s148
      %s150 = sphi 0, %s148
      %s151 = sphi 0, %s150
      %s165 = sphi 0, %s151
      %s169 = sphi 0, %s169
      %s171 = sphi 0, %s169
      %s172 = sphi 0, %s171
      %s186 = sphi 0, %s172
      %s190 = sphi 0, %s190
      %s192 = sphi 0, %s190
      %s193 = sphi 0, %s192
      %s207 = sphi 0, %s193
      %s211 = sphi 0, %s211
      %s213 = sphi 0, %s211
      %s214 = sphi 0, %s213
      %s228 = sphi 0, %s214
      %s232 = sphi 0, %s232
      %s234 = sphi 0, %s232
      %s235 = sphi 0, %s234
      %s249 = sphi 0, %s235
      %s255 = sphi 0, %s257
      %s258 = sphi 0, %s255
      %s259 = sphi 0, %s258
      %s275 = sphi 0, %s259
    $region4: #{tpu_custom_call.1} parent=1 // loop_header_branch
      %38 = sbr.rel (%p36) target = $region8
    $region5: #{tpu_custom_call.1} parent=1 // loop_body
      %s40 = ssub.s32 %s35, 1
      %s41 = ssub.s32 %s35, 2
      %s42 = sadd.s32 %s35, 1
      %s44 = sadd.s32 %s43, 1
      %p47 = scmp.eq.s32.totalorder %s35, 2
      %p48 = scmp.ne.s32.totalorder %s43, %s45
      %p49 = scmp.eq.s32.totalorder %s35, 0
      %p50 = por %p48, %p49
      %p51 = scmp.ne.s32.totalorder %s43, %s45
      %p52 = scmp.eq.s32.totalorder %s40, 2
      %p53 = por %p51, %p52
      %p54 = scmp.ne.s32.totalorder %s45, %s46
      %p55 = scmp.eq.s32.totalorder %s40, 0
      %p56 = por %p54, %p55
      %p57 = scmp.ne.s32.totalorder %s45, %s46
      %p58 = scmp.eq.s32.totalorder %s41, 2
      %p59 = por %p57, %p58
      %p61 = scmp.ne.s32.totalorder %s46, %s60
      %p62 = scmp.eq.s32.totalorder %s41, 0
      %p63 = por %p61, %p62
      %s65 = sadd.s32 %s64, 1
      %p68 = scmp.eq.s32.totalorder %s35, 2
      %p69 = scmp.ne.s32.totalorder %s64, %s66
      %p70 = scmp.eq.s32.totalorder %s35, 0
      %p71 = por %p69, %p70
      %p72 = scmp.ne.s32.totalorder %s64, %s66
      %p73 = scmp.eq.s32.totalorder %s40, 2
      %p74 = por %p72, %p73
      %p75 = scmp.ne.s32.totalorder %s66, %s67
      %p76 = scmp.eq.s32.totalorder %s40, 0
      %p77 = por %p75, %p76
      %p78 = scmp.ne.s32.totalorder %s66, %s67
      %p79 = scmp.eq.s32.totalorder %s41, 2
      %p80 = por %p78, %p79
      %p82 = scmp.ne.s32.totalorder %s67, %s81
      %p83 = scmp.eq.s32.totalorder %s41, 0
      %p84 = por %p82, %p83
      %s86 = sadd.s32 %s85, 1
      %p89 = scmp.eq.s32.totalorder %s35, 2
      %p90 = scmp.ne.s32.totalorder %s85, %s87
      %p91 = scmp.eq.s32.totalorder %s35, 0
      %p92 = por %p90, %p91
      %p93 = scmp.ne.s32.totalorder %s85, %s87
      %p94 = scmp.eq.s32.totalorder %s40, 2
      %p95 = por %p93, %p94
      %p96 = scmp.ne.s32.totalorder %s87, %s88
      %p97 = scmp.eq.s32.totalorder %s40, 0
      %p98 = por %p96, %p97
      %p99 = scmp.ne.s32.totalorder %s87, %s88
      %p100 = scmp.eq.s32.totalorder %s41, 2
      %p101 = por %p99, %p100
      %p103 = scmp.ne.s32.totalorder %s88, %s102
      %p104 = scmp.eq.s32.totalorder %s41, 0
      %p105 = por %p103, %p104
      %s107 = sadd.s32 %s106, 1
      %p110 = scmp.eq.s32.totalorder %s35, 2
      %p111 = scmp.ne.s32.totalorder %s106, %s108
      %p112 = scmp.eq.s32.totalorder %s35, 0
      %p113 = por %p111, %p112
      %p114 = scmp.ne.s32.totalorder %s106, %s108
      %p115 = scmp.eq.s32.totalorder %s40, 2
      %p116 = por %p114, %p115
      %p117 = scmp.ne.s32.totalorder %s108, %s109
      %p118 = scmp.eq.s32.totalorder %s40, 0
      %p119 = por %p117, %p118
      %p120 = scmp.ne.s32.totalorder %s108, %s109
      %p121 = scmp.eq.s32.totalorder %s41, 2
      %p122 = por %p120, %p121
      %p124 = scmp.ne.s32.totalorder %s109, %s123
      %p125 = scmp.eq.s32.totalorder %s41, 0
      %p126 = por %p124, %p125
      %s128 = sadd.s32 %s127, 1
      %p131 = scmp.eq.s32.totalorder %s35, 2
      %p132 = scmp.ne.s32.totalorder %s127, %s129
      %p133 = scmp.eq.s32.totalorder %s35, 0
      %p134 = por %p132, %p133
      %p135 = scmp.ne.s32.totalorder %s127, %s129
      %p136 = scmp.eq.s32.totalorder %s40, 2
      %p137 = por %p135, %p136
      %p138 = scmp.ne.s32.totalorder %s129, %s130
      %p139 = scmp.eq.s32.totalorder %s40, 0
      %p140 = por %p138, %p139
      %p141 = scmp.ne.s32.totalorder %s129, %s130
      %p142 = scmp.eq.s32.totalorder %s41, 2
      %p143 = por %p141, %p142
      %p145 = scmp.ne.s32.totalorder %s130, %s144
      %p146 = scmp.eq.s32.totalorder %s41, 0
      %p147 = por %p145, %p146
      %s149 = sadd.s32 %s148, 1
      %p152 = scmp.eq.s32.totalorder %s35, 2
      %p153 = scmp.ne.s32.totalorder %s148, %s150
      %p154 = scmp.eq.s32.totalorder %s35, 0
      %p155 = por %p153, %p154
      %p156 = scmp.ne.s32.totalorder %s148, %s150
      %p157 = scmp.eq.s32.totalorder %s40, 2
      %p158 = por %p156, %p157
      %p159 = scmp.ne.s32.totalorder %s150, %s151
      %p160 = scmp.eq.s32.totalorder %s40, 0
      %p161 = por %p159, %p160
      %p162 = scmp.ne.s32.totalorder %s150, %s151
      %p163 = scmp.eq.s32.totalorder %s41, 2
      %p164 = por %p162, %p163
      %p166 = scmp.ne.s32.totalorder %s151, %s165
      %p167 = scmp.eq.s32.totalorder %s41, 0
      %p168 = por %p166, %p167
      %s170 = sadd.s32 %s169, 1
      %p173 = scmp.eq.s32.totalorder %s35, 2
      %p174 = scmp.ne.s32.totalorder %s169, %s171
      %p175 = scmp.eq.s32.totalorder %s35, 0
      %p176 = por %p174, %p175
      %p177 = scmp.ne.s32.totalorder %s169, %s171
      %p178 = scmp.eq.s32.totalorder %s40, 2
      %p179 = por %p177, %p178
      %p180 = scmp.ne.s32.totalorder %s171, %s172
      %p181 = scmp.eq.s32.totalorder %s40, 0
      %p182 = por %p180, %p181
      %p183 = scmp.ne.s32.totalorder %s171, %s172
      %p184 = scmp.eq.s32.totalorder %s41, 2
      %p185 = por %p183, %p184
      %p187 = scmp.ne.s32.totalorder %s172, %s186
      %p188 = scmp.eq.s32.totalorder %s41, 0
      %p189 = por %p187, %p188
      %s191 = sadd.s32 %s190, 1
      %p194 = scmp.eq.s32.totalorder %s35, 2
      %p195 = scmp.ne.s32.totalorder %s190, %s192
      %p196 = scmp.eq.s32.totalorder %s35, 0
      %p197 = por %p195, %p196
      %p198 = scmp.ne.s32.totalorder %s190, %s192
      %p199 = scmp.eq.s32.totalorder %s40, 2
      %p200 = por %p198, %p199
      %p201 = scmp.ne.s32.totalorder %s192, %s193
      %p202 = scmp.eq.s32.totalorder %s40, 0
      %p203 = por %p201, %p202
      %p204 = scmp.ne.s32.totalorder %s192, %s193
      %p205 = scmp.eq.s32.totalorder %s41, 2
      %p206 = por %p204, %p205
      %p208 = scmp.ne.s32.totalorder %s193, %s207
      %p209 = scmp.eq.s32.totalorder %s41, 0
      %p210 = por %p208, %p209
      %s212 = sadd.s32 %s211, 1
      %p215 = scmp.eq.s32.totalorder %s35, 2
      %p216 = scmp.ne.s32.totalorder %s211, %s213
      %p217 = scmp.eq.s32.totalorder %s35, 0
      %p218 = por %p216, %p217
      %p219 = scmp.ne.s32.totalorder %s211, %s213
      %p220 = scmp.eq.s32.totalorder %s40, 2
      %p221 = por %p219, %p220
      %p222 = scmp.ne.s32.totalorder %s213, %s214
      %p223 = scmp.eq.s32.totalorder %s40, 0
      %p224 = por %p222, %p223
      %p225 = scmp.ne.s32.totalorder %s213, %s214
      %p226 = scmp.eq.s32.totalorder %s41, 2
      %p227 = por %p225, %p226
      %p229 = scmp.ne.s32.totalorder %s214, %s228
      %p230 = scmp.eq.s32.totalorder %s41, 0
      %p231 = por %p229, %p230
      %s233 = sadd.s32 %s232, 1
      %p236 = scmp.eq.s32.totalorder %s35, 2
      %p237 = scmp.ne.s32.totalorder %s232, %s234
      %p238 = scmp.eq.s32.totalorder %s35, 0
      %p239 = por %p237, %p238
      %p240 = scmp.ne.s32.totalorder %s232, %s234
      %p241 = scmp.eq.s32.totalorder %s40, 2
      %p242 = por %p240, %p241
      %p243 = scmp.ne.s32.totalorder %s234, %s235
      %p244 = scmp.eq.s32.totalorder %s40, 0
      %p245 = por %p243, %p244
      %p246 = scmp.ne.s32.totalorder %s234, %s235
      %p247 = scmp.eq.s32.totalorder %s41, 2
      %p248 = por %p246, %p247
      %p250 = scmp.ne.s32.totalorder %s235, %s249
      %p251 = scmp.eq.s32.totalorder %s41, 0
      %p252 = por %p250, %p251
      %s253 = ssub.s32 %s35, %s42
      %p254 = scmp.eq.s32.totalorder %s253, 0
      %s256 = sadd.s32 %s255, 1
      %s257 = scalar_select %p254, %s255, %s256
      %p260 = pneg %p254
      %p261 = scmp.eq.s32.totalorder %s35, 2
      %p262 = por %p260, %p261
      %p263 = scmp.ne.s32.totalorder %s255, %s258
      %p264 = scmp.eq.s32.totalorder %s35, 0
      %p265 = por %p263, %p264
      %p266 = scmp.ne.s32.totalorder %s255, %s258
      %p267 = scmp.eq.s32.totalorder %s40, 2
      %p268 = por %p266, %p267
      %p269 = scmp.ne.s32.totalorder %s258, %s259
      %p270 = scmp.eq.s32.totalorder %s40, 0
      %p271 = por %p269, %p270
      %p272 = scmp.ne.s32.totalorder %s258, %s259
      %p273 = scmp.eq.s32.totalorder %s41, 2
      %p274 = por %p272, %p273
      %p276 = scmp.ne.s32.totalorder %s259, %s275
      %p277 = scmp.eq.s32.totalorder %s41, 0
      %p278 = por %p276, %p277
      %p279 = scmp.le.s32.totalorder 1, %s35
      %p280 = scmp.lt.s32.totalorder %s35, 4
      %p281 = pnand %p279, %p280
      %p282 = pneg %p281
      // Predicated region
      $region9: #{tpu_custom_call.1} parent=5 // pred_check
        _
      $region10: #{tpu_custom_call.1} parent=5 // pred_check_branch
        %284 = sbr.rel (%p281) target = $region12
      $region11: #{tpu_custom_call.1} parent=5 // pred_region
        %s285 = ssub.s32 %s35, 1
        // Predicated region
        $region13: #{tpu_custom_call.1} parent=11 // pred_check
          %p286 = pneg %p56
        $region14: #{tpu_custom_call.1} parent=11 // pred_check_branch
          %288 = sbr.rel (%p286) target = $region16
        $region15: #{tpu_custom_call.1} parent=11 // pred_region
          _
        $region16: #{tpu_custom_call.1} parent=11 // pred_fallthru
          _
        // Predicated region
        $region17: #{tpu_custom_call.1} parent=11 // pred_check
          %p289 = pneg %p77
        $region18: #{tpu_custom_call.1} parent=11 // pred_check_branch
          %291 = sbr.rel (%p289) target = $region20
        $region19: #{tpu_custom_call.1} parent=11 // pred_region
          _
        $region20: #{tpu_custom_call.1} parent=11 // pred_fallthru
          _
        // Predicated region
        $region21: #{tpu_custom_call.1} parent=11 // pred_check
          %p292 = pneg %p98
        $region22: #{tpu_custom_call.1} parent=11 // pred_check_branch
          %294 = sbr.rel (%p292) target = $region24
        $region23: #{tpu_custom_call.1} parent=11 // pred_region
          _
        $region24: #{tpu_custom_call.1} parent=11 // pred_fallthru
          _
        // Predicated region
        $region25: #{tpu_custom_call.1} parent=11 // pred_check
          %p295 = pneg %p119
        $region26: #{tpu_custom_call.1} parent=11 // pred_check_branch
          %297 = sbr.rel (%p295) target = $region28
        $region27: #{tpu_custom_call.1} parent=11 // pred_region
          _
        $region28: #{tpu_custom_call.1} parent=11 // pred_fallthru
          _
        // Predicated region
        $region29: #{tpu_custom_call.1} parent=11 // pred_check
          %p298 = pneg %p140
        $region30: #{tpu_custom_call.1} parent=11 // pred_check_branch
          %300 = sbr.rel (%p298) target = $region32
        $region31: #{tpu_custom_call.1} parent=11 // pred_region
          _
        $region32: #{tpu_custom_call.1} parent=11 // pred_fallthru
          _
        // Predicated region
        $region33: #{tpu_custom_call.1} parent=11 // pred_check
          %p301 = pneg %p161
        $region34: #{tpu_custom_call.1} parent=11 // pred_check_branch
          %303 = sbr.rel (%p301) target = $region36
        $region35: #{tpu_custom_call.1} parent=11 // pred_region
          _
        $region36: #{tpu_custom_call.1} parent=11 // pred_fallthru
          _
        // Predicated region
        $region37: #{tpu_custom_call.1} parent=11 // pred_check
          %p304 = pneg %p182
        $region38: #{tpu_custom_call.1} parent=11 // pred_check_branch
          %306 = sbr.rel (%p304) target = $region40
        $region39: #{tpu_custom_call.1} parent=11 // pred_region
          _
        $region40: #{tpu_custom_call.1} parent=11 // pred_fallthru
          _
        // Predicated region
        $region41: #{tpu_custom_call.1} parent=11 // pred_check
          %p307 = pneg %p203
        $region42: #{tpu_custom_call.1} parent=11 // pred_check_branch
          %309 = sbr.rel (%p307) target = $region44
        $region43: #{tpu_custom_call.1} parent=11 // pred_region
          _
        $region44: #{tpu_custom_call.1} parent=11 // pred_fallthru
          _
        // Predicated region
        $region45: #{tpu_custom_call.1} parent=11 // pred_check
          %p310 = pneg %p224
        $region46: #{tpu_custom_call.1} parent=11 // pred_check_branch
          %312 = sbr.rel (%p310) target = $region48
        $region47: #{tpu_custom_call.1} parent=11 // pred_region
          _
        $region48: #{tpu_custom_call.1} parent=11 // pred_fallthru
          _
        // Predicated region
        $region49: #{tpu_custom_call.1} parent=11 // pred_check
          %p313 = pneg %p245
        $region50: #{tpu_custom_call.1} parent=11 // pred_check_branch
          %315 = sbr.rel (%p313) target = $region52
        $region51: #{tpu_custom_call.1} parent=11 // pred_region
          _
        $region52: #{tpu_custom_call.1} parent=11 // pred_fallthru
          _
      $region12: #{tpu_custom_call.1} parent=5 // pred_fallthru
        _
      %p316 = scmp.lt.s32.totalorder %s35, 3
      // Predicated region
      $region53: #{tpu_custom_call.1} parent=5 // pred_check
        %p317 = pneg %p316
      $region54: #{tpu_custom_call.1} parent=5 // pred_check_branch
        %319 = sbr.rel (%p317) target = $region56
      $region55: #{tpu_custom_call.1} parent=5 // pred_region
        _
      $region56: #{tpu_custom_call.1} parent=5 // pred_fallthru
        _
      %p320 = scmp.le.s32.totalorder 1, %s35
      %p321 = scmp.lt.s32.totalorder %s35, 4
      %p322 = pnand %p320, %p321
      %p323 = pneg %p322
      // Predicated region
      $region57: #{tpu_custom_call.1} parent=5 // pred_check
        _
      $region58: #{tpu_custom_call.1} parent=5 // pred_check_branch
        %325 = sbr.rel (%p322) target = $region60
      $region59: #{tpu_custom_call.1} parent=5 // pred_region
        %s326 = ssub.s32 %s35, 1
        %p327 = pneg %p56
        %p328 = pneg %p53
        %p329 = pneg %p77
        %p330 = pneg %p74
        %p331 = pneg %p98
        %p332 = pneg %p95
        %p333 = pneg %p119
        %p334 = pneg %p116
        %p335 = pneg %p140
        %p336 = pneg %p137
        %p337 = pneg %p161
        %p338 = pneg %p158
        %p339 = pneg %p182
        %p340 = pneg %p179
        %p341 = pneg %p203
        %p342 = pneg %p200
        %p343 = pneg %p224
        %p344 = pneg %p221
        %p345 = pneg %p245
        %p346 = pneg %p242
        %p347 = pneg %p271
        %p348 = pneg %p268
        %s349 = sand.u32 %s258, 1
        %s350 = scalar_lea.sflag [#allocation10], %s349
        %s351 = sand.u32 %s258, 1
        %s352 = smul.addr %s351, 8
        %s353 = scalar_lea.vmem [#allocation9], %s352
        %s355 = smul.u32 %s40, 8
        %s356 = sld [smem:[#allocation6 + %s355]]
        %s357 = sld [smem:[#allocation7 + %s355]]
        %s358 = scalar_lea.vmem %s2, %s356
        %p360 = scmp.lt.u32.totalorder 1, 8
        %p361 = pneg %p360
        // Predicated region
        $region61: #{tpu_custom_call.1} parent=59 // pred_check
          _
        $region62: #{tpu_custom_call.1} parent=59 // pred_check_branch
          %363 = sbr.rel (%p360) target = $region64
        $region63: #{tpu_custom_call.1} parent=59 // pred_region
          %s378 = sand.u32 1, 7
          %p379 = scmp.eq.s32.totalorder %s378, 0
          %p380 = pneg %p379
          // Predicated region
          $region76: #{tpu_custom_call.1} parent=63 // pred_check
            _
          $region77: #{tpu_custom_call.1} parent=63 // pred_check_branch
            %382 = sbr.rel (%p379) target = $region79
          $region78: #{tpu_custom_call.1} parent=63 // pred_region
            %s383 = sand.u32 1, 7
            %s384 = ssub.s32 1, %s383
            %s385 = scalar_lea.vmem %s358, %s384
            %s386 = ssub.s32 1, %s383
            %s387 = scalar_lea.vmem [#allocation2], %s386
            %s388 = sshllo.u32 0, %s383
            loop: start=0, step=1, limit=1
            $region80: #{tpu_custom_call.1} parent=78 // loop_pre_header
              _
            $region81: #{tpu_custom_call.1} parent=78 // loop_header
              %s390 = sphi 0, %s394
              %p391 = scmp.ge.s32.totalorder %s390, 1
              %s395 = sphi %s385, %s385
              %s396 = sphi %s387, %s387
            $region82: #{tpu_custom_call.1} parent=78 // loop_header_branch
              %393 = sbr.rel (%p391) target = $region86
            $region83: #{tpu_custom_call.1} parent=78 // loop_body
              %v397 = vld [vmem:[%s395] sm:%s388]
              %398 = vst [vmem:[%s396] sm:%s388] %v397
            $region84: #{tpu_custom_call.1} parent=78 // loop_footer
              %s394 = sadd.s32 1, %s390
            $region85: #{tpu_custom_call.1} parent=78 // loop_footer_branch
              %389 = sbr.rel target = $region81
            $region86: #{tpu_custom_call.1} parent=78 // loop_exit
              _
          $region79: #{tpu_custom_call.1} parent=63 // pred_fallthru
            _
        $region64: #{tpu_custom_call.1} parent=59 // pred_fallthru
          _
        // Predicated region
        $region65: #{tpu_custom_call.1} parent=59 // pred_check
          %p364 = pneg %p360
        $region66: #{tpu_custom_call.1} parent=59 // pred_check_branch
          %366 = sbr.rel (%p364) target = $region68
        $region67: #{tpu_custom_call.1} parent=59 // pred_region
          %s367 = sshllo.u32 0, 1
          loop: start=0, step=1, limit=1
          $region69: #{tpu_custom_call.1} parent=67 // loop_pre_header
            _
          $region70: #{tpu_custom_call.1} parent=67 // loop_header
            %s369 = sphi 0, %s373
            %p370 = scmp.ge.s32.totalorder %s369, 1
            %s374 = sphi %s358, %s358
            %s375 = sphi [#allocation2], [#allocation2]
          $region71: #{tpu_custom_call.1} parent=67 // loop_header_branch
            %372 = sbr.rel (%p370) target = $region75
          $region72: #{tpu_custom_call.1} parent=67 // loop_body
            %v376 = vld [vmem:[%s374] sm:%s367]
            %377 = vst [vmem:[%s375] sm:%s367] %v376
          $region73: #{tpu_custom_call.1} parent=67 // loop_footer
            %s373 = sadd.s32 1, %s369
          $region74: #{tpu_custom_call.1} parent=67 // loop_footer_branch
            %368 = sbr.rel target = $region70
          $region75: #{tpu_custom_call.1} parent=67 // loop_exit
            _
        $region68: #{tpu_custom_call.1} parent=59 // pred_fallthru
          _
        // Predicated region
        $region87: #{tpu_custom_call.1} parent=59 // pred_check
          _
        $region88: #{tpu_custom_call.1} parent=59 // pred_check_branch
          %401 = sbr.rel (0) target = $region90
        $region89: #{tpu_custom_call.1} parent=59 // pred_region
          %402 = vsyncadd [#allocation4], 16
        $region90: #{tpu_custom_call.1} parent=59 // pred_fallthru
          _
        %s403 = scalar_lea.vmem %s3, %s357
        %s404 = scalar_lea.sflag [#allocation4], 8
        %p406 = scmp.lt.u32.totalorder 1, 8
        %p407 = pneg %p406
        // Predicated region
        $region91: #{tpu_custom_call.1} parent=59 // pred_check
          _
        $region92: #{tpu_custom_call.1} parent=59 // pred_check_branch
          %409 = sbr.rel (%p406) target = $region94
        $region93: #{tpu_custom_call.1} parent=59 // pred_region
          %s424 = sand.u32 1, 7
          %p425 = scmp.eq.s32.totalorder %s424, 0
          %p426 = pneg %p425
          // Predicated region
          $region106: #{tpu_custom_call.1} parent=93 // pred_check
            _
          $region107: #{tpu_custom_call.1} parent=93 // pred_check_branch
            %428 = sbr.rel (%p425) target = $region109
          $region108: #{tpu_custom_call.1} parent=93 // pred_region
            %s429 = sand.u32 1, 7
            %s430 = ssub.s32 1, %s429
            %s431 = scalar_lea.vmem %s403, %s430
            %s432 = ssub.s32 1, %s429
            %s433 = scalar_lea.vmem [#allocation3], %s432
            %s434 = sshllo.u32 0, %s429
            loop: start=0, step=1, limit=1
            $region110: #{tpu_custom_call.1} parent=108 // loop_pre_header
              _
            $region111: #{tpu_custom_call.1} parent=108 // loop_header
              %s436 = sphi 0, %s440
              %p437 = scmp.ge.s32.totalorder %s436, 1
              %s441 = sphi %s431, %s431
              %s442 = sphi %s433, %s433
            $region112: #{tpu_custom_call.1} parent=108 // loop_header_branch
              %439 = sbr.rel (%p437) target = $region116
            $region113: #{tpu_custom_call.1} parent=108 // loop_body
              %v443 = vld [vmem:[%s441] sm:%s434]
              %444 = vst [vmem:[%s442] sm:%s434] %v443
            $region114: #{tpu_custom_call.1} parent=108 // loop_footer
              %s440 = sadd.s32 1, %s436
            $region115: #{tpu_custom_call.1} parent=108 // loop_footer_branch
              %435 = sbr.rel target = $region111
            $region116: #{tpu_custom_call.1} parent=108 // loop_exit
              _
          $region109: #{tpu_custom_call.1} parent=93 // pred_fallthru
            _
        $region94: #{tpu_custom_call.1} parent=59 // pred_fallthru
          _
        // Predicated region
        $region95: #{tpu_custom_call.1} parent=59 // pred_check
          %p410 = pneg %p406
        $region96: #{tpu_custom_call.1} parent=59 // pred_check_branch
          %412 = sbr.rel (%p410) target = $region98
        $region97: #{tpu_custom_call.1} parent=59 // pred_region
          %s413 = sshllo.u32 0, 1
          loop: start=0, step=1, limit=1
          $region99: #{tpu_custom_call.1} parent=97 // loop_pre_header
            _
          $region100: #{tpu_custom_call.1} parent=97 // loop_header
            %s415 = sphi 0, %s419
            %p416 = scmp.ge.s32.totalorder %s415, 1
            %s420 = sphi %s403, %s403
            %s421 = sphi [#allocation3], [#allocation3]
          $region101: #{tpu_custom_call.1} parent=97 // loop_header_branch
            %418 = sbr.rel (%p416) target = $region105
          $region102: #{tpu_custom_call.1} parent=97 // loop_body
            %v422 = vld [vmem:[%s420] sm:%s413]
            %423 = vst [vmem:[%s421] sm:%s413] %v422
          $region103: #{tpu_custom_call.1} parent=97 // loop_footer
            %s419 = sadd.s32 1, %s415
          $region104: #{tpu_custom_call.1} parent=97 // loop_footer_branch
            %414 = sbr.rel target = $region100
          $region105: #{tpu_custom_call.1} parent=97 // loop_exit
            _
        $region98: #{tpu_custom_call.1} parent=59 // pred_fallthru
          _
        // Predicated region
        $region117: #{tpu_custom_call.1} parent=59 // pred_check
          _
        $region118: #{tpu_custom_call.1} parent=59 // pred_check_branch
          %447 = sbr.rel (0) target = $region120
        $region119: #{tpu_custom_call.1} parent=59 // pred_region
          %448 = vsyncadd %s404, 16
        $region120: #{tpu_custom_call.1} parent=59 // pred_fallthru
          _
        %s449 = sadd.s32 %s355, 1
        %s450 = sld [smem:[#allocation6 + %s449]]
        %s451 = sld [smem:[#allocation7 + %s449]]
        %s452 = scalar_lea.vmem %s2, %s450
        %s453 = scalar_lea.vmem [#allocation2], 1
        %s454 = scalar_lea.sflag [#allocation4], 1
        %p456 = scmp.lt.u32.totalorder 1, 8
        %p457 = pneg %p456
        // Predicated region
        $region121: #{tpu_custom_call.1} parent=59 // pred_check
          _
        $region122: #{tpu_custom_call.1} parent=59 // pred_check_branch
          %459 = sbr.rel (%p456) target = $region124
        $region123: #{tpu_custom_call.1} parent=59 // pred_region
          %s474 = sand.u32 1, 7
          %p475 = scmp.eq.s32.totalorder %s474, 0
          %p476 = pneg %p475
          // Predicated region
          $region136: #{tpu_custom_call.1} parent=123 // pred_check
            _
          $region137: #{tpu_custom_call.1} parent=123 // pred_check_branch
            %478 = sbr.rel (%p475) target = $region139
          $region138: #{tpu_custom_call.1} parent=123 // pred_region
            %s479 = sand.u32 1, 7
            %s480 = ssub.s32 1, %s479
            %s481 = scalar_lea.vmem %s452, %s480
            %s482 = ssub.s32 1, %s479
            %s483 = scalar_lea.vmem %s453, %s482 [#allocation2]
            %s484 = sshllo.u32 0, %s479
            loop: start=0, step=1, limit=1
            $region140: #{tpu_custom_call.1} parent=138 // loop_pre_header
              _
            $region141: #{tpu_custom_call.1} parent=138 // loop_header
              %s486 = sphi 0, %s490
              %p487 = scmp.ge.s32.totalorder %s486, 1
              %s491 = sphi %s481, %s481
              %s492 = sphi %s483, %s483
            $region142: #{tpu_custom_call.1} parent=138 // loop_header_branch
              %489 = sbr.rel (%p487) target = $region146
            $region143: #{tpu_custom_call.1} parent=138 // loop_body
              %v493 = vld [vmem:[%s491] sm:%s484]
              %494 = vst [vmem:[%s492] sm:%s484] %v493
            $region144: #{tpu_custom_call.1} parent=138 // loop_footer
              %s490 = sadd.s32 1, %s486
            $region145: #{tpu_custom_call.1} parent=138 // loop_footer_branch
              %485 = sbr.rel target = $region141
            $region146: #{tpu_custom_call.1} parent=138 // loop_exit
              _
          $region139: #{tpu_custom_call.1} parent=123 // pred_fallthru
            _
        $region124: #{tpu_custom_call.1} parent=59 // pred_fallthru
          _
        // Predicated region
        $region125: #{tpu_custom_call.1} parent=59 // pred_check
          %p460 = pneg %p456
        $region126: #{tpu_custom_call.1} parent=59 // pred_check_branch
          %462 = sbr.rel (%p460) target = $region128
        $region127: #{tpu_custom_call.1} parent=59 // pred_region
          %s463 = sshllo.u32 0, 1
          loop: start=0, step=1, limit=1
          $region129: #{tpu_custom_call.1} parent=127 // loop_pre_header
            _
          $region130: #{tpu_custom_call.1} parent=127 // loop_header
            %s465 = sphi 0, %s469
            %p466 = scmp.ge.s32.totalorder %s465, 1
            %s470 = sphi %s452, %s452
            %s471 = sphi %s453, %s453
          $region131: #{tpu_custom_call.1} parent=127 // loop_header_branch
            %468 = sbr.rel (%p466) target = $region135
          $region132: #{tpu_custom_call.1} parent=127 // loop_body
            %v472 = vld [vmem:[%s470] sm:%s463]
            %473 = vst [vmem:[%s471] sm:%s463] %v472
          $region133: #{tpu_custom_call.1} parent=127 // loop_footer
            %s469 = sadd.s32 1, %s465
          $region134: #{tpu_custom_call.1} parent=127 // loop_footer_branch
            %464 = sbr.rel target = $region130
          $region135: #{tpu_custom_call.1} parent=127 // loop_exit
            _
        $region128: #{tpu_custom_call.1} parent=59 // pred_fallthru
          _
        // Predicated region
        $region147: #{tpu_custom_call.1} parent=59 // pred_check
          _
        $region148: #{tpu_custom_call.1} parent=59 // pred_check_branch
          %497 = sbr.rel (0) target = $region150
        $region149: #{tpu_custom_call.1} parent=59 // pred_region
          %498 = vsyncadd %s454, 16
        $region150: #{tpu_custom_call.1} parent=59 // pred_fallthru
          _
        %s499 = scalar_lea.vmem %s3, %s451
        %s500 = scalar_lea.vmem [#allocation3], 1
        %s501 = scalar_lea.sflag [#allocation4], 9
        %p503 = scmp.lt.u32.totalorder 1, 8
        %p504 = pneg %p503
        // Predicated region
        $region151: #{tpu_custom_call.1} parent=59 // pred_check
          _
        $region152: #{tpu_custom_call.1} parent=59 // pred_check_branch
          %506 = sbr.rel (%p503) target = $region154
        $region153: #{tpu_custom_call.1} parent=59 // pred_region
          %s521 = sand.u32 1, 7
          %p522 = scmp.eq.s32.totalorder %s521, 0
          %p523 = pneg %p522
          // Predicated region
          $region166: #{tpu_custom_call.1} parent=153 // pred_check
            _
          $region167: #{tpu_custom_call.1} parent=153 // pred_check_branch
            %525 = sbr.rel (%p522) target = $region169
          $region168: #{tpu_custom_call.1} parent=153 // pred_region
            %s526 = sand.u32 1, 7
            %s527 = ssub.s32 1, %s526
            %s528 = scalar_lea.vmem %s499, %s527
            %s529 = ssub.s32 1, %s526
            %s530 = scalar_lea.vmem %s500, %s529 [#allocation3]
            %s531 = sshllo.u32 0, %s526
            loop: start=0, step=1, limit=1
            $region170: #{tpu_custom_call.1} parent=168 // loop_pre_header
              _
            $region171: #{tpu_custom_call.1} parent=168 // loop_header
              %s533 = sphi 0, %s537
              %p534 = scmp.ge.s32.totalorder %s533, 1
              %s538 = sphi %s528, %s528
              %s539 = sphi %s530, %s530
            $region172: #{tpu_custom_call.1} parent=168 // loop_header_branch
              %536 = sbr.rel (%p534) target = $region176
            $region173: #{tpu_custom_call.1} parent=168 // loop_body
              %v540 = vld [vmem:[%s538] sm:%s531]
              %541 = vst [vmem:[%s539] sm:%s531] %v540
            $region174: #{tpu_custom_call.1} parent=168 // loop_footer
              %s537 = sadd.s32 1, %s533
            $region175: #{tpu_custom_call.1} parent=168 // loop_footer_branch
              %532 = sbr.rel target = $region171
            $region176: #{tpu_custom_call.1} parent=168 // loop_exit
              _
          $region169: #{tpu_custom_call.1} parent=153 // pred_fallthru
            _
        $region154: #{tpu_custom_call.1} parent=59 // pred_fallthru
          _
        // Predicated region
        $region155: #{tpu_custom_call.1} parent=59 // pred_check
          %p507 = pneg %p503
        $region156: #{tpu_custom_call.1} parent=59 // pred_check_branch
          %509 = sbr.rel (%p507) target = $region158
        $region157: #{tpu_custom_call.1} parent=59 // pred_region
          %s510 = sshllo.u32 0, 1
          loop: start=0, step=1, limit=1
          $region159: #{tpu_custom_call.1} parent=157 // loop_pre_header
            _
          $region160: #{tpu_custom_call.1} parent=157 // loop_header
            %s512 = sphi 0, %s516
            %p513 = scmp.ge.s32.totalorder %s512, 1
            %s517 = sphi %s499, %s499
            %s518 = sphi %s500, %s500
          $region161: #{tpu_custom_call.1} parent=157 // loop_header_branch
            %515 = sbr.rel (%p513) target = $region165
          $region162: #{tpu_custom_call.1} parent=157 // loop_body
            %v519 = vld [vmem:[%s517] sm:%s510]
            %520 = vst [vmem:[%s518] sm:%s510] %v519
          $region163: #{tpu_custom_call.1} parent=157 // loop_footer
            %s516 = sadd.s32 1, %s512
          $region164: #{tpu_custom_call.1} parent=157 // loop_footer_branch
            %511 = sbr.rel target = $region160
          $region165: #{tpu_custom_call.1} parent=157 // loop_exit
            _
        $region158: #{tpu_custom_call.1} parent=59 // pred_fallthru
          _
        // Predicated region
        $region177: #{tpu_custom_call.1} parent=59 // pred_check
          _
        $region178: #{tpu_custom_call.1} parent=59 // pred_check_branch
          %544 = sbr.rel (0) target = $region180
        $region179: #{tpu_custom_call.1} parent=59 // pred_region
          %545 = vsyncadd %s501, 16
        $region180: #{tpu_custom_call.1} parent=59 // pred_fallthru
          _
        %s546 = sadd.s32 %s355, 2
        %s547 = sld [smem:[#allocation6 + %s546]]
        %s548 = sld [smem:[#allocation7 + %s546]]
        %s549 = scalar_lea.vmem %s2, %s547
        %s550 = scalar_lea.vmem [#allocation2], 2
        %s551 = scalar_lea.sflag [#allocation4], 2
        %p553 = scmp.lt.u32.totalorder 1, 8
        %p554 = pneg %p553
        // Predicated region
        $region181: #{tpu_custom_call.1} parent=59 // pred_check
          _
        $region182: #{tpu_custom_call.1} parent=59 // pred_check_branch
          %556 = sbr.rel (%p553) target = $region184
        $region183: #{tpu_custom_call.1} parent=59 // pred_region
          %s571 = sand.u32 1, 7
          %p572 = scmp.eq.s32.totalorder %s571, 0
          %p573 = pneg %p572
          // Predicated region
          $region196: #{tpu_custom_call.1} parent=183 // pred_check
            _
          $region197: #{tpu_custom_call.1} parent=183 // pred_check_branch
            %575 = sbr.rel (%p572) target = $region199
          $region198: #{tpu_custom_call.1} parent=183 // pred_region
            %s576 = sand.u32 1, 7
            %s577 = ssub.s32 1, %s576
            %s578 = scalar_lea.vmem %s549, %s577
            %s579 = ssub.s32 1, %s576
            %s580 = scalar_lea.vmem %s550, %s579 [#allocation2]
            %s581 = sshllo.u32 0, %s576
            loop: start=0, step=1, limit=1
            $region200: #{tpu_custom_call.1} parent=198 // loop_pre_header
              _
            $region201: #{tpu_custom_call.1} parent=198 // loop_header
              %s583 = sphi 0, %s587
              %p584 = scmp.ge.s32.totalorder %s583, 1
              %s588 = sphi %s578, %s578
              %s589 = sphi %s580, %s580
            $region202: #{tpu_custom_call.1} parent=198 // loop_header_branch
              %586 = sbr.rel (%p584) target = $region206
            $region203: #{tpu_custom_call.1} parent=198 // loop_body
              %v590 = vld [vmem:[%s588] sm:%s581]
              %591 = vst [vmem:[%s589] sm:%s581] %v590
            $region204: #{tpu_custom_call.1} parent=198 // loop_footer
              %s587 = sadd.s32 1, %s583
            $region205: #{tpu_custom_call.1} parent=198 // loop_footer_branch
              %582 = sbr.rel target = $region201
            $region206: #{tpu_custom_call.1} parent=198 // loop_exit
              _
          $region199: #{tpu_custom_call.1} parent=183 // pred_fallthru
            _
        $region184: #{tpu_custom_call.1} parent=59 // pred_fallthru
          _
        // Predicated region
        $region185: #{tpu_custom_call.1} parent=59 // pred_check
          %p557 = pneg %p553
        $region186: #{tpu_custom_call.1} parent=59 // pred_check_branch
          %559 = sbr.rel (%p557) target = $region188
        $region187: #{tpu_custom_call.1} parent=59 // pred_region
          %s560 = sshllo.u32 0, 1
          loop: start=0, step=1, limit=1
          $region189: #{tpu_custom_call.1} parent=187 // loop_pre_header
            _
          $region190: #{tpu_custom_call.1} parent=187 // loop_header
            %s562 = sphi 0, %s566
            %p563 = scmp.ge.s32.totalorder %s562, 1
            %s567 = sphi %s549, %s549
            %s568 = sphi %s550, %s550
          $region191: #{tpu_custom_call.1} parent=187 // loop_header_branch
            %565 = sbr.rel (%p563) target = $region195
          $region192: #{tpu_custom_call.1} parent=187 // loop_body
            %v569 = vld [vmem:[%s567] sm:%s560]
            %570 = vst [vmem:[%s568] sm:%s560] %v569
          $region193: #{tpu_custom_call.1} parent=187 // loop_footer
            %s566 = sadd.s32 1, %s562
          $region194: #{tpu_custom_call.1} parent=187 // loop_footer_branch
            %561 = sbr.rel target = $region190
          $region195: #{tpu_custom_call.1} parent=187 // loop_exit
            _
        $region188: #{tpu_custom_call.1} parent=59 // pred_fallthru
          _
        // Predicated region
        $region207: #{tpu_custom_call.1} parent=59 // pred_check
          _
        $region208: #{tpu_custom_call.1} parent=59 // pred_check_branch
          %594 = sbr.rel (0) target = $region210
        $region209: #{tpu_custom_call.1} parent=59 // pred_region
          %595 = vsyncadd %s551, 16
        $region210: #{tpu_custom_call.1} parent=59 // pred_fallthru
          _
        %s596 = scalar_lea.vmem %s3, %s548
        %s597 = scalar_lea.vmem [#allocation3], 2
        %s598 = scalar_lea.sflag [#allocation4], 10
        %p600 = scmp.lt.u32.totalorder 1, 8
        %p601 = pneg %p600
        // Predicated region
        $region211: #{tpu_custom_call.1} parent=59 // pred_check
          _
        $region212: #{tpu_custom_call.1} parent=59 // pred_check_branch
          %603 = sbr.rel (%p600) target = $region214
        $region213: #{tpu_custom_call.1} parent=59 // pred_region
          %s618 = sand.u32 1, 7
          %p619 = scmp.eq.s32.totalorder %s618, 0
          %p620 = pneg %p619
          // Predicated region
          $region226: #{tpu_custom_call.1} parent=213 // pred_check
            _
          $region227: #{tpu_custom_call.1} parent=213 // pred_check_branch
            %622 = sbr.rel (%p619) target = $region229
          $region228: #{tpu_custom_call.1} parent=213 // pred_region
            %s623 = sand.u32 1, 7
            %s624 = ssub.s32 1, %s623
            %s625 = scalar_lea.vmem %s596, %s624
            %s626 = ssub.s32 1, %s623
            %s627 = scalar_lea.vmem %s597, %s626 [#allocation3]
            %s628 = sshllo.u32 0, %s623
            loop: start=0, step=1, limit=1
            $region230: #{tpu_custom_call.1} parent=228 // loop_pre_header
              _
            $region231: #{tpu_custom_call.1} parent=228 // loop_header
              %s630 = sphi 0, %s634
              %p631 = scmp.ge.s32.totalorder %s630, 1
              %s635 = sphi %s625, %s625
              %s636 = sphi %s627, %s627
            $region232: #{tpu_custom_call.1} parent=228 // loop_header_branch
              %633 = sbr.rel (%p631) target = $region236
            $region233: #{tpu_custom_call.1} parent=228 // loop_body
              %v637 = vld [vmem:[%s635] sm:%s628]
              %638 = vst [vmem:[%s636] sm:%s628] %v637
            $region234: #{tpu_custom_call.1} parent=228 // loop_footer
              %s634 = sadd.s32 1, %s630
            $region235: #{tpu_custom_call.1} parent=228 // loop_footer_branch
              %629 = sbr.rel target = $region231
            $region236: #{tpu_custom_call.1} parent=228 // loop_exit
              _
          $region229: #{tpu_custom_call.1} parent=213 // pred_fallthru
            _
        $region214: #{tpu_custom_call.1} parent=59 // pred_fallthru
          _
        // Predicated region
        $region215: #{tpu_custom_call.1} parent=59 // pred_check
          %p604 = pneg %p600
        $region216: #{tpu_custom_call.1} parent=59 // pred_check_branch
          %606 = sbr.rel (%p604) target = $region218
        $region217: #{tpu_custom_call.1} parent=59 // pred_region
          %s607 = sshllo.u32 0, 1
          loop: start=0, step=1, limit=1
          $region219: #{tpu_custom_call.1} parent=217 // loop_pre_header
            _
          $region220: #{tpu_custom_call.1} parent=217 // loop_header
            %s609 = sphi 0, %s613
            %p610 = scmp.ge.s32.totalorder %s609, 1
            %s614 = sphi %s596, %s596
            %s615 = sphi %s597, %s597
          $region221: #{tpu_custom_call.1} parent=217 // loop_header_branch
            %612 = sbr.rel (%p610) target = $region225
          $region222: #{tpu_custom_call.1} parent=217 // loop_body
            %v616 = vld [vmem:[%s614] sm:%s607]
            %617 = vst [vmem:[%s615] sm:%s607] %v616
          $region223: #{tpu_custom_call.1} parent=217 // loop_footer
            %s613 = sadd.s32 1, %s609
          $region224: #{tpu_custom_call.1} parent=217 // loop_footer_branch
            %608 = sbr.rel target = $region220
          $region225: #{tpu_custom_call.1} parent=217 // loop_exit
            _
        $region218: #{tpu_custom_call.1} parent=59 // pred_fallthru
          _
        // Predicated region
        $region237: #{tpu_custom_call.1} parent=59 // pred_check
          _
        $region238: #{tpu_custom_call.1} parent=59 // pred_check_branch
          %641 = sbr.rel (0) target = $region240
        $region239: #{tpu_custom_call.1} parent=59 // pred_region
          %642 = vsyncadd %s598, 16
        $region240: #{tpu_custom_call.1} parent=59 // pred_fallthru
          _
        %s643 = sadd.s32 %s355, 3
        %s644 = sld [smem:[#allocation6 + %s643]]
        %s645 = sld [smem:[#allocation7 + %s643]]
        %s646 = scalar_lea.vmem %s2, %s644
        %s647 = scalar_lea.vmem [#allocation2], 3
        %s648 = scalar_lea.sflag [#allocation4], 3
        %p650 = scmp.lt.u32.totalorder 1, 8
        %p651 = pneg %p650
        // Predicated region
        $region241: #{tpu_custom_call.1} parent=59 // pred_check
          _
        $region242: #{tpu_custom_call.1} parent=59 // pred_check_branch
          %653 = sbr.rel (%p650) target = $region244
        $region243: #{tpu_custom_call.1} parent=59 // pred_region
          %s668 = sand.u32 1, 7
          %p669 = scmp.eq.s32.totalorder %s668, 0
          %p670 = pneg %p669
          // Predicated region
          $region256: #{tpu_custom_call.1} parent=243 // pred_check
            _
          $region257: #{tpu_custom_call.1} parent=243 // pred_check_branch
            %672 = sbr.rel (%p669) target = $region259
          $region258: #{tpu_custom_call.1} parent=243 // pred_region
            %s673 = sand.u32 1, 7
            %s674 = ssub.s32 1, %s673
            %s675 = scalar_lea.vmem %s646, %s674
            %s676 = ssub.s32 1, %s673
            %s677 = scalar_lea.vmem %s647, %s676 [#allocation2]
            %s678 = sshllo.u32 0, %s673
            loop: start=0, step=1, limit=1
            $region260: #{tpu_custom_call.1} parent=258 // loop_pre_header
              _
            $region261: #{tpu_custom_call.1} parent=258 // loop_header
              %s680 = sphi 0, %s684
              %p681 = scmp.ge.s32.totalorder %s680, 1
              %s685 = sphi %s675, %s675
              %s686 = sphi %s677, %s677
            $region262: #{tpu_custom_call.1} parent=258 // loop_header_branch
              %683 = sbr.rel (%p681) target = $region266
            $region263: #{tpu_custom_call.1} parent=258 // loop_body
              %v687 = vld [vmem:[%s685] sm:%s678]
              %688 = vst [vmem:[%s686] sm:%s678] %v687
            $region264: #{tpu_custom_call.1} parent=258 // loop_footer
              %s684 = sadd.s32 1, %s680
            $region265: #{tpu_custom_call.1} parent=258 // loop_footer_branch
              %679 = sbr.rel target = $region261
            $region266: #{tpu_custom_call.1} parent=258 // loop_exit
              _
          $region259: #{tpu_custom_call.1} parent=243 // pred_fallthru
            _
        $region244: #{tpu_custom_call.1} parent=59 // pred_fallthru
          _
        // Predicated region
        $region245: #{tpu_custom_call.1} parent=59 // pred_check
          %p654 = pneg %p650
        $region246: #{tpu_custom_call.1} parent=59 // pred_check_branch
          %656 = sbr.rel (%p654) target = $region248
        $region247: #{tpu_custom_call.1} parent=59 // pred_region
          %s657 = sshllo.u32 0, 1
          loop: start=0, step=1, limit=1
          $region249: #{tpu_custom_call.1} parent=247 // loop_pre_header
            _
          $region250: #{tpu_custom_call.1} parent=247 // loop_header
            %s659 = sphi 0, %s663
            %p660 = scmp.ge.s32.totalorder %s659, 1
            %s664 = sphi %s646, %s646
            %s665 = sphi %s647, %s647
          $region251: #{tpu_custom_call.1} parent=247 // loop_header_branch
            %662 = sbr.rel (%p660) target = $region255
          $region252: #{tpu_custom_call.1} parent=247 // loop_body
            %v666 = vld [vmem:[%s664] sm:%s657]
            %667 = vst [vmem:[%s665] sm:%s657] %v666
          $region253: #{tpu_custom_call.1} parent=247 // loop_footer
            %s663 = sadd.s32 1, %s659
          $region254: #{tpu_custom_call.1} parent=247 // loop_footer_branch
            %658 = sbr.rel target = $region250
          $region255: #{tpu_custom_call.1} parent=247 // loop_exit
            _
        $region248: #{tpu_custom_call.1} parent=59 // pred_fallthru
          _
        // Predicated region
        $region267: #{tpu_custom_call.1} parent=59 // pred_check
          _
        $region268: #{tpu_custom_call.1} parent=59 // pred_check_branch
          %691 = sbr.rel (0) target = $region270
        $region269: #{tpu_custom_call.1} parent=59 // pred_region
          %692 = vsyncadd %s648, 16
        $region270: #{tpu_custom_call.1} parent=59 // pred_fallthru
          _
        %s693 = scalar_lea.vmem %s3, %s645
        %s694 = scalar_lea.vmem [#allocation3], 3
        %s695 = scalar_lea.sflag [#allocation4], 11
        %p697 = scmp.lt.u32.totalorder 1, 8
        %p698 = pneg %p697
        // Predicated region
        $region271: #{tpu_custom_call.1} parent=59 // pred_check
          _
        $region272: #{tpu_custom_call.1} parent=59 // pred_check_branch
          %700 = sbr.rel (%p697) target = $region274
        $region273: #{tpu_custom_call.1} parent=59 // pred_region
          %s715 = sand.u32 1, 7
          %p716 = scmp.eq.s32.totalorder %s715, 0
          %p717 = pneg %p716
          // Predicated region
          $region286: #{tpu_custom_call.1} parent=273 // pred_check
            _
          $region287: #{tpu_custom_call.1} parent=273 // pred_check_branch
            %719 = sbr.rel (%p716) target = $region289
          $region288: #{tpu_custom_call.1} parent=273 // pred_region
            %s720 = sand.u32 1, 7
            %s721 = ssub.s32 1, %s720
            %s722 = scalar_lea.vmem %s693, %s721
            %s723 = ssub.s32 1, %s720
            %s724 = scalar_lea.vmem %s694, %s723 [#allocation3]
            %s725 = sshllo.u32 0, %s720
            loop: start=0, step=1, limit=1
            $region290: #{tpu_custom_call.1} parent=288 // loop_pre_header
              _
            $region291: #{tpu_custom_call.1} parent=288 // loop_header
              %s727 = sphi 0, %s731
              %p728 = scmp.ge.s32.totalorder %s727, 1
              %s732 = sphi %s722, %s722
              %s733 = sphi %s724, %s724
            $region292: #{tpu_custom_call.1} parent=288 // loop_header_branch
              %730 = sbr.rel (%p728) target = $region296
            $region293: #{tpu_custom_call.1} parent=288 // loop_body
              %v734 = vld [vmem:[%s732] sm:%s725]
              %735 = vst [vmem:[%s733] sm:%s725] %v734
            $region294: #{tpu_custom_call.1} parent=288 // loop_footer
              %s731 = sadd.s32 1, %s727
            $region295: #{tpu_custom_call.1} parent=288 // loop_footer_branch
              %726 = sbr.rel target = $region291
            $region296: #{tpu_custom_call.1} parent=288 // loop_exit
              _
          $region289: #{tpu_custom_call.1} parent=273 // pred_fallthru
            _
        $region274: #{tpu_custom_call.1} parent=59 // pred_fallthru
          _
        // Predicated region
        $region275: #{tpu_custom_call.1} parent=59 // pred_check
          %p701 = pneg %p697
        $region276: #{tpu_custom_call.1} parent=59 // pred_check_branch
          %703 = sbr.rel (%p701) target = $region278
        $region277: #{tpu_custom_call.1} parent=59 // pred_region
          %s704 = sshllo.u32 0, 1
          loop: start=0, step=1, limit=1
          $region279: #{tpu_custom_call.1} parent=277 // loop_pre_header
            _
          $region280: #{tpu_custom_call.1} parent=277 // loop_header
            %s706 = sphi 0, %s710
            %p707 = scmp.ge.s32.totalorder %s706, 1
            %s711 = sphi %s693, %s693
            %s712 = sphi %s694, %s694
          $region281: #{tpu_custom_call.1} parent=277 // loop_header_branch
            %709 = sbr.rel (%p707) target = $region285
          $region282: #{tpu_custom_call.1} parent=277 // loop_body
            %v713 = vld [vmem:[%s711] sm:%s704]
            %714 = vst [vmem:[%s712] sm:%s704] %v713
          $region283: #{tpu_custom_call.1} parent=277 // loop_footer
            %s710 = sadd.s32 1, %s706
          $region284: #{tpu_custom_call.1} parent=277 // loop_footer_branch
            %705 = sbr.rel target = $region280
          $region285: #{tpu_custom_call.1} parent=277 // loop_exit
            _
        $region278: #{tpu_custom_call.1} parent=59 // pred_fallthru
          _
        // Predicated region
        $region297: #{tpu_custom_call.1} parent=59 // pred_check
          _
        $region298: #{tpu_custom_call.1} parent=59 // pred_check_branch
          %738 = sbr.rel (0) target = $region300
        $region299: #{tpu_custom_call.1} parent=59 // pred_region
          %739 = vsyncadd %s695, 16
        $region300: #{tpu_custom_call.1} parent=59 // pred_fallthru
          _
        %s740 = sadd.s32 %s355, 4
        %s741 = sld [smem:[#allocation6 + %s740]]
        %s742 = sld [smem:[#allocation7 + %s740]]
        %s743 = scalar_lea.vmem %s2, %s741
        %s744 = scalar_lea.vmem [#allocation2], 4
        %s745 = scalar_lea.sflag [#allocation4], 4
        %p747 = scmp.lt.u32.totalorder 1, 8
        %p748 = pneg %p747
        // Predicated region
        $region301: #{tpu_custom_call.1} parent=59 // pred_check
          _
        $region302: #{tpu_custom_call.1} parent=59 // pred_check_branch
          %750 = sbr.rel (%p747) target = $region304
        $region303: #{tpu_custom_call.1} parent=59 // pred_region
          %s765 = sand.u32 1, 7
          %p766 = scmp.eq.s32.totalorder %s765, 0
          %p767 = pneg %p766
          // Predicated region
          $region316: #{tpu_custom_call.1} parent=303 // pred_check
            _
          $region317: #{tpu_custom_call.1} parent=303 // pred_check_branch
            %769 = sbr.rel (%p766) target = $region319
          $region318: #{tpu_custom_call.1} parent=303 // pred_region
            %s770 = sand.u32 1, 7
            %s771 = ssub.s32 1, %s770
            %s772 = scalar_lea.vmem %s743, %s771
            %s773 = ssub.s32 1, %s770
            %s774 = scalar_lea.vmem %s744, %s773 [#allocation2]
            %s775 = sshllo.u32 0, %s770
            loop: start=0, step=1, limit=1
            $region320: #{tpu_custom_call.1} parent=318 // loop_pre_header
              _
            $region321: #{tpu_custom_call.1} parent=318 // loop_header
              %s777 = sphi 0, %s781
              %p778 = scmp.ge.s32.totalorder %s777, 1
              %s782 = sphi %s772, %s772
              %s783 = sphi %s774, %s774
            $region322: #{tpu_custom_call.1} parent=318 // loop_header_branch
              %780 = sbr.rel (%p778) target = $region326
            $region323: #{tpu_custom_call.1} parent=318 // loop_body
              %v784 = vld [vmem:[%s782] sm:%s775]
              %785 = vst [vmem:[%s783] sm:%s775] %v784
            $region324: #{tpu_custom_call.1} parent=318 // loop_footer
              %s781 = sadd.s32 1, %s777
            $region325: #{tpu_custom_call.1} parent=318 // loop_footer_branch
              %776 = sbr.rel target = $region321
            $region326: #{tpu_custom_call.1} parent=318 // loop_exit
              _
          $region319: #{tpu_custom_call.1} parent=303 // pred_fallthru
            _
        $region304: #{tpu_custom_call.1} parent=59 // pred_fallthru
          _
        // Predicated region
        $region305: #{tpu_custom_call.1} parent=59 // pred_check
          %p751 = pneg %p747
        $region306: #{tpu_custom_call.1} parent=59 // pred_check_branch
          %753 = sbr.rel (%p751) target = $region308
        $region307: #{tpu_custom_call.1} parent=59 // pred_region
          %s754 = sshllo.u32 0, 1
          loop: start=0, step=1, limit=1
          $region309: #{tpu_custom_call.1} parent=307 // loop_pre_header
            _
          $region310: #{tpu_custom_call.1} parent=307 // loop_header
            %s756 = sphi 0, %s760
            %p757 = scmp.ge.s32.totalorder %s756, 1
            %s761 = sphi %s743, %s743
            %s762 = sphi %s744, %s744
          $region311: #{tpu_custom_call.1} parent=307 // loop_header_branch
            %759 = sbr.rel (%p757) target = $region315
          $region312: #{tpu_custom_call.1} parent=307 // loop_body
            %v763 = vld [vmem:[%s761] sm:%s754]
            %764 = vst [vmem:[%s762] sm:%s754] %v763
          $region313: #{tpu_custom_call.1} parent=307 // loop_footer
            %s760 = sadd.s32 1, %s756
          $region314: #{tpu_custom_call.1} parent=307 // loop_footer_branch
            %755 = sbr.rel target = $region310
          $region315: #{tpu_custom_call.1} parent=307 // loop_exit
            _
        $region308: #{tpu_custom_call.1} parent=59 // pred_fallthru
          _
        // Predicated region
        $region327: #{tpu_custom_call.1} parent=59 // pred_check
          _
        $region328: #{tpu_custom_call.1} parent=59 // pred_check_branch
          %788 = sbr.rel (0) target = $region330
        $region329: #{tpu_custom_call.1} parent=59 // pred_region
          %789 = vsyncadd %s745, 16
        $region330: #{tpu_custom_call.1} parent=59 // pred_fallthru
          _
        %s790 = scalar_lea.vmem %s3, %s742
        %s791 = scalar_lea.vmem [#allocation3], 4
        %s792 = scalar_lea.sflag [#allocation4], 12
        %p794 = scmp.lt.u32.totalorder 1, 8
        %p795 = pneg %p794
        // Predicated region
        $region331: #{tpu_custom_call.1} parent=59 // pred_check
          _
        $region332: #{tpu_custom_call.1} parent=59 // pred_check_branch
          %797 = sbr.rel (%p794) target = $region334
        $region333: #{tpu_custom_call.1} parent=59 // pred_region
          %s812 = sand.u32 1, 7
          %p813 = scmp.eq.s32.totalorder %s812, 0
          %p814 = pneg %p813
          // Predicated region
          $region346: #{tpu_custom_call.1} parent=333 // pred_check
            _
          $region347: #{tpu_custom_call.1} parent=333 // pred_check_branch
            %816 = sbr.rel (%p813) target = $region349
          $region348: #{tpu_custom_call.1} parent=333 // pred_region
            %s817 = sand.u32 1, 7
            %s818 = ssub.s32 1, %s817
            %s819 = scalar_lea.vmem %s790, %s818
            %s820 = ssub.s32 1, %s817
            %s821 = scalar_lea.vmem %s791, %s820 [#allocation3]
            %s822 = sshllo.u32 0, %s817
            loop: start=0, step=1, limit=1
            $region350: #{tpu_custom_call.1} parent=348 // loop_pre_header
              _
            $region351: #{tpu_custom_call.1} parent=348 // loop_header
              %s824 = sphi 0, %s828
              %p825 = scmp.ge.s32.totalorder %s824, 1
              %s829 = sphi %s819, %s819
              %s830 = sphi %s821, %s821
            $region352: #{tpu_custom_call.1} parent=348 // loop_header_branch
              %827 = sbr.rel (%p825) target = $region356
            $region353: #{tpu_custom_call.1} parent=348 // loop_body
              %v831 = vld [vmem:[%s829] sm:%s822]
              %832 = vst [vmem:[%s830] sm:%s822] %v831
            $region354: #{tpu_custom_call.1} parent=348 // loop_footer
              %s828 = sadd.s32 1, %s824
            $region355: #{tpu_custom_call.1} parent=348 // loop_footer_branch
              %823 = sbr.rel target = $region351
            $region356: #{tpu_custom_call.1} parent=348 // loop_exit
              _
          $region349: #{tpu_custom_call.1} parent=333 // pred_fallthru
            _
        $region334: #{tpu_custom_call.1} parent=59 // pred_fallthru
          _
        // Predicated region
        $region335: #{tpu_custom_call.1} parent=59 // pred_check
          %p798 = pneg %p794
        $region336: #{tpu_custom_call.1} parent=59 // pred_check_branch
          %800 = sbr.rel (%p798) target = $region338
        $region337: #{tpu_custom_call.1} parent=59 // pred_region
          %s801 = sshllo.u32 0, 1
          loop: start=0, step=1, limit=1
          $region339: #{tpu_custom_call.1} parent=337 // loop_pre_header
            _
          $region340: #{tpu_custom_call.1} parent=337 // loop_header
            %s803 = sphi 0, %s807
            %p804 = scmp.ge.s32.totalorder %s803, 1
            %s808 = sphi %s790, %s790
            %s809 = sphi %s791, %s791
          $region341: #{tpu_custom_call.1} parent=337 // loop_header_branch
            %806 = sbr.rel (%p804) target = $region345
          $region342: #{tpu_custom_call.1} parent=337 // loop_body
            %v810 = vld [vmem:[%s808] sm:%s801]
            %811 = vst [vmem:[%s809] sm:%s801] %v810
          $region343: #{tpu_custom_call.1} parent=337 // loop_footer
            %s807 = sadd.s32 1, %s803
          $region344: #{tpu_custom_call.1} parent=337 // loop_footer_branch
            %802 = sbr.rel target = $region340
          $region345: #{tpu_custom_call.1} parent=337 // loop_exit
            _
        $region338: #{tpu_custom_call.1} parent=59 // pred_fallthru
          _
        // Predicated region
        $region357: #{tpu_custom_call.1} parent=59 // pred_check
          _
        $region358: #{tpu_custom_call.1} parent=59 // pred_check_branch
          %835 = sbr.rel (0) target = $region360
        $region359: #{tpu_custom_call.1} parent=59 // pred_region
          %836 = vsyncadd %s792, 16
        $region360: #{tpu_custom_call.1} parent=59 // pred_fallthru
          _
        %s837 = sadd.s32 %s355, 5
        %s838 = sld [smem:[#allocation6 + %s837]]
        %s839 = sld [smem:[#allocation7 + %s837]]
        %s840 = scalar_lea.vmem %s2, %s838
        %s841 = scalar_lea.vmem [#allocation2], 5
        %s842 = scalar_lea.sflag [#allocation4], 5
        %p844 = scmp.lt.u32.totalorder 1, 8
        %p845 = pneg %p844
        // Predicated region
        $region361: #{tpu_custom_call.1} parent=59 // pred_check
          _
        $region362: #{tpu_custom_call.1} parent=59 // pred_check_branch
          %847 = sbr.rel (%p844) target = $region364
        $region363: #{tpu_custom_call.1} parent=59 // pred_region
          %s862 = sand.u32 1, 7
          %p863 = scmp.eq.s32.totalorder %s862, 0
          %p864 = pneg %p863
          // Predicated region
          $region376: #{tpu_custom_call.1} parent=363 // pred_check
            _
          $region377: #{tpu_custom_call.1} parent=363 // pred_check_branch
            %866 = sbr.rel (%p863) target = $region379
          $region378: #{tpu_custom_call.1} parent=363 // pred_region
            %s867 = sand.u32 1, 7
            %s868 = ssub.s32 1, %s867
            %s869 = scalar_lea.vmem %s840, %s868
            %s870 = ssub.s32 1, %s867
            %s871 = scalar_lea.vmem %s841, %s870 [#allocation2]
            %s872 = sshllo.u32 0, %s867
            loop: start=0, step=1, limit=1
            $region380: #{tpu_custom_call.1} parent=378 // loop_pre_header
              _
            $region381: #{tpu_custom_call.1} parent=378 // loop_header
              %s874 = sphi 0, %s878
              %p875 = scmp.ge.s32.totalorder %s874, 1
              %s879 = sphi %s869, %s869
              %s880 = sphi %s871, %s871
            $region382: #{tpu_custom_call.1} parent=378 // loop_header_branch
              %877 = sbr.rel (%p875) target = $region386
            $region383: #{tpu_custom_call.1} parent=378 // loop_body
              %v881 = vld [vmem:[%s879] sm:%s872]
              %882 = vst [vmem:[%s880] sm:%s872] %v881
            $region384: #{tpu_custom_call.1} parent=378 // loop_footer
              %s878 = sadd.s32 1, %s874
            $region385: #{tpu_custom_call.1} parent=378 // loop_footer_branch
              %873 = sbr.rel target = $region381
            $region386: #{tpu_custom_call.1} parent=378 // loop_exit
              _
          $region379: #{tpu_custom_call.1} parent=363 // pred_fallthru
            _
        $region364: #{tpu_custom_call.1} parent=59 // pred_fallthru
          _
        // Predicated region
        $region365: #{tpu_custom_call.1} parent=59 // pred_check
          %p848 = pneg %p844
        $region366: #{tpu_custom_call.1} parent=59 // pred_check_branch
          %850 = sbr.rel (%p848) target = $region368
        $region367: #{tpu_custom_call.1} parent=59 // pred_region
          %s851 = sshllo.u32 0, 1
          loop: start=0, step=1, limit=1
          $region369: #{tpu_custom_call.1} parent=367 // loop_pre_header
            _
          $region370: #{tpu_custom_call.1} parent=367 // loop_header
            %s853 = sphi 0, %s857
            %p854 = scmp.ge.s32.totalorder %s853, 1
            %s858 = sphi %s840, %s840
            %s859 = sphi %s841, %s841
          $region371: #{tpu_custom_call.1} parent=367 // loop_header_branch
            %856 = sbr.rel (%p854) target = $region375
          $region372: #{tpu_custom_call.1} parent=367 // loop_body
            %v860 = vld [vmem:[%s858] sm:%s851]
            %861 = vst [vmem:[%s859] sm:%s851] %v860
          $region373: #{tpu_custom_call.1} parent=367 // loop_footer
            %s857 = sadd.s32 1, %s853
          $region374: #{tpu_custom_call.1} parent=367 // loop_footer_branch
            %852 = sbr.rel target = $region370
          $region375: #{tpu_custom_call.1} parent=367 // loop_exit
            _
        $region368: #{tpu_custom_call.1} parent=59 // pred_fallthru
          _
        // Predicated region
        $region387: #{tpu_custom_call.1} parent=59 // pred_check
          _
        $region388: #{tpu_custom_call.1} parent=59 // pred_check_branch
          %885 = sbr.rel (0) target = $region390
        $region389: #{tpu_custom_call.1} parent=59 // pred_region
          %886 = vsyncadd %s842, 16
        $region390: #{tpu_custom_call.1} parent=59 // pred_fallthru
          _
        %s887 = scalar_lea.vmem %s3, %s839
        %s888 = scalar_lea.vmem [#allocation3], 5
        %s889 = scalar_lea.sflag [#allocation4], 13
        %p891 = scmp.lt.u32.totalorder 1, 8
        %p892 = pneg %p891
        // Predicated region
        $region391: #{tpu_custom_call.1} parent=59 // pred_check
          _
        $region392: #{tpu_custom_call.1} parent=59 // pred_check_branch
          %894 = sbr.rel (%p891) target = $region394
        $region393: #{tpu_custom_call.1} parent=59 // pred_region
          %s909 = sand.u32 1, 7
          %p910 = scmp.eq.s32.totalorder %s909, 0
          %p911 = pneg %p910
          // Predicated region
          $region406: #{tpu_custom_call.1} parent=393 // pred_check
            _
          $region407: #{tpu_custom_call.1} parent=393 // pred_check_branch
            %913 = sbr.rel (%p910) target = $region409
          $region408: #{tpu_custom_call.1} parent=393 // pred_region
            %s914 = sand.u32 1, 7
            %s915 = ssub.s32 1, %s914
            %s916 = scalar_lea.vmem %s887, %s915
            %s917 = ssub.s32 1, %s914
            %s918 = scalar_lea.vmem %s888, %s917 [#allocation3]
            %s919 = sshllo.u32 0, %s914
            loop: start=0, step=1, limit=1
            $region410: #{tpu_custom_call.1} parent=408 // loop_pre_header
              _
            $region411: #{tpu_custom_call.1} parent=408 // loop_header
              %s921 = sphi 0, %s925
              %p922 = scmp.ge.s32.totalorder %s921, 1
              %s926 = sphi %s916, %s916
              %s927 = sphi %s918, %s918
            $region412: #{tpu_custom_call.1} parent=408 // loop_header_branch
              %924 = sbr.rel (%p922) target = $region416
            $region413: #{tpu_custom_call.1} parent=408 // loop_body
              %v928 = vld [vmem:[%s926] sm:%s919]
              %929 = vst [vmem:[%s927] sm:%s919] %v928
            $region414: #{tpu_custom_call.1} parent=408 // loop_footer
              %s925 = sadd.s32 1, %s921
            $region415: #{tpu_custom_call.1} parent=408 // loop_footer_branch
              %920 = sbr.rel target = $region411
            $region416: #{tpu_custom_call.1} parent=408 // loop_exit
              _
          $region409: #{tpu_custom_call.1} parent=393 // pred_fallthru
            _
        $region394: #{tpu_custom_call.1} parent=59 // pred_fallthru
          _
        // Predicated region
        $region395: #{tpu_custom_call.1} parent=59 // pred_check
          %p895 = pneg %p891
        $region396: #{tpu_custom_call.1} parent=59 // pred_check_branch
          %897 = sbr.rel (%p895) target = $region398
        $region397: #{tpu_custom_call.1} parent=59 // pred_region
          %s898 = sshllo.u32 0, 1
          loop: start=0, step=1, limit=1
          $region399: #{tpu_custom_call.1} parent=397 // loop_pre_header
            _
          $region400: #{tpu_custom_call.1} parent=397 // loop_header
            %s900 = sphi 0, %s904
            %p901 = scmp.ge.s32.totalorder %s900, 1
            %s905 = sphi %s887, %s887
            %s906 = sphi %s888, %s888
          $region401: #{tpu_custom_call.1} parent=397 // loop_header_branch
            %903 = sbr.rel (%p901) target = $region405
          $region402: #{tpu_custom_call.1} parent=397 // loop_body
            %v907 = vld [vmem:[%s905] sm:%s898]
            %908 = vst [vmem:[%s906] sm:%s898] %v907
          $region403: #{tpu_custom_call.1} parent=397 // loop_footer
            %s904 = sadd.s32 1, %s900
          $region404: #{tpu_custom_call.1} parent=397 // loop_footer_branch
            %899 = sbr.rel target = $region400
          $region405: #{tpu_custom_call.1} parent=397 // loop_exit
            _
        $region398: #{tpu_custom_call.1} parent=59 // pred_fallthru
          _
        // Predicated region
        $region417: #{tpu_custom_call.1} parent=59 // pred_check
          _
        $region418: #{tpu_custom_call.1} parent=59 // pred_check_branch
          %932 = sbr.rel (0) target = $region420
        $region419: #{tpu_custom_call.1} parent=59 // pred_region
          %933 = vsyncadd %s889, 16
        $region420: #{tpu_custom_call.1} parent=59 // pred_fallthru
          _
        %s934 = sadd.s32 %s355, 6
        %s935 = sld [smem:[#allocation6 + %s934]]
        %s936 = sld [smem:[#allocation7 + %s934]]
        %s937 = scalar_lea.vmem %s2, %s935
        %s938 = scalar_lea.vmem [#allocation2], 6
        %s939 = scalar_lea.sflag [#allocation4], 6
        %p941 = scmp.lt.u32.totalorder 1, 8
        %p942 = pneg %p941
        // Predicated region
        $region421: #{tpu_custom_call.1} parent=59 // pred_check
          _
        $region422: #{tpu_custom_call.1} parent=59 // pred_check_branch
          %944 = sbr.rel (%p941) target = $region424
        $region423: #{tpu_custom_call.1} parent=59 // pred_region
          %s959 = sand.u32 1, 7
          %p960 = scmp.eq.s32.totalorder %s959, 0
          %p961 = pneg %p960
          // Predicated region
          $region436: #{tpu_custom_call.1} parent=423 // pred_check
            _
          $region437: #{tpu_custom_call.1} parent=423 // pred_check_branch
            %963 = sbr.rel (%p960) target = $region439
          $region438: #{tpu_custom_call.1} parent=423 // pred_region
            %s964 = sand.u32 1, 7
            %s965 = ssub.s32 1, %s964
            %s966 = scalar_lea.vmem %s937, %s965
            %s967 = ssub.s32 1, %s964
            %s968 = scalar_lea.vmem %s938, %s967 [#allocation2]
            %s969 = sshllo.u32 0, %s964
            loop: start=0, step=1, limit=1
            $region440: #{tpu_custom_call.1} parent=438 // loop_pre_header
              _
            $region441: #{tpu_custom_call.1} parent=438 // loop_header
              %s971 = sphi 0, %s975
              %p972 = scmp.ge.s32.totalorder %s971, 1
              %s976 = sphi %s966, %s966
              %s977 = sphi %s968, %s968
            $region442: #{tpu_custom_call.1} parent=438 // loop_header_branch
              %974 = sbr.rel (%p972) target = $region446
            $region443: #{tpu_custom_call.1} parent=438 // loop_body
              %v978 = vld [vmem:[%s976] sm:%s969]
              %979 = vst [vmem:[%s977] sm:%s969] %v978
            $region444: #{tpu_custom_call.1} parent=438 // loop_footer
              %s975 = sadd.s32 1, %s971
            $region445: #{tpu_custom_call.1} parent=438 // loop_footer_branch
              %970 = sbr.rel target = $region441
            $region446: #{tpu_custom_call.1} parent=438 // loop_exit
              _
          $region439: #{tpu_custom_call.1} parent=423 // pred_fallthru
            _
        $region424: #{tpu_custom_call.1} parent=59 // pred_fallthru
          _
        // Predicated region
        $region425: #{tpu_custom_call.1} parent=59 // pred_check
          %p945 = pneg %p941
        $region426: #{tpu_custom_call.1} parent=59 // pred_check_branch
          %947 = sbr.rel (%p945) target = $region428
        $region427: #{tpu_custom_call.1} parent=59 // pred_region
          %s948 = sshllo.u32 0, 1
          loop: start=0, step=1, limit=1
          $region429: #{tpu_custom_call.1} parent=427 // loop_pre_header
            _
          $region430: #{tpu_custom_call.1} parent=427 // loop_header
            %s950 = sphi 0, %s954
            %p951 = scmp.ge.s32.totalorder %s950, 1
            %s955 = sphi %s937, %s937
            %s956 = sphi %s938, %s938
          $region431: #{tpu_custom_call.1} parent=427 // loop_header_branch
            %953 = sbr.rel (%p951) target = $region435
          $region432: #{tpu_custom_call.1} parent=427 // loop_body
            %v957 = vld [vmem:[%s955] sm:%s948]
            %958 = vst [vmem:[%s956] sm:%s948] %v957
          $region433: #{tpu_custom_call.1} parent=427 // loop_footer
            %s954 = sadd.s32 1, %s950
          $region434: #{tpu_custom_call.1} parent=427 // loop_footer_branch
            %949 = sbr.rel target = $region430
          $region435: #{tpu_custom_call.1} parent=427 // loop_exit
            _
        $region428: #{tpu_custom_call.1} parent=59 // pred_fallthru
          _
        // Predicated region
        $region447: #{tpu_custom_call.1} parent=59 // pred_check
          _
        $region448: #{tpu_custom_call.1} parent=59 // pred_check_branch
          %982 = sbr.rel (0) target = $region450
        $region449: #{tpu_custom_call.1} parent=59 // pred_region
          %983 = vsyncadd %s939, 16
        $region450: #{tpu_custom_call.1} parent=59 // pred_fallthru
          _
        %s984 = scalar_lea.vmem %s3, %s936
        %s985 = scalar_lea.vmem [#allocation3], 6
        %s986 = scalar_lea.sflag [#allocation4], 14
        %p988 = scmp.lt.u32.totalorder 1, 8
        %p989 = pneg %p988
        // Predicated region
        $region451: #{tpu_custom_call.1} parent=59 // pred_check
          _
        $region452: #{tpu_custom_call.1} parent=59 // pred_check_branch
          %991 = sbr.rel (%p988) target = $region454
        $region453: #{tpu_custom_call.1} parent=59 // pred_region
          %s1006 = sand.u32 1, 7
          %p1007 = scmp.eq.s32.totalorder %s1006, 0
          %p1008 = pneg %p1007
          // Predicated region
          $region466: #{tpu_custom_call.1} parent=453 // pred_check
            _
          $region467: #{tpu_custom_call.1} parent=453 // pred_check_branch
            %1010 = sbr.rel (%p1007) target = $region469
          $region468: #{tpu_custom_call.1} parent=453 // pred_region
            %s1011 = sand.u32 1, 7
            %s1012 = ssub.s32 1, %s1011
            %s1013 = scalar_lea.vmem %s984, %s1012
            %s1014 = ssub.s32 1, %s1011
            %s1015 = scalar_lea.vmem %s985, %s1014 [#allocation3]
            %s1016 = sshllo.u32 0, %s1011
            loop: start=0, step=1, limit=1
            $region470: #{tpu_custom_call.1} parent=468 // loop_pre_header
              _
            $region471: #{tpu_custom_call.1} parent=468 // loop_header
              %s1018 = sphi 0, %s1022
              %p1019 = scmp.ge.s32.totalorder %s1018, 1
              %s1023 = sphi %s1013, %s1013
              %s1024 = sphi %s1015, %s1015
            $region472: #{tpu_custom_call.1} parent=468 // loop_header_branch
              %1021 = sbr.rel (%p1019) target = $region476
            $region473: #{tpu_custom_call.1} parent=468 // loop_body
              %v1025 = vld [vmem:[%s1023] sm:%s1016]
              %1026 = vst [vmem:[%s1024] sm:%s1016] %v1025
            $region474: #{tpu_custom_call.1} parent=468 // loop_footer
              %s1022 = sadd.s32 1, %s1018
            $region475: #{tpu_custom_call.1} parent=468 // loop_footer_branch
              %1017 = sbr.rel target = $region471
            $region476: #{tpu_custom_call.1} parent=468 // loop_exit
              _
          $region469: #{tpu_custom_call.1} parent=453 // pred_fallthru
            _
        $region454: #{tpu_custom_call.1} parent=59 // pred_fallthru
          _
        // Predicated region
        $region455: #{tpu_custom_call.1} parent=59 // pred_check
          %p992 = pneg %p988
        $region456: #{tpu_custom_call.1} parent=59 // pred_check_branch
          %994 = sbr.rel (%p992) target = $region458
        $region457: #{tpu_custom_call.1} parent=59 // pred_region
          %s995 = sshllo.u32 0, 1
          loop: start=0, step=1, limit=1
          $region459: #{tpu_custom_call.1} parent=457 // loop_pre_header
            _
          $region460: #{tpu_custom_call.1} parent=457 // loop_header
            %s997 = sphi 0, %s1001
            %p998 = scmp.ge.s32.totalorder %s997, 1
            %s1002 = sphi %s984, %s984
            %s1003 = sphi %s985, %s985
          $region461: #{tpu_custom_call.1} parent=457 // loop_header_branch
            %1000 = sbr.rel (%p998) target = $region465
          $region462: #{tpu_custom_call.1} parent=457 // loop_body
            %v1004 = vld [vmem:[%s1002] sm:%s995]
            %1005 = vst [vmem:[%s1003] sm:%s995] %v1004
          $region463: #{tpu_custom_call.1} parent=457 // loop_footer
            %s1001 = sadd.s32 1, %s997
          $region464: #{tpu_custom_call.1} parent=457 // loop_footer_branch
            %996 = sbr.rel target = $region460
          $region465: #{tpu_custom_call.1} parent=457 // loop_exit
            _
        $region458: #{tpu_custom_call.1} parent=59 // pred_fallthru
          _
        // Predicated region
        $region477: #{tpu_custom_call.1} parent=59 // pred_check
          _
        $region478: #{tpu_custom_call.1} parent=59 // pred_check_branch
          %1029 = sbr.rel (0) target = $region480
        $region479: #{tpu_custom_call.1} parent=59 // pred_region
          %1030 = vsyncadd %s986, 16
        $region480: #{tpu_custom_call.1} parent=59 // pred_fallthru
          _
        %s1031 = sadd.s32 %s355, 7
        %s1032 = sld [smem:[#allocation6 + %s1031]]
        %s1033 = sld [smem:[#allocation7 + %s1031]]
        %s1034 = scalar_lea.vmem %s2, %s1032
        %s1035 = scalar_lea.vmem [#allocation2], 7
        %s1036 = scalar_lea.sflag [#allocation4], 7
        %p1038 = scmp.lt.u32.totalorder 1, 8
        %p1039 = pneg %p1038
        // Predicated region
        $region481: #{tpu_custom_call.1} parent=59 // pred_check
          _
        $region482: #{tpu_custom_call.1} parent=59 // pred_check_branch
          %1041 = sbr.rel (%p1038) target = $region484
        $region483: #{tpu_custom_call.1} parent=59 // pred_region
          %s1056 = sand.u32 1, 7
          %p1057 = scmp.eq.s32.totalorder %s1056, 0
          %p1058 = pneg %p1057
          // Predicated region
          $region496: #{tpu_custom_call.1} parent=483 // pred_check
            _
          $region497: #{tpu_custom_call.1} parent=483 // pred_check_branch
            %1060 = sbr.rel (%p1057) target = $region499
          $region498: #{tpu_custom_call.1} parent=483 // pred_region
            %s1061 = sand.u32 1, 7
            %s1062 = ssub.s32 1, %s1061
            %s1063 = scalar_lea.vmem %s1034, %s1062
            %s1064 = ssub.s32 1, %s1061
            %s1065 = scalar_lea.vmem %s1035, %s1064 [#allocation2]
            %s1066 = sshllo.u32 0, %s1061
            loop: start=0, step=1, limit=1
            $region500: #{tpu_custom_call.1} parent=498 // loop_pre_header
              _
            $region501: #{tpu_custom_call.1} parent=498 // loop_header
              %s1068 = sphi 0, %s1072
              %p1069 = scmp.ge.s32.totalorder %s1068, 1
              %s1073 = sphi %s1063, %s1063
              %s1074 = sphi %s1065, %s1065
            $region502: #{tpu_custom_call.1} parent=498 // loop_header_branch
              %1071 = sbr.rel (%p1069) target = $region506
            $region503: #{tpu_custom_call.1} parent=498 // loop_body
              %v1075 = vld [vmem:[%s1073] sm:%s1066]
              %1076 = vst [vmem:[%s1074] sm:%s1066] %v1075
            $region504: #{tpu_custom_call.1} parent=498 // loop_footer
              %s1072 = sadd.s32 1, %s1068
            $region505: #{tpu_custom_call.1} parent=498 // loop_footer_branch
              %1067 = sbr.rel target = $region501
            $region506: #{tpu_custom_call.1} parent=498 // loop_exit
              _
          $region499: #{tpu_custom_call.1} parent=483 // pred_fallthru
            _
        $region484: #{tpu_custom_call.1} parent=59 // pred_fallthru
          _
        // Predicated region
        $region485: #{tpu_custom_call.1} parent=59 // pred_check
          %p1042 = pneg %p1038
        $region486: #{tpu_custom_call.1} parent=59 // pred_check_branch
          %1044 = sbr.rel (%p1042) target = $region488
        $region487: #{tpu_custom_call.1} parent=59 // pred_region
          %s1045 = sshllo.u32 0, 1
          loop: start=0, step=1, limit=1
          $region489: #{tpu_custom_call.1} parent=487 // loop_pre_header
            _
          $region490: #{tpu_custom_call.1} parent=487 // loop_header
            %s1047 = sphi 0, %s1051
            %p1048 = scmp.ge.s32.totalorder %s1047, 1
            %s1052 = sphi %s1034, %s1034
            %s1053 = sphi %s1035, %s1035
          $region491: #{tpu_custom_call.1} parent=487 // loop_header_branch
            %1050 = sbr.rel (%p1048) target = $region495
          $region492: #{tpu_custom_call.1} parent=487 // loop_body
            %v1054 = vld [vmem:[%s1052] sm:%s1045]
            %1055 = vst [vmem:[%s1053] sm:%s1045] %v1054
          $region493: #{tpu_custom_call.1} parent=487 // loop_footer
            %s1051 = sadd.s32 1, %s1047
          $region494: #{tpu_custom_call.1} parent=487 // loop_footer_branch
            %1046 = sbr.rel target = $region490
          $region495: #{tpu_custom_call.1} parent=487 // loop_exit
            _
        $region488: #{tpu_custom_call.1} parent=59 // pred_fallthru
          _
        // Predicated region
        $region507: #{tpu_custom_call.1} parent=59 // pred_check
          _
        $region508: #{tpu_custom_call.1} parent=59 // pred_check_branch
          %1079 = sbr.rel (0) target = $region510
        $region509: #{tpu_custom_call.1} parent=59 // pred_region
          %1080 = vsyncadd %s1036, 16
        $region510: #{tpu_custom_call.1} parent=59 // pred_fallthru
          _
        %s1081 = scalar_lea.vmem %s3, %s1033
        %s1082 = scalar_lea.vmem [#allocation3], 7
        %s1083 = scalar_lea.sflag [#allocation4], 15
        %p1085 = scmp.lt.u32.totalorder 1, 8
        %p1086 = pneg %p1085
        // Predicated region
        $region511: #{tpu_custom_call.1} parent=59 // pred_check
          _
        $region512: #{tpu_custom_call.1} parent=59 // pred_check_branch
          %1088 = sbr.rel (%p1085) target = $region514
        $region513: #{tpu_custom_call.1} parent=59 // pred_region
          %s1103 = sand.u32 1, 7
          %p1104 = scmp.eq.s32.totalorder %s1103, 0
          %p1105 = pneg %p1104
          // Predicated region
          $region526: #{tpu_custom_call.1} parent=513 // pred_check
            _
          $region527: #{tpu_custom_call.1} parent=513 // pred_check_branch
            %1107 = sbr.rel (%p1104) target = $region529
          $region528: #{tpu_custom_call.1} parent=513 // pred_region
            %s1108 = sand.u32 1, 7
            %s1109 = ssub.s32 1, %s1108
            %s1110 = scalar_lea.vmem %s1081, %s1109
            %s1111 = ssub.s32 1, %s1108
            %s1112 = scalar_lea.vmem %s1082, %s1111 [#allocation3]
            %s1113 = sshllo.u32 0, %s1108
            loop: start=0, step=1, limit=1
            $region530: #{tpu_custom_call.1} parent=528 // loop_pre_header
              _
            $region531: #{tpu_custom_call.1} parent=528 // loop_header
              %s1115 = sphi 0, %s1119
              %p1116 = scmp.ge.s32.totalorder %s1115, 1
              %s1120 = sphi %s1110, %s1110
              %s1121 = sphi %s1112, %s1112
            $region532: #{tpu_custom_call.1} parent=528 // loop_header_branch
              %1118 = sbr.rel (%p1116) target = $region536
            $region533: #{tpu_custom_call.1} parent=528 // loop_body
              %v1122 = vld [vmem:[%s1120] sm:%s1113]
              %1123 = vst [vmem:[%s1121] sm:%s1113] %v1122
            $region534: #{tpu_custom_call.1} parent=528 // loop_footer
              %s1119 = sadd.s32 1, %s1115
            $region535: #{tpu_custom_call.1} parent=528 // loop_footer_branch
              %1114 = sbr.rel target = $region531
            $region536: #{tpu_custom_call.1} parent=528 // loop_exit
              _
          $region529: #{tpu_custom_call.1} parent=513 // pred_fallthru
            _
        $region514: #{tpu_custom_call.1} parent=59 // pred_fallthru
          _
        // Predicated region
        $region515: #{tpu_custom_call.1} parent=59 // pred_check
          %p1089 = pneg %p1085
        $region516: #{tpu_custom_call.1} parent=59 // pred_check_branch
          %1091 = sbr.rel (%p1089) target = $region518
        $region517: #{tpu_custom_call.1} parent=59 // pred_region
          %s1092 = sshllo.u32 0, 1
          loop: start=0, step=1, limit=1
          $region519: #{tpu_custom_call.1} parent=517 // loop_pre_header
            _
          $region520: #{tpu_custom_call.1} parent=517 // loop_header
            %s1094 = sphi 0, %s1098
            %p1095 = scmp.ge.s32.totalorder %s1094, 1
            %s1099 = sphi %s1081, %s1081
            %s1100 = sphi %s1082, %s1082
          $region521: #{tpu_custom_call.1} parent=517 // loop_header_branch
            %1097 = sbr.rel (%p1095) target = $region525
          $region522: #{tpu_custom_call.1} parent=517 // loop_body
            %v1101 = vld [vmem:[%s1099] sm:%s1092]
            %1102 = vst [vmem:[%s1100] sm:%s1092] %v1101
          $region523: #{tpu_custom_call.1} parent=517 // loop_footer
            %s1098 = sadd.s32 1, %s1094
          $region524: #{tpu_custom_call.1} parent=517 // loop_footer_branch
            %1093 = sbr.rel target = $region520
          $region525: #{tpu_custom_call.1} parent=517 // loop_exit
            _
        $region518: #{tpu_custom_call.1} parent=59 // pred_fallthru
          _
        // Predicated region
        $region537: #{tpu_custom_call.1} parent=59 // pred_check
          _
        $region538: #{tpu_custom_call.1} parent=59 // pred_check_branch
          %1126 = sbr.rel (0) target = $region540
        $region539: #{tpu_custom_call.1} parent=59 // pred_region
          %1127 = vsyncadd %s1083, 16
        $region540: #{tpu_custom_call.1} parent=59 // pred_fallthru
          _
        %s1128 = smul.u32 1, 1
        %s1129 = sshll.u32 %s1128, 4
        %1130 = dma.done [#allocation4], %s1129
        %s1131 = sshll.u32 %s1128, 4
        %1132 = dma.done %s404, %s1131
        %s1133 = sshll.u32 %s1128, 4
        %1134 = dma.done %s454, %s1133
        %s1135 = sshll.u32 %s1128, 4
        %1136 = dma.done %s501, %s1135
        %s1137 = sshll.u32 %s1128, 4
        %1138 = dma.done %s551, %s1137
        %s1139 = sshll.u32 %s1128, 4
        %1140 = dma.done %s598, %s1139
        %s1141 = sshll.u32 %s1128, 4
        %1142 = dma.done %s648, %s1141
        %s1143 = sshll.u32 %s1128, 4
        %1144 = dma.done %s695, %s1143
        %s1145 = sshll.u32 %s1128, 4
        %1146 = dma.done %s745, %s1145
        %s1147 = sshll.u32 %s1128, 4
        %1148 = dma.done %s792, %s1147
        %s1149 = sshll.u32 %s1128, 4
        %1150 = dma.done %s842, %s1149
        %s1151 = sshll.u32 %s1128, 4
        %1152 = dma.done %s889, %s1151
        %s1153 = sshll.u32 %s1128, 4
        %1154 = dma.done %s939, %s1153
        %s1155 = sshll.u32 %s1128, 4
        %1156 = dma.done %s986, %s1155
        %s1157 = sshll.u32 %s1128, 4
        %1158 = dma.done %s1036, %s1157
        %s1159 = sshll.u32 %s1128, 4
        %1160 = dma.done %s1083, %s1159
        %v1161 = vld [vmem:[#allocation2] sm:$0xff]
        %v1162 = vld [vmem:[#allocation3] sm:$0xff]
        %v1163 = vmul.f32 %v1161, %v1162
        %v1164 = vpack.c.bf16 %v1161, %v1161
        %v1165 = vld [vmem:[%s4] sm:$0xf]
        %v1166 = vpack.c.bf16 %v1162, %v1162
        %v1167 = vld [vmem:[%s5] sm:$0xf]
        %1169 = vrot.lane.b32.xlu0 %v1166, 120
        %v1170 = vpop.permute.xlu0 %1169
        %vm1171 = vcmask 64512
        %v1173 = vsel %vm1171, %v1170, 0
        %vm1175 = vcmask 1043456
        %v1177 = vsel %vm1175, %v1167, 0
        %1179 = vmatprep.subr.bf16.mxu0 0
        %1180 = vmatpush1.bf16.msra.mxu0 %v1177
        %1181 = vmatprep.subr.bf16.mxu0 0
        %1182 = vmatpush1.bf16.msra.mxu0 0
        %1183 = vmatprep.subr.bf16.mxu0 0
        %1184 = vmatpush1.bf16.msra.mxu0 0
        %1185 = vmatprep.subr.bf16.mxu0 0
        %1186 = vmatpush1.bf16.msra.mxu0 0
        %1187 = vmatprep.subr.bf16.mxu0 0
        %1188 = vmatpush1.bf16.msra.mxu0 0
        %1189 = vmatprep.subr.bf16.mxu0 0
        %1190 = vmatpush1.bf16.msra.mxu0 0
        %1191 = vmatprep.subr.bf16.mxu0 0
        %1192 = vmatpush1.bf16.msra.mxu0 0
        %1193 = vmatprep.subr.bf16.mxu0 0
        %1194 = vmatpush1.bf16.msra.mxu0 0
        %1195 = vmatprep.subr.bf16.mxu0 0
        %1196 = vmatpush1.bf16.msra.mxu0 0
        %1197 = vmatprep.subr.bf16.mxu0 0
        %1198 = vmatpush1.bf16.msra.mxu0 0
        %1199 = vmatprep.subr.bf16.mxu0 0
        %1200 = vmatpush1.bf16.msra.mxu0 0
        %1201 = vmatprep.subr.bf16.mxu0 0
        %1202 = vmatpush1.bf16.msra.mxu0 0
        %1203 = vmatprep.subr.bf16.mxu0 0
        %1204 = vmatpush1.bf16.msra.mxu0 0
        %1205 = vmatprep.subr.bf16.mxu0 0
        %1206 = vmatpush1.bf16.msra.mxu0 0
        %1207 = vmatprep.subr.bf16.mxu0 0
        %1208 = vmatpush1.bf16.msra.mxu0 0
        %1209 = vmatprep.subr.bf16.mxu0 0
        %1210 = vmatpush1.bf16.msra.mxu0 0
        %1211 = vmatprep.mubr.bf16.mxu0 0
        %1212 = vmatmul.mubr.bf16.gmra.mrb[0].mxu0 %v1173
        %v1213 = vpop.f32.mrb[0].mxu0
        %v1214 = vadd.f32 0.0, %v1213
        %v1215 = vpop.f32.mrb[0].mxu0
        %v1216 = vpop.f32.mrb[0].mxu0
        %v1217 = vpop.f32.mrb[0].mxu0
        %1218 = vdwg.mxu0
        %1220 = vrot.lane.b32.xlu0 %v1164, 120
        %v1221 = vpop.permute.xlu0 %1220
        %v1223 = vsel %vm1171, %v1221, 0
        %v1226 = vsel %vm1175, %v1165, 0
        %1228 = vmatprep.subr.bf16.mxu0 0
        %1229 = vmatpush1.bf16.msra.mxu0 %v1226
        %1230 = vmatprep.subr.bf16.mxu0 0
        %1231 = vmatpush1.bf16.msra.mxu0 0
        %1232 = vmatprep.subr.bf16.mxu0 0
        %1233 = vmatpush1.bf16.msra.mxu0 0
        %1234 = vmatprep.subr.bf16.mxu0 0
        %1235 = vmatpush1.bf16.msra.mxu0 0
        %1236 = vmatprep.subr.bf16.mxu0 0
        %1237 = vmatpush1.bf16.msra.mxu0 0
        %1238 = vmatprep.subr.bf16.mxu0 0
        %1239 = vmatpush1.bf16.msra.mxu0 0
        %1240 = vmatprep.subr.bf16.mxu0 0
        %1241 = vmatpush1.bf16.msra.mxu0 0
        %1242 = vmatprep.subr.bf16.mxu0 0
        %1243 = vmatpush1.bf16.msra.mxu0 0
        %1244 = vmatprep.subr.bf16.mxu0 0
        %1245 = vmatpush1.bf16.msra.mxu0 0
        %1246 = vmatprep.subr.bf16.mxu0 0
        %1247 = vmatpush1.bf16.msra.mxu0 0
        %1248 = vmatprep.subr.bf16.mxu0 0
        %1249 = vmatpush1.bf16.msra.mxu0 0
        %1250 = vmatprep.subr.bf16.mxu0 0
        %1251 = vmatpush1.bf16.msra.mxu0 0
        %1252 = vmatprep.subr.bf16.mxu0 0
        %1253 = vmatpush1.bf16.msra.mxu0 0
        %1254 = vmatprep.subr.bf16.mxu0 0
        %1255 = vmatpush1.bf16.msra.mxu0 0
        %1256 = vmatprep.subr.bf16.mxu0 0
        %1257 = vmatpush1.bf16.msra.mxu0 0
        %1258 = vmatprep.subr.bf16.mxu0 0
        %1259 = vmatpush1.bf16.msra.mxu0 0
        %1260 = vmatprep.mubr.bf16.mxu0 0
        %1261 = vmatmul.mubr.bf16.gmra.mrb[0].mxu0 %v1223
        %v1262 = vpop.f32.mrb[0].mxu0
        %v1263 = vadd.f32 %v1214, %v1262
        %v1264 = vpop.f32.mrb[0].mxu0
        %v1265 = vpop.f32.mrb[0].mxu0
        %v1266 = vpop.f32.mrb[0].mxu0
        %1267 = vdwg.mxu0
        %v1268 = vld [vmem:[%s6] sm:$0x1]
        %v1270 = vlaneseq
        %v1271 = vshrl.u32 %v1270, 7
        %v1272 = vsub.s32 0, %v1271
        %v1273 = vrot.slane %v1268, %v1272
        %v1275 = vadd.f32 %v1263, %v1273
        %v1276 = vmax.f32 %v1275, 0.0
        %v1277 = vpack.c.bf16 %v1276, %v1276
        %v1278 = vld [vmem:[%s7] sm:$0xf]
        %v1279 = vld [vmem:[%s7 + $0x4] sm:$0xf]
        %v1280 = vld [vmem:[%s7 + $0x8] sm:$0xf]
        %v1281 = vld [vmem:[%s7 + $0xc] sm:$0xf]
        %v1282 = vld [vmem:[%s8] sm:$0x1]
        %v1284 = vlaneseq
        %v1285 = vshrl.u32 %v1284, 7
        %v1286 = vsub.s32 0, %v1285
        %v1287 = vrot.slane %v1282, %v1286
        %v1293 = vunpack.c.l.b16 %v1278
        %v1294 = vunpack.c.l.b16 %v1279
        %v1295 = vunpack.c.l.b16 %v1280
        %v1296 = vunpack.c.l.b16 %v1281
        %v1297 = vpack.c.b16 %v1294, %v1293
        %v1298 = vpack.c.b16 %v1296, %v1295
        %vm1301 = vcmask 261120
        %v1303 = vsel %vm1301, %v1277, 0
        %1305 = vmatprep.subr.bf16.mxu0 0
        %1306 = vmatpush1.bf16.msra.mxu0 %v1297
        %1307 = vmatprep.subr.bf16.mxu0 0
        %1308 = vmatpush1.bf16.msra.mxu0 %v1298
        %1309 = vmatprep.subr.bf16.mxu0 0
        %1310 = vmatpush1.bf16.msra.mxu0 0
        %1311 = vmatprep.subr.bf16.mxu0 0
        %1312 = vmatpush1.bf16.msra.mxu0 0
        %1313 = vmatprep.subr.bf16.mxu0 0
        %1314 = vmatpush1.bf16.msra.mxu0 0
        %1315 = vmatprep.subr.bf16.mxu0 0
        %1316 = vmatpush1.bf16.msra.mxu0 0
        %1317 = vmatprep.subr.bf16.mxu0 0
        %1318 = vmatpush1.bf16.msra.mxu0 0
        %1319 = vmatprep.subr.bf16.mxu0 0
        %1320 = vmatpush1.bf16.msra.mxu0 0
        %1321 = vmatprep.subr.bf16.mxu0 0
        %1322 = vmatpush1.bf16.msra.mxu0 0
        %1323 = vmatprep.subr.bf16.mxu0 0
        %1324 = vmatpush1.bf16.msra.mxu0 0
        %1325 = vmatprep.subr.bf16.mxu0 0
        %1326 = vmatpush1.bf16.msra.mxu0 0
        %1327 = vmatprep.subr.bf16.mxu0 0
        %1328 = vmatpush1.bf16.msra.mxu0 0
        %1329 = vmatprep.subr.bf16.mxu0 0
        %1330 = vmatpush1.bf16.msra.mxu0 0
        %1331 = vmatprep.subr.bf16.mxu0 0
        %1332 = vmatpush1.bf16.msra.mxu0 0
        %1333 = vmatprep.subr.bf16.mxu0 0
        %1334 = vmatpush1.bf16.msra.mxu0 0
        %1335 = vmatprep.subr.bf16.mxu0 0
        %1336 = vmatpush1.bf16.msra.mxu0 0
        %1337 = vmatprep.mubr.bf16.mxu0 0
        %1338 = vmatmul.mubr.bf16.gmra.mrb[0].mxu0 %v1303
        %v1339 = vpop.f32.mrb[0].mxu0
        %v1340 = vadd.f32 %v1287, %v1339
        %v1341 = vpop.f32.mrb[0].mxu0
        %v1342 = vpop.f32.mrb[0].mxu0
        %v1343 = vpop.f32.mrb[0].mxu0
        %1344 = vdwg.mxu0
        %v1345 = vmax.f32 %v1340, 0.0
        %v1346 = vpack.c.bf16 %v1345, %v1345
        %v1347 = vld [vmem:[%s9] sm:$0xf]
        %v1348 = vld [vmem:[%s9 + $0x4] sm:$0xf]
        %v1349 = vld [vmem:[%s9 + $0x8] sm:$0xf]
        %v1350 = vld [vmem:[%s9 + $0xc] sm:$0xf]
        %v1351 = vld [vmem:[%s9 + $0x10] sm:$0xf]
        %v1352 = vld [vmem:[%s9 + $0x14] sm:$0xf]
        %v1353 = vld [vmem:[%s9 + $0x18] sm:$0xf]
        %v1354 = vld [vmem:[%s9 + $0x1c] sm:$0xf]
        %v1355 = vld [vmem:[%s10] sm:$0x1]
        %v1357 = vlaneseq
        %v1358 = vshrl.u32 %v1357, 7
        %v1359 = vsub.s32 0, %v1358
        %v1360 = vrot.slane %v1355, %v1359
        %v1370 = vunpack.c.l.b16 %v1347
        %v1371 = vunpack.c.l.b16 %v1348
        %v1372 = vunpack.c.l.b16 %v1349
        %v1373 = vunpack.c.l.b16 %v1350
        %v1374 = vunpack.c.l.b16 %v1351
        %v1375 = vunpack.c.l.b16 %v1352
        %v1376 = vunpack.c.l.b16 %v1353
        %v1377 = vunpack.c.l.b16 %v1354
        %v1378 = vpack.c.b16 %v1371, %v1370
        %v1379 = vpack.c.b16 %v1373, %v1372
        %v1380 = vpack.c.b16 %v1375, %v1374
        %v1381 = vpack.c.b16 %v1377, %v1376
        %vm1386 = vcmask 523264
        %v1388 = vsel %vm1386, %v1346, 0
        %1390 = vmatprep.subr.bf16.mxu0 0
        %1391 = vmatpush1.bf16.msra.mxu0 %v1378
        %1392 = vmatprep.subr.bf16.mxu0 0
        %1393 = vmatpush1.bf16.msra.mxu0 %v1379
        %1394 = vmatprep.subr.bf16.mxu0 0
        %1395 = vmatpush1.bf16.msra.mxu0 %v1380
        %1396 = vmatprep.subr.bf16.mxu0 0
        %1397 = vmatpush1.bf16.msra.mxu0 %v1381
        %1398 = vmatprep.subr.bf16.mxu0 0
        %1399 = vmatpush1.bf16.msra.mxu0 0
        %1400 = vmatprep.subr.bf16.mxu0 0
        %1401 = vmatpush1.bf16.msra.mxu0 0
        %1402 = vmatprep.subr.bf16.mxu0 0
        %1403 = vmatpush1.bf16.msra.mxu0 0
        %1404 = vmatprep.subr.bf16.mxu0 0
        %1405 = vmatpush1.bf16.msra.mxu0 0
        %1406 = vmatprep.subr.bf16.mxu0 0
        %1407 = vmatpush1.bf16.msra.mxu0 0
        %1408 = vmatprep.subr.bf16.mxu0 0
        %1409 = vmatpush1.bf16.msra.mxu0 0
        %1410 = vmatprep.subr.bf16.mxu0 0
        %1411 = vmatpush1.bf16.msra.mxu0 0
        %1412 = vmatprep.subr.bf16.mxu0 0
        %1413 = vmatpush1.bf16.msra.mxu0 0
        %1414 = vmatprep.subr.bf16.mxu0 0
        %1415 = vmatpush1.bf16.msra.mxu0 0
        %1416 = vmatprep.subr.bf16.mxu0 0
        %1417 = vmatpush1.bf16.msra.mxu0 0
        %1418 = vmatprep.subr.bf16.mxu0 0
        %1419 = vmatpush1.bf16.msra.mxu0 0
        %1420 = vmatprep.subr.bf16.mxu0 0
        %1421 = vmatpush1.bf16.msra.mxu0 0
        %1422 = vmatprep.mubr.bf16.mxu0 0
        %1423 = vmatmul.mubr.bf16.gmra.mrb[0].mxu0 %v1388
        %v1424 = vpop.f32.mrb[0].mxu0
        %v1425 = vadd.f32 %v1360, %v1424
        %v1426 = vpop.f32.mrb[0].mxu0
        %v1427 = vpop.f32.mrb[0].mxu0
        %v1428 = vpop.f32.mrb[0].mxu0
        %1429 = vdwg.mxu0
        %v1430 = vld [vmem:[%s11] sm:$0x1]
        %v1432 = vlaneseq
        %v1433 = vshrl.u32 %v1432, 7
        %v1434 = vsub.s32 0, %v1433
        %v1435 = vrot.slane %v1430, %v1434
        %v1437 = vmul.f32 %v1163, %v1435
        %v1438 = vsel %vm1171, %v1437, 0.0
        %1439 = vadd.xlane.f32.xlu0 %v1438
        %v1440 = vpop.xlane.xlu0 %1439
        %v1441 = vld [vmem:[%s12] sm:$0x1]
        %v1443 = vlaneseq
        %v1444 = vshrl.u32 %v1443, 7
        %v1445 = vsub.s32 0, %v1444
        %v1446 = vrot.slane %v1441, %v1445
        %v1448 = vmul.f32 %v1425, %v1446
        %v1449 = vsel %vm1171, %v1448, 0.0
        %1450 = vadd.xlane.f32.xlu0 %v1449
        %v1451 = vpop.xlane.xlu0 %1450
        %v1452 = vadd.f32 %v1440, %v1451
        %v1453 = vld [vmem:[#allocation8] sm:$0x1]
        %v1455 = vlaneseq
        %v1456 = vshrl.u32 %v1455, 7
        %v1457 = vsub.s32 0, %v1456
        %v1458 = vrot.slane %v1453, %v1457
        %v1460 = vadd.f32 %v1452, %v1458
        %v1461 = vxor.u32 %v1460, 2147483648
        %v1462 = vmul.f32 %v1461, 1.442695
        %v1463 = vpow.pop %v1462
        %v1464 = vadd.f32 %v1463, 1.0
        %v1465 = vrcp.pop %v1464
        %v1466 = vmul.f32 1.0, %v1465
        %1468 = vset.pattern.permute.xlu0 0
        %1469 = vperm.xlu0 %1468, %v1466
        %v1470 = vpop.permute.xlu0 %1469
        %1472 = vst [vmem:[%s353] sm:$0xff] %v1470
        %s1473 = sand.u32 %s258, 1
        %s1474 = scalar_lea.sflag [#allocation10], %s1473
        %s1475 = sand.u32 %s258, 1
        %s1476 = smul.addr %s1475, 8
        %s1477 = scalar_lea.vmem [#allocation9], %s1476
        // Predicated region
        $region541: #{tpu_custom_call.1} parent=59 // pred_check
          %p1478 = pneg %p268
        $region542: #{tpu_custom_call.1} parent=59 // pred_check_branch
          %1480 = sbr.rel (%p1478) target = $region544
        $region543: #{tpu_custom_call.1} parent=59 // pred_region
          %s1482 = ssub.s32 128, 128
          %1483 = vsyncadd %s1474, %s1482
          %s1484 = smul.addr %s40, 128
          %s1485 = scalar_lea.hbm %s14, %s1484
          %s1487 = sshll.u32 %s1477, 4
          %s1488 = int_to_ptr.vmem [resolvable:$true] %s1487
          %1490 = dma.vmem_to_hbm [thread:$0]  %s1488, 128, %s1485, %s1474
        $region544: #{tpu_custom_call.1} parent=59 // pred_fallthru
          _
      $region60: #{tpu_custom_call.1} parent=5 // pred_fallthru
        _
      %p1491 = scmp.le.s32.totalorder 2, %s35
      // Predicated region
      $region545: #{tpu_custom_call.1} parent=5 // pred_check
        %p1492 = pneg %p1491
      $region546: #{tpu_custom_call.1} parent=5 // pred_check_branch
        %1494 = sbr.rel (%p1492) target = $region548
      $region547: #{tpu_custom_call.1} parent=5 // pred_region
        %s1495 = ssub.s32 %s35, 2
        // Predicated region
        $region549: #{tpu_custom_call.1} parent=547 // pred_check
          %p1496 = pneg %p274
        $region550: #{tpu_custom_call.1} parent=547 // pred_check_branch
          %1498 = sbr.rel (%p1496) target = $region552
        $region551: #{tpu_custom_call.1} parent=547 // pred_region
          %s1499 = sand.u32 %s259, 1
          %s1500 = scalar_lea.sflag [#allocation10], %s1499
          %s1501 = sand.u32 %s259, 1
          %s1502 = smul.addr %s1501, 8
          %s1503 = scalar_lea.vmem [#allocation9], %s1502
          %1504 = dma.done %s1500, 128
        $region552: #{tpu_custom_call.1} parent=547 // pred_fallthru
          _
      $region548: #{tpu_custom_call.1} parent=5 // pred_fallthru
        _
    $region6: #{tpu_custom_call.1} parent=1 // loop_footer
      %s39 = sadd.s32 1, %s35
    $region7: #{tpu_custom_call.1} parent=1 // loop_footer_branch
      %34 = sbr.rel target = $region3
    $region8: #{tpu_custom_call.1} parent=1 // loop_exit
      _
    %1505 = vsyncpa [#allocation10], 1
    %s1506 = scalar_lea.sflag [#allocation10], 1
    %1507 = vsyncpa %s1506, 1
  %1508 = vsyncmov [#allocation4]
  %s1509 = vpop.sfrf %1508
  %p1510 = scmp.eq.s32.totalorder %s1509, 0
  %p1511 = pneg %p1510
  %1513 = shalt.err (%p1511)
  %s1514 = scalar_lea.sflag [#allocation4], 1
  %1515 = vsyncmov %s1514
  %s1516 = vpop.sfrf %1515
  %p1517 = scmp.eq.s32.totalorder %s1516, 0
  %p1518 = pneg %p1517
  %1520 = shalt.err (%p1518)
  %s1521 = scalar_lea.sflag [#allocation4], 2
  %1522 = vsyncmov %s1521
  %s1523 = vpop.sfrf %1522
  %p1524 = scmp.eq.s32.totalorder %s1523, 0
  %p1525 = pneg %p1524
  %1527 = shalt.err (%p1525)
  %s1528 = scalar_lea.sflag [#allocation4], 3
  %1529 = vsyncmov %s1528
  %s1530 = vpop.sfrf %1529
  %p1531 = scmp.eq.s32.totalorder %s1530, 0
  %p1532 = pneg %p1531
  %1534 = shalt.err (%p1532)
  %s1535 = scalar_lea.sflag [#allocation4], 4
  %1536 = vsyncmov %s1535
  %s1537 = vpop.sfrf %1536
  %p1538 = scmp.eq.s32.totalorder %s1537, 0
  %p1539 = pneg %p1538
  %1541 = shalt.err (%p1539)
  %s1542 = scalar_lea.sflag [#allocation4], 5
  %1543 = vsyncmov %s1542
  %s1544 = vpop.sfrf %1543
  %p1545 = scmp.eq.s32.totalorder %s1544, 0
  %p1546 = pneg %p1545
  %1548 = shalt.err (%p1546)
  %s1549 = scalar_lea.sflag [#allocation4], 6
  %1550 = vsyncmov %s1549
  %s1551 = vpop.sfrf %1550
  %p1552 = scmp.eq.s32.totalorder %s1551, 0
  %p1553 = pneg %p1552
  %1555 = shalt.err (%p1553)
  %s1556 = scalar_lea.sflag [#allocation4], 7
  %1557 = vsyncmov %s1556
  %s1558 = vpop.sfrf %1557
  %p1559 = scmp.eq.s32.totalorder %s1558, 0
  %p1560 = pneg %p1559
  %1562 = shalt.err (%p1560)
  %s1563 = scalar_lea.sflag [#allocation4], 8
  %1564 = vsyncmov %s1563
  %s1565 = vpop.sfrf %1564
  %p1566 = scmp.eq.s32.totalorder %s1565, 0
  %p1567 = pneg %p1566
  %1569 = shalt.err (%p1567)
  %s1570 = scalar_lea.sflag [#allocation4], 9
  %1571 = vsyncmov %s1570
  %s1572 = vpop.sfrf %1571
  %p1573 = scmp.eq.s32.totalorder %s1572, 0
  %p1574 = pneg %p1573
  %1576 = shalt.err (%p1574)
  %s1577 = scalar_lea.sflag [#allocation4], 10
  %1578 = vsyncmov %s1577
  %s1579 = vpop.sfrf %1578
  %p1580 = scmp.eq.s32.totalorder %s1579, 0
  %p1581 = pneg %p1580
  %1583 = shalt.err (%p1581)
  %s1584 = scalar_lea.sflag [#allocation4], 11
  %1585 = vsyncmov %s1584
  %s1586 = vpop.sfrf %1585
  %p1587 = scmp.eq.s32.totalorder %s1586, 0
  %p1588 = pneg %p1587
  %1590 = shalt.err (%p1588)
  %s1591 = scalar_lea.sflag [#allocation4], 12
  %1592 = vsyncmov %s1591
  %s1593 = vpop.sfrf %1592
  %p1594 = scmp.eq.s32.totalorder %s1593, 0
  %p1595 = pneg %p1594
  %1597 = shalt.err (%p1595)
  %s1598 = scalar_lea.sflag [#allocation4], 13
  %1599 = vsyncmov %s1598
  %s1600 = vpop.sfrf %1599
  %p1601 = scmp.eq.s32.totalorder %s1600, 0
  %p1602 = pneg %p1601
  %1604 = shalt.err (%p1602)
  %s1605 = scalar_lea.sflag [#allocation4], 14
  %1606 = vsyncmov %s1605
  %s1607 = vpop.sfrf %1606
  %p1608 = scmp.eq.s32.totalorder %s1607, 0
  %p1609 = pneg %p1608
  %1611 = shalt.err (%p1609)
  %s1612 = scalar_lea.sflag [#allocation4], 15
  %1613 = vsyncmov %s1612
  %s1614 = vpop.sfrf %1613
  %p1615 = scmp.eq.s32.totalorder %s1614, 0
  %p1616 = pneg %p1615
  %1618 = shalt.err (%p1616)

</llo_original>
